<compile_context>
chip_gen: v7x
topology: tpu7x:2x2x1
jax: 0.10.0
libtpu: 0.0.40
codegen_flags: <defaults>
</compile_context>

<pallas_src>
import math

import jax
import jax.numpy as jnp
from jax.experimental import pallas as pl
from jax.experimental.pallas import tpu as pltpu

# ----------------------------- model config ---------------------------------
HIDDEN     = 32
MAXLEN     = 8
NUM_ITEMS  = 10
NUM_BLOCKS = 2
NUM_HEADS  = 2
DK         = HIDDEN // NUM_HEADS
LN_EPS     = 1e-8          # final LayerNorm eps (per module definition)
BLK_EPS    = 1e-5          # in-block LayerNorm eps (PyTorch nn.LayerNorm default)
BATCH      = 2
NEG_INF    = -1e9


def _layer_norm(x, g, b, eps):
    # x: (rows, H), g/b: (1, H)
    mu  = jnp.mean(x, axis=-1, keepdims=True)
    var = jnp.mean((x - mu) ** 2, axis=-1, keepdims=True)
    return (x - mu) * jax.lax.rsqrt(var + eps) * g + b


# --------------------------- fused SASRec kernel -----------------------------
def sasrec_fused_kernel(x_ref, bias_ref,
                        ln1g_ref, ln1b_ref, wqkv_ref, bqkv_ref, wo_ref, bo_ref,
                        ln2g_ref, ln2b_ref, w1_ref, b1_ref, w2_ref, b2_ref,
                        lng_ref, lnb_ref,
                        o_ref):
    BL, H = x_ref.shape                 # (B*L, H)
    B, _, L = bias_ref.shape            # (B, 1, L) additive key-padding bias

    x    = x_ref[...]                   # (B*L, H) activations, VMEM-resident
    bias = bias_ref[...]                # (B, 1, L)

    for blk in range(NUM_BLOCKS):       # static unroll; all weights stay in VMEM
        # ---- sublayer 1: pre-LN multi-head self-attention -------------------
        h = _layer_norm(x, ln1g_ref[blk], ln1b_ref[blk], BLK_EPS)
        # fused QKV projection (scale 1/sqrt(dk) pre-folded into the Q part)
        qkv = jnp.dot(h, wqkv_ref[blk], preferred_element_type=jnp.float32) \
              + bqkv_ref[blk]                                   # (B*L, 3H)
        q = qkv[:, 0 * H:1 * H].reshape(B, L, H)
        k = qkv[:, 1 * H:2 * H].reshape(B, L, H)
        v = qkv[:, 2 * H:3 * H].reshape(B, L, H)

        head_outs = []
        for hd in range(NUM_HEADS):     # static, NUM_HEADS = 2
            sl = slice(hd * DK, (hd + 1) * DK)
            qh, kh, vh = q[..., sl], k[..., sl], v[..., sl]     # (B, L, DK)
            s = jnp.einsum('bqd,bkd->bqk', qh, kh,
                           preferred_element_type=jnp.float32)  # (B, L, L)
            s = s + bias                                        # mask padded keys
            # manual numerically-stable softmax; reciprocal goes to the EUP
            m = jnp.max(s, axis=-1, keepdims=True)
            e = jnp.exp(s - m)
            p = e * pl.reciprocal(jnp.sum(e, axis=-1, keepdims=True),
                                  approx=True)
            head_outs.append(jnp.einsum('bqk,bkd->bqd', p, vh,
                                        preferred_element_type=jnp.float32))
        attn = jnp.concatenate(head_outs, axis=-1).reshape(BL, H)
        attn = jnp.dot(attn, wo_ref[blk],
                       preferred_element_type=jnp.float32) + bo_ref[blk]
        x = x + attn

        # ---- sublayer 2: pre-LN position-wise feed-forward -------------------
        h2 = _layer_norm(x, ln2g_ref[blk], ln2b_ref[blk], BLK_EPS)
        ff = jnp.dot(h2, w1_ref[blk],
                     preferred_element_type=jnp.float32) + b1_ref[blk]
        ff = jax.nn.gelu(ff, approximate=True)
        ff = jnp.dot(ff, w2_ref[blk],
                     preferred_element_type=jnp.float32) + b2_ref[blk]
        x = x + ff

    # ---- final LayerNorm (dropout = identity in eval mode) -------------------
    o_ref[...] = _layer_norm(x, lng_ref[...], lnb_ref[...], LN_EPS)


# ----------------------------- parameter init --------------------------------
def init_params(key):
    ks = jax.random.split(key, 4 + NUM_BLOCKS)
    item_emb = 0.02 * jax.random.normal(ks[0], (NUM_ITEMS + 2, HIDDEN), jnp.float32)
    item_emb = item_emb.at[0].set(0.0)                          # padding_idx = 0
    pos_emb = 0.02 * jax.random.normal(ks[1], (MAXLEN, HIDDEN), jnp.float32)

    blocks = []
    for i in range(NUM_BLOCKS):
        bk = jax.random.split(ks[4 + i], 6)
        blocks.append(dict(
            ln1_g=jnp.ones((1, HIDDEN), jnp.float32),
            ln1_b=jnp.zeros((1, HIDDEN), jnp.float32),
            wq=0.02 * jax.random.normal(bk[0], (HIDDEN, HIDDEN), jnp.float32),
            bq=jnp.zeros((1, HIDDEN), jnp.float32),
            wk=0.02 * jax.random.normal(bk[1], (HIDDEN, HIDDEN), jnp.float32),
            bk=jnp.zeros((1, HIDDEN), jnp.float32),
            wv=0.02 * jax.random.normal(bk[2], (HIDDEN, HIDDEN), jnp.float32),
            bv=jnp.zeros((1, HIDDEN), jnp.float32),
            wo=0.02 * jax.random.normal(bk[3], (HIDDEN, HIDDEN), jnp.float32),
            bo=jnp.zeros((1, HIDDEN), jnp.float32),
            ln2_g=jnp.ones((1, HIDDEN), jnp.float32),
            ln2_b=jnp.zeros((1, HIDDEN), jnp.float32),
            w1=0.02 * jax.random.normal(bk[4], (HIDDEN, 4 * HIDDEN), jnp.float32),
            b1=jnp.zeros((1, 4 * HIDDEN), jnp.float32),
            w2=0.02 * jax.random.normal(bk[5], (4 * HIDDEN, HIDDEN), jnp.float32),
            b2=jnp.zeros((1, HIDDEN), jnp.float32),
        ))

    final_ln_g = jnp.ones((1, HIDDEN), jnp.float32)
    final_ln_b = jnp.zeros((1, HIDDEN), jnp.float32)
    return item_emb, pos_emb, blocks, final_ln_g, final_ln_b


def pack_params(blocks, final_g, final_b):
    """Stack per-block weights (block axis first), fuse QKV, fold attn scale."""
    scale = 1.0 / math.sqrt(DK)
    stk = lambda name: jnp.stack([blk[name] for blk in blocks])          # (NB, ...)
    wqkv = jnp.stack([jnp.concatenate([b["wq"] * scale, b["wk"], b["wv"]], axis=1)
                      for b in blocks])                                  # (NB, H, 3H)
    bqkv = jnp.stack([jnp.concatenate([b["bq"] * scale, b["bk"], b["bv"]], axis=1)
                      for b in blocks])                                  # (NB, 1, 3H)
    return (stk("ln1_g"), stk("ln1_b"), wqkv, bqkv, stk("wo"), stk("bo"),
            stk("ln2_g"), stk("ln2_b"), stk("w1"), stk("b1"), stk("w2"), stk("b2"),
            final_g, final_b)


# ----------------------------- SASRec forward --------------------------------
def _full_spec(a):
    # Whole-array block in VMEM (block shape == array shape satisfies tiling rules).
    if a.ndim == 2:
        return pl.BlockSpec(a.shape, lambda i: (0, 0))
    return pl.BlockSpec(a.shape, lambda i: (0, 0, 0))


@jax.jit
def sasrec_forward(ids, item_emb, pos_emb, packed):
    B, L = ids.shape
    # Embedding lookups (data-dependent gather) stay in plain JAX glue.
    seqs = jnp.take(item_emb, ids, axis=0) + pos_emb[:L][None, :, :]     # (B, L, H)
    x = seqs.reshape(B * L, HIDDEN).astype(jnp.float32)
    # Additive key-padding bias: 0 for real items, -1e9 for padding.
    bias = jnp.where(ids > 0, 0.0, NEG_INF).astype(jnp.float32).reshape(B, 1, L)

    args = (x, bias) + packed
    # Total VMEM footprint (all weights + activations) ~100 KB: far below the
    # default scoped VMEM limit on every TPU generation, so no vmem_limit_bytes
    # override is needed.
    out = pl.pallas_call(
        sasrec_fused_kernel,
        out_shape=jax.ShapeDtypeStruct((B * L, HIDDEN), jnp.float32),
        grid=(1,),                                   # single program, whole batch
        in_specs=[_full_spec(a) for a in args],
        out_specs=pl.BlockSpec((B * L, HIDDEN), lambda i: (0, 0)),
        compiler_params=pltpu.CompilerParams(dimension_semantics=("arbitrary",)),
    )(*args)
    return out.reshape(B, L, HIDDEN)


# ------------------------- pure-JAX reference (check) ------------------------
def sasrec_reference(ids, item_emb, pos_emb, packed):
    (ln1g, ln1b, wqkv, bqkv, wo, bo,
     ln2g, ln2b, w1, b1, w2, b2, lng, lnb) = packed
    B, L = ids.shape
    seqs = jnp.take(item_emb, ids, axis=0) + pos_emb[:L][None, :, :]
    x = seqs.reshape(B * L, HIDDEN).astype(jnp.float32)
    bias = jnp.where(ids > 0, 0.0, NEG_INF).astype(jnp.float32).reshape(B, 1, L)

    def ln(z, g, b, eps):
        mu = jnp.mean(z, -1, keepdims=True)
        var = jnp.mean((z - mu) ** 2, -1, keepdims=True)
        return (z - mu) / jnp.sqrt(var + eps) * g + b

    for blk in range(NUM_BLOCKS):
        h = ln(x, ln1g[blk], ln1b[blk], BLK_EPS)
        qkv = h @ wqkv[blk] + bqkv[blk]
        q = qkv[:, :HIDDEN].reshape(B, L, HIDDEN)
        k = qkv[:, HIDDEN:2 * HIDDEN].reshape(B, L, HIDDEN)
        v = qkv[:, 2 * HIDDEN:].reshape(B, L, HIDDEN)
        heads = []
        for hd in range(NUM_HEADS):
            sl = slice(hd * DK, (hd + 1) * DK)
            s = jnp.einsum('bqd,bkd->bqk', q[..., sl], k[..., sl]) + bias
            p = jax.nn.softmax(s, axis=-1)
            heads.append(jnp.einsum('bqk,bkd->bqd', p, v[..., sl]))
        attn = jnp.concatenate(heads, -1).reshape(B * L, HIDDEN) @ wo[blk] + bo[blk]
        x = x + attn
        h2 = ln(x, ln2g[blk], ln2b[blk], BLK_EPS)
        ff = jax.nn.gelu(h2 @ w1[blk] + b1[blk], approximate=True)
        x = x + (ff @ w2[blk] + b2[blk])
    return ln(x, lng, lnb, LN_EPS).reshape(B, L, HIDDEN)


if __name__ == "__main__":
    key = jax.random.PRNGKey(0)
    k_params, k_ids = jax.random.split(key)

    item_emb, pos_emb, blocks, final_g, final_b = init_params(k_params)
    packed = pack_params(blocks, final_g, final_b)

    # Deterministic item-id sequence with some padding zeros to exercise the mask.
    ids = jax.random.randint(k_ids, (BATCH, MAXLEN), 0, NUM_ITEMS + 2, dtype=jnp.int32)
    ids = ids.at[:, :2].set(0)   # force some padding positions
    ids = ids.at[:, -1].set(1)   # guarantee at least one valid item per row

    out = sasrec_forward(ids, item_emb, pos_emb, packed)
    out = jax.block_until_ready(out)
    assert out.shape == (BATCH, MAXLEN, HIDDEN)
    assert bool(jnp.all(jnp.isfinite(out)))

    ref = sasrec_reference(ids, item_emb, pos_emb, packed)
    assert bool(jnp.allclose(out, ref, atol=5e-3, rtol=5e-3)), \
        float(jnp.max(jnp.abs(out - ref)))

    print("KERNEL_OK")
</pallas_src>

<mosaic_0001>
module attributes {stable_mosaic.version = 11 : i64} {
  func.func @sasrec_fused_kernel(%arg0: i32, %arg1: memref<16x32xf32, #tpu.memory_space<vmem>>, %arg2: memref<2x1x8xf32, #tpu.memory_space<vmem>>, %arg3: memref<2x1x32xf32, #tpu.memory_space<vmem>>, %arg4: memref<2x1x32xf32, #tpu.memory_space<vmem>>, %arg5: memref<2x32x96xf32, #tpu.memory_space<vmem>>, %arg6: memref<2x1x96xf32, #tpu.memory_space<vmem>>, %arg7: memref<2x32x32xf32, #tpu.memory_space<vmem>>, %arg8: memref<2x1x32xf32, #tpu.memory_space<vmem>>, %arg9: memref<2x1x32xf32, #tpu.memory_space<vmem>>, %arg10: memref<2x1x32xf32, #tpu.memory_space<vmem>>, %arg11: memref<2x32x128xf32, #tpu.memory_space<vmem>>, %arg12: memref<2x1x128xf32, #tpu.memory_space<vmem>>, %arg13: memref<2x128x32xf32, #tpu.memory_space<vmem>>, %arg14: memref<2x1x32xf32, #tpu.memory_space<vmem>>, %arg15: memref<1x32xf32, #tpu.memory_space<vmem>>, %arg16: memref<1x32xf32, #tpu.memory_space<vmem>>, %arg17: memref<16x32xf32, #tpu.memory_space<vmem>>) attributes {dimension_semantics = [#tpu.dimension_semantics<arbitrary>], iteration_bounds = array<i64: 1>, scalar_prefetch = 0 : i64, scratch_operands = 0 : i64, tpu.core_type = #tpu.core_type<tc>, window_params = [{pipeline_mode = #tpu.pipeline_mode<synchronous>, transform_indices = @transform_0, window_bounds = array<i64: 16, 32>}, {pipeline_mode = #tpu.pipeline_mode<synchronous>, transform_indices = @transform_1, window_bounds = array<i64: 2, 1, 8>}, {pipeline_mode = #tpu.pipeline_mode<synchronous>, transform_indices = @transform_2, window_bounds = array<i64: 2, 1, 32>}, {pipeline_mode = #tpu.pipeline_mode<synchronous>, transform_indices = @transform_3, window_bounds = array<i64: 2, 1, 32>}, {pipeline_mode = #tpu.pipeline_mode<synchronous>, transform_indices = @transform_4, window_bounds = array<i64: 2, 32, 96>}, {pipeline_mode = #tpu.pipeline_mode<synchronous>, transform_indices = @transform_5, window_bounds = array<i64: 2, 1, 96>}, {pipeline_mode = #tpu.pipeline_mode<synchronous>, transform_indices = @transform_6, window_bounds = array<i64: 2, 32, 32>}, {pipeline_mode = #tpu.pipeline_mode<synchronous>, transform_indices = @transform_7, window_bounds = array<i64: 2, 1, 32>}, {pipeline_mode = #tpu.pipeline_mode<synchronous>, transform_indices = @transform_8, window_bounds = array<i64: 2, 1, 32>}, {pipeline_mode = #tpu.pipeline_mode<synchronous>, transform_indices = @transform_9, window_bounds = array<i64: 2, 1, 32>}, {pipeline_mode = #tpu.pipeline_mode<synchronous>, transform_indices = @transform_10, window_bounds = array<i64: 2, 32, 128>}, {pipeline_mode = #tpu.pipeline_mode<synchronous>, transform_indices = @transform_11, window_bounds = array<i64: 2, 1, 128>}, {pipeline_mode = #tpu.pipeline_mode<synchronous>, transform_indices = @transform_12, window_bounds = array<i64: 2, 128, 32>}, {pipeline_mode = #tpu.pipeline_mode<synchronous>, transform_indices = @transform_13, window_bounds = array<i64: 2, 1, 32>}, {pipeline_mode = #tpu.pipeline_mode<synchronous>, transform_indices = @transform_14, window_bounds = array<i64: 1, 32>}, {pipeline_mode = #tpu.pipeline_mode<synchronous>, transform_indices = @transform_15, window_bounds = array<i64: 1, 32>}, {pipeline_mode = #tpu.pipeline_mode<synchronous>, transform_indices = @transform_16, window_bounds = array<i64: 16, 32>}]} {
    %c0 = arith.constant 0 : index
    %c0_0 = arith.constant 0 : index
    %0 = vector.load %arg1[%c0, %c0_0] : memref<16x32xf32, #tpu.memory_space<vmem>>, vector<16x32xf32>
    %c0_1 = arith.constant 0 : index
    %c0_2 = arith.constant 0 : index
    %c0_3 = arith.constant 0 : index
    %1 = vector.load %arg2[%c0_1, %c0_2, %c0_3] : memref<2x1x8xf32, #tpu.memory_space<vmem>>, vector<2x1x8xf32>
    %c0_4 = arith.constant 0 : index
    %c0_5 = arith.constant 0 : index
    %c0_6 = arith.constant 0 : index
    %2 = vector.load %arg3[%c0_4, %c0_5, %c0_6] : memref<2x1x32xf32, #tpu.memory_space<vmem>>, vector<1x1x32xf32>
    %3 = vector.shape_cast %2 : vector<1x1x32xf32> to vector<1x32xf32>
    %c0_7 = arith.constant 0 : index
    %c0_8 = arith.constant 0 : index
    %c0_9 = arith.constant 0 : index
    %4 = vector.load %arg4[%c0_7, %c0_8, %c0_9] : memref<2x1x32xf32, #tpu.memory_space<vmem>>, vector<1x1x32xf32>
    %5 = vector.shape_cast %4 : vector<1x1x32xf32> to vector<1x32xf32>
    %cst = arith.constant dense<0.000000e+00> : vector<16xf32>
    %6 = vector.multi_reduction <add>, %0, %cst [1] : vector<16x32xf32> to vector<16xf32>
    %7 = vector.shape_cast %6 : vector<16xf32> to vector<16x1xf32>
    %cst_10 = arith.constant 3.200000e+01 : f32
    %8 = vector.broadcast %cst_10 : f32 to vector<16x1xf32>
    %9 = arith.divf %7, %8 : vector<16x1xf32>
    %10 = vector.broadcast %9 : vector<16x1xf32> to vector<16x32xf32>
    %11 = arith.subf %0, %10 : vector<16x32xf32>
    %12 = arith.mulf %11, %11 : vector<16x32xf32>
    %cst_11 = arith.constant dense<0.000000e+00> : vector<16xf32>
    %13 = vector.multi_reduction <add>, %12, %cst_11 [1] : vector<16x32xf32> to vector<16xf32>
    %14 = vector.shape_cast %13 : vector<16xf32> to vector<16x1xf32>
    %cst_12 = arith.constant 3.200000e+01 : f32
    %15 = vector.broadcast %cst_12 : f32 to vector<16x1xf32>
    %16 = arith.divf %14, %15 : vector<16x1xf32>
    %17 = vector.broadcast %9 : vector<16x1xf32> to vector<16x32xf32>
    %18 = arith.subf %0, %17 : vector<16x32xf32>
    %cst_13 = arith.constant 9.99999974E-6 : f32
    %19 = vector.broadcast %cst_13 : f32 to vector<16x1xf32>
    %20 = arith.addf %16, %19 : vector<16x1xf32>
    %21 = math.rsqrt %20 : vector<16x1xf32>
    %22 = vector.broadcast %21 : vector<16x1xf32> to vector<16x32xf32>
    %23 = arith.mulf %18, %22 : vector<16x32xf32>
    %24 = vector.broadcast %3 : vector<1x32xf32> to vector<16x32xf32>
    %25 = arith.mulf %23, %24 : vector<16x32xf32>
    %26 = vector.broadcast %5 : vector<1x32xf32> to vector<16x32xf32>
    %27 = arith.addf %25, %26 : vector<16x32xf32>
    %c0_14 = arith.constant 0 : index
    %c0_15 = arith.constant 0 : index
    %c0_16 = arith.constant 0 : index
    %28 = vector.load %arg5[%c0_14, %c0_15, %c0_16] : memref<2x32x96xf32, #tpu.memory_space<vmem>>, vector<1x32x96xf32>
    %29 = vector.shape_cast %28 : vector<1x32x96xf32> to vector<32x96xf32>
    %cst_17 = arith.constant dense<0.000000e+00> : vector<16x96xf32>
    %30 = tpu.matmul %27, %29, %cst_17 {dimension_numbers = #tpu.dot_dimension_numbers<[1], [0], [0], [1], [0, 0, 1, 1], [], []>} : vector<16x32xf32>, vector<32x96xf32>, vector<16x96xf32> -> vector<16x96xf32>
    %c0_18 = arith.constant 0 : index
    %c0_19 = arith.constant 0 : index
    %c0_20 = arith.constant 0 : index
    %31 = vector.load %arg6[%c0_18, %c0_19, %c0_20] : memref<2x1x96xf32, #tpu.memory_space<vmem>>, vector<1x1x96xf32>
    %32 = vector.shape_cast %31 : vector<1x1x96xf32> to vector<1x96xf32>
    %33 = vector.broadcast %32 : vector<1x96xf32> to vector<16x96xf32>
    %34 = arith.addf %30, %33 : vector<16x96xf32>
    %35 = vector.extract_strided_slice %34 {offsets = [0, 0], sizes = [16, 32], strides = [1, 1]} : vector<16x96xf32> to vector<16x32xf32>
    %36 = vector.shape_cast %35 : vector<16x32xf32> to vector<2x8x32xf32>
    %37 = vector.extract_strided_slice %34 {offsets = [0, 32], sizes = [16, 32], strides = [1, 1]} : vector<16x96xf32> to vector<16x32xf32>
    %38 = vector.shape_cast %37 : vector<16x32xf32> to vector<2x8x32xf32>
    %39 = vector.extract_strided_slice %34 {offsets = [0, 64], sizes = [16, 32], strides = [1, 1]} : vector<16x96xf32> to vector<16x32xf32>
    %40 = vector.shape_cast %39 : vector<16x32xf32> to vector<2x8x32xf32>
    %41 = vector.extract_strided_slice %36 {offsets = [0, 0, 0], sizes = [2, 8, 16], strides = [1, 1, 1]} : vector<2x8x32xf32> to vector<2x8x16xf32>
    %42 = vector.extract_strided_slice %38 {offsets = [0, 0, 0], sizes = [2, 8, 16], strides = [1, 1, 1]} : vector<2x8x32xf32> to vector<2x8x16xf32>
    %43 = vector.extract_strided_slice %40 {offsets = [0, 0, 0], sizes = [2, 8, 16], strides = [1, 1, 1]} : vector<2x8x32xf32> to vector<2x8x16xf32>
    "tpu.trace_start"() <{level = 10 : i32, message = "bqd,bkd->bqk"}> : () -> ()
    %cst_21 = arith.constant dense<0.000000e+00> : vector<2x8x8xf32>
    %44 = tpu.matmul %41, %42, %cst_21 {dimension_numbers = #tpu.dot_dimension_numbers<[2], [2], [1], [1], [0, 0, 0, 1, 1, 1], [0], [0]>} : vector<2x8x16xf32>, vector<2x8x16xf32>, vector<2x8x8xf32> -> vector<2x8x8xf32>
    "tpu.trace_stop"() : () -> ()
    %45 = vector.broadcast %1 : vector<2x1x8xf32> to vector<2x8x8xf32>
    %46 = arith.addf %44, %45 : vector<2x8x8xf32>
    %cst_22 = arith.constant dense<0xFF800000> : vector<2x8xf32>
    %47 = vector.multi_reduction <maximumf>, %46, %cst_22 [2] : vector<2x8x8xf32> to vector<2x8xf32>
    %48 = vector.shape_cast %47 : vector<2x8xf32> to vector<2x8x1xf32>
    %49 = vector.broadcast %48 : vector<2x8x1xf32> to vector<2x8x8xf32>
    %50 = arith.subf %46, %49 : vector<2x8x8xf32>
    %51 = math.exp %50 : vector<2x8x8xf32>
    %cst_23 = arith.constant dense<0.000000e+00> : vector<2x8xf32>
    %52 = vector.multi_reduction <add>, %51, %cst_23 [2] : vector<2x8x8xf32> to vector<2x8xf32>
    %53 = vector.shape_cast %52 : vector<2x8xf32> to vector<2x8x1xf32>
    %54 = tpu.reciprocal %53 {approx = true} : vector<2x8x1xf32> -> vector<2x8x1xf32>
    %55 = vector.broadcast %54 : vector<2x8x1xf32> to vector<2x8x8xf32>
    %56 = arith.mulf %51, %55 : vector<2x8x8xf32>
    "tpu.trace_start"() <{level = 10 : i32, message = "bqk,bkd->bqd"}> : () -> ()
    %cst_24 = arith.constant dense<0.000000e+00> : vector<2x8x16xf32>
    %57 = tpu.matmul %56, %43, %cst_24 {dimension_numbers = #tpu.dot_dimension_numbers<[2], [1], [1], [2], [0, 0, 0, 1, 1, 2], [0], [0]>} : vector<2x8x8xf32>, vector<2x8x16xf32>, vector<2x8x16xf32> -> vector<2x8x16xf32>
    "tpu.trace_stop"() : () -> ()
    %58 = vector.extract_strided_slice %36 {offsets = [0, 0, 16], sizes = [2, 8, 16], strides = [1, 1, 1]} : vector<2x8x32xf32> to vector<2x8x16xf32>
    %59 = vector.extract_strided_slice %38 {offsets = [0, 0, 16], sizes = [2, 8, 16], strides = [1, 1, 1]} : vector<2x8x32xf32> to vector<2x8x16xf32>
    %60 = vector.extract_strided_slice %40 {offsets = [0, 0, 16], sizes = [2, 8, 16], strides = [1, 1, 1]} : vector<2x8x32xf32> to vector<2x8x16xf32>
    "tpu.trace_start"() <{level = 10 : i32, message = "bqd,bkd->bqk"}> : () -> ()
    %cst_25 = arith.constant dense<0.000000e+00> : vector<2x8x8xf32>
    %61 = tpu.matmul %58, %59, %cst_25 {dimension_numbers = #tpu.dot_dimension_numbers<[2], [2], [1], [1], [0, 0, 0, 1, 1, 1], [0], [0]>} : vector<2x8x16xf32>, vector<2x8x16xf32>, vector<2x8x8xf32> -> vector<2x8x8xf32>
    "tpu.trace_stop"() : () -> ()
    %62 = vector.broadcast %1 : vector<2x1x8xf32> to vector<2x8x8xf32>
    %63 = arith.addf %61, %62 : vector<2x8x8xf32>
    %cst_26 = arith.constant dense<0xFF800000> : vector<2x8xf32>
    %64 = vector.multi_reduction <maximumf>, %63, %cst_26 [2] : vector<2x8x8xf32> to vector<2x8xf32>
    %65 = vector.shape_cast %64 : vector<2x8xf32> to vector<2x8x1xf32>
    %66 = vector.broadcast %65 : vector<2x8x1xf32> to vector<2x8x8xf32>
    %67 = arith.subf %63, %66 : vector<2x8x8xf32>
    %68 = math.exp %67 : vector<2x8x8xf32>
    %cst_27 = arith.constant dense<0.000000e+00> : vector<2x8xf32>
    %69 = vector.multi_reduction <add>, %68, %cst_27 [2] : vector<2x8x8xf32> to vector<2x8xf32>
    %70 = vector.shape_cast %69 : vector<2x8xf32> to vector<2x8x1xf32>
    %71 = tpu.reciprocal %70 {approx = true} : vector<2x8x1xf32> -> vector<2x8x1xf32>
    %72 = vector.broadcast %71 : vector<2x8x1xf32> to vector<2x8x8xf32>
    %73 = arith.mulf %68, %72 : vector<2x8x8xf32>
    "tpu.trace_start"() <{level = 10 : i32, message = "bqk,bkd->bqd"}> : () -> ()
    %cst_28 = arith.constant dense<0.000000e+00> : vector<2x8x16xf32>
    %74 = tpu.matmul %73, %60, %cst_28 {dimension_numbers = #tpu.dot_dimension_numbers<[2], [1], [1], [2], [0, 0, 0, 1, 1, 2], [0], [0]>} : vector<2x8x8xf32>, vector<2x8x16xf32>, vector<2x8x16xf32> -> vector<2x8x16xf32>
    "tpu.trace_stop"() : () -> ()
    %75 = tpu.concatenate %57, %74 in 2 : vector<2x8x16xf32>, vector<2x8x16xf32> -> vector<2x8x32xf32>
    %76 = vector.shape_cast %75 : vector<2x8x32xf32> to vector<16x32xf32>
    %c0_29 = arith.constant 0 : index
    %c0_30 = arith.constant 0 : index
    %c0_31 = arith.constant 0 : index
    %77 = vector.load %arg7[%c0_29, %c0_30, %c0_31] : memref<2x32x32xf32, #tpu.memory_space<vmem>>, vector<1x32x32xf32>
    %78 = vector.shape_cast %77 : vector<1x32x32xf32> to vector<32x32xf32>
    %cst_32 = arith.constant dense<0.000000e+00> : vector<16x32xf32>
    %79 = tpu.matmul %76, %78, %cst_32 {dimension_numbers = #tpu.dot_dimension_numbers<[1], [0], [0], [1], [0, 0, 1, 1], [], []>} : vector<16x32xf32>, vector<32x32xf32>, vector<16x32xf32> -> vector<16x32xf32>
    %c0_33 = arith.constant 0 : index
    %c0_34 = arith.constant 0 : index
    %c0_35 = arith.constant 0 : index
    %80 = vector.load %arg8[%c0_33, %c0_34, %c0_35] : memref<2x1x32xf32, #tpu.memory_space<vmem>>, vector<1x1x32xf32>
    %81 = vector.shape_cast %80 : vector<1x1x32xf32> to vector<1x32xf32>
    %82 = vector.broadcast %81 : vector<1x32xf32> to vector<16x32xf32>
    %83 = arith.addf %79, %82 : vector<16x32xf32>
    %84 = arith.addf %0, %83 : vector<16x32xf32>
    %c0_36 = arith.constant 0 : index
    %c0_37 = arith.constant 0 : index
    %c0_38 = arith.constant 0 : index
    %85 = vector.load %arg9[%c0_36, %c0_37, %c0_38] : memref<2x1x32xf32, #tpu.memory_space<vmem>>, vector<1x1x32xf32>
    %86 = vector.shape_cast %85 : vector<1x1x32xf32> to vector<1x32xf32>
    %c0_39 = arith.constant 0 : index
    %c0_40 = arith.constant 0 : index
    %c0_41 = arith.constant 0 : index
    %87 = vector.load %arg10[%c0_39, %c0_40, %c0_41] : memref<2x1x32xf32, #tpu.memory_space<vmem>>, vector<1x1x32xf32>
    %88 = vector.shape_cast %87 : vector<1x1x32xf32> to vector<1x32xf32>
    %cst_42 = arith.constant dense<0.000000e+00> : vector<16xf32>
    %89 = vector.multi_reduction <add>, %84, %cst_42 [1] : vector<16x32xf32> to vector<16xf32>
    %90 = vector.shape_cast %89 : vector<16xf32> to vector<16x1xf32>
    %cst_43 = arith.constant 3.200000e+01 : f32
    %91 = vector.broadcast %cst_43 : f32 to vector<16x1xf32>
    %92 = arith.divf %90, %91 : vector<16x1xf32>
    %93 = vector.broadcast %92 : vector<16x1xf32> to vector<16x32xf32>
    %94 = arith.subf %84, %93 : vector<16x32xf32>
    %95 = arith.mulf %94, %94 : vector<16x32xf32>
    %cst_44 = arith.constant dense<0.000000e+00> : vector<16xf32>
    %96 = vector.multi_reduction <add>, %95, %cst_44 [1] : vector<16x32xf32> to vector<16xf32>
    %97 = vector.shape_cast %96 : vector<16xf32> to vector<16x1xf32>
    %cst_45 = arith.constant 3.200000e+01 : f32
    %98 = vector.broadcast %cst_45 : f32 to vector<16x1xf32>
    %99 = arith.divf %97, %98 : vector<16x1xf32>
    %100 = vector.broadcast %92 : vector<16x1xf32> to vector<16x32xf32>
    %101 = arith.subf %84, %100 : vector<16x32xf32>
    %cst_46 = arith.constant 9.99999974E-6 : f32
    %102 = vector.broadcast %cst_46 : f32 to vector<16x1xf32>
    %103 = arith.addf %99, %102 : vector<16x1xf32>
    %104 = math.rsqrt %103 : vector<16x1xf32>
    %105 = vector.broadcast %104 : vector<16x1xf32> to vector<16x32xf32>
    %106 = arith.mulf %101, %105 : vector<16x32xf32>
    %107 = vector.broadcast %86 : vector<1x32xf32> to vector<16x32xf32>
    %108 = arith.mulf %106, %107 : vector<16x32xf32>
    %109 = vector.broadcast %88 : vector<1x32xf32> to vector<16x32xf32>
    %110 = arith.addf %108, %109 : vector<16x32xf32>
    %c0_47 = arith.constant 0 : index
    %c0_48 = arith.constant 0 : index
    %c0_49 = arith.constant 0 : index
    %111 = vector.load %arg11[%c0_47, %c0_48, %c0_49] : memref<2x32x128xf32, #tpu.memory_space<vmem>>, vector<1x32x128xf32>
    %112 = vector.shape_cast %111 : vector<1x32x128xf32> to vector<32x128xf32>
    %cst_50 = arith.constant dense<0.000000e+00> : vector<16x128xf32>
    %113 = tpu.matmul %110, %112, %cst_50 {dimension_numbers = #tpu.dot_dimension_numbers<[1], [0], [0], [1], [0, 0, 1, 1], [], []>} : vector<16x32xf32>, vector<32x128xf32>, vector<16x128xf32> -> vector<16x128xf32>
    %c0_51 = arith.constant 0 : index
    %c0_52 = arith.constant 0 : index
    %c0_53 = arith.constant 0 : index
    %114 = vector.load %arg12[%c0_51, %c0_52, %c0_53] : memref<2x1x128xf32, #tpu.memory_space<vmem>>, vector<1x1x128xf32>
    %115 = vector.shape_cast %114 : vector<1x1x128xf32> to vector<1x128xf32>
    %116 = vector.broadcast %115 : vector<1x128xf32> to vector<16x128xf32>
    %117 = arith.addf %113, %116 : vector<16x128xf32>
    %118 = arith.mulf %117, %117 : vector<16x128xf32>
    %119 = arith.mulf %117, %118 : vector<16x128xf32>
    %cst_54 = arith.constant 4.471500e-02 : f32
    %120 = vector.broadcast %cst_54 : f32 to vector<16x128xf32>
    %121 = arith.mulf %120, %119 : vector<16x128xf32>
    %122 = arith.addf %117, %121 : vector<16x128xf32>
    %cst_55 = arith.constant 0.797884583 : f32
    %123 = vector.broadcast %cst_55 : f32 to vector<16x128xf32>
    %124 = arith.mulf %123, %122 : vector<16x128xf32>
    %125 = math.tanh %124 : vector<16x128xf32>
    %cst_56 = arith.constant 1.000000e+00 : f32
    %126 = vector.broadcast %cst_56 : f32 to vector<16x128xf32>
    %127 = arith.addf %126, %125 : vector<16x128xf32>
    %cst_57 = arith.constant 5.000000e-01 : f32
    %128 = vector.broadcast %cst_57 : f32 to vector<16x128xf32>
    %129 = arith.mulf %128, %127 : vector<16x128xf32>
    %130 = arith.mulf %117, %129 : vector<16x128xf32>
    %c0_58 = arith.constant 0 : index
    %c0_59 = arith.constant 0 : index
    %c0_60 = arith.constant 0 : index
    %131 = vector.load %arg13[%c0_58, %c0_59, %c0_60] : memref<2x128x32xf32, #tpu.memory_space<vmem>>, vector<1x128x32xf32>
    %132 = vector.shape_cast %131 : vector<1x128x32xf32> to vector<128x32xf32>
    %cst_61 = arith.constant dense<0.000000e+00> : vector<16x32xf32>
    %133 = tpu.matmul %130, %132, %cst_61 {dimension_numbers = #tpu.dot_dimension_numbers<[1], [0], [0], [1], [0, 0, 1, 1], [], []>} : vector<16x128xf32>, vector<128x32xf32>, vector<16x32xf32> -> vector<16x32xf32>
    %c0_62 = arith.constant 0 : index
    %c0_63 = arith.constant 0 : index
    %c0_64 = arith.constant 0 : index
    %134 = vector.load %arg14[%c0_62, %c0_63, %c0_64] : memref<2x1x32xf32, #tpu.memory_space<vmem>>, vector<1x1x32xf32>
    %135 = vector.shape_cast %134 : vector<1x1x32xf32> to vector<1x32xf32>
    %136 = vector.broadcast %135 : vector<1x32xf32> to vector<16x32xf32>
    %137 = arith.addf %133, %136 : vector<16x32xf32>
    %138 = arith.addf %84, %137 : vector<16x32xf32>
    %c1 = arith.constant 1 : index
    %c0_65 = arith.constant 0 : index
    %c0_66 = arith.constant 0 : index
    %139 = vector.load %arg3[%c1, %c0_65, %c0_66] : memref<2x1x32xf32, #tpu.memory_space<vmem>>, vector<1x1x32xf32>
    %140 = vector.shape_cast %139 : vector<1x1x32xf32> to vector<1x32xf32>
    %c1_67 = arith.constant 1 : index
    %c0_68 = arith.constant 0 : index
    %c0_69 = arith.constant 0 : index
    %141 = vector.load %arg4[%c1_67, %c0_68, %c0_69] : memref<2x1x32xf32, #tpu.memory_space<vmem>>, vector<1x1x32xf32>
    %142 = vector.shape_cast %141 : vector<1x1x32xf32> to vector<1x32xf32>
    %cst_70 = arith.constant dense<0.000000e+00> : vector<16xf32>
    %143 = vector.multi_reduction <add>, %138, %cst_70 [1] : vector<16x32xf32> to vector<16xf32>
    %144 = vector.shape_cast %143 : vector<16xf32> to vector<16x1xf32>
    %cst_71 = arith.constant 3.200000e+01 : f32
    %145 = vector.broadcast %cst_71 : f32 to vector<16x1xf32>
    %146 = arith.divf %144, %145 : vector<16x1xf32>
    %147 = vector.broadcast %146 : vector<16x1xf32> to vector<16x32xf32>
    %148 = arith.subf %138, %147 : vector<16x32xf32>
    %149 = arith.mulf %148, %148 : vector<16x32xf32>
    %cst_72 = arith.constant dense<0.000000e+00> : vector<16xf32>
    %150 = vector.multi_reduction <add>, %149, %cst_72 [1] : vector<16x32xf32> to vector<16xf32>
    %151 = vector.shape_cast %150 : vector<16xf32> to vector<16x1xf32>
    %cst_73 = arith.constant 3.200000e+01 : f32
    %152 = vector.broadcast %cst_73 : f32 to vector<16x1xf32>
    %153 = arith.divf %151, %152 : vector<16x1xf32>
    %154 = vector.broadcast %146 : vector<16x1xf32> to vector<16x32xf32>
    %155 = arith.subf %138, %154 : vector<16x32xf32>
    %cst_74 = arith.constant 9.99999974E-6 : f32
    %156 = vector.broadcast %cst_74 : f32 to vector<16x1xf32>
    %157 = arith.addf %153, %156 : vector<16x1xf32>
    %158 = math.rsqrt %157 : vector<16x1xf32>
    %159 = vector.broadcast %158 : vector<16x1xf32> to vector<16x32xf32>
    %160 = arith.mulf %155, %159 : vector<16x32xf32>
    %161 = vector.broadcast %140 : vector<1x32xf32> to vector<16x32xf32>
    %162 = arith.mulf %160, %161 : vector<16x32xf32>
    %163 = vector.broadcast %142 : vector<1x32xf32> to vector<16x32xf32>
    %164 = arith.addf %162, %163 : vector<16x32xf32>
    %c1_75 = arith.constant 1 : index
    %c0_76 = arith.constant 0 : index
    %c0_77 = arith.constant 0 : index
    %165 = vector.load %arg5[%c1_75, %c0_76, %c0_77] : memref<2x32x96xf32, #tpu.memory_space<vmem>>, vector<1x32x96xf32>
    %166 = vector.shape_cast %165 : vector<1x32x96xf32> to vector<32x96xf32>
    %cst_78 = arith.constant dense<0.000000e+00> : vector<16x96xf32>
    %167 = tpu.matmul %164, %166, %cst_78 {dimension_numbers = #tpu.dot_dimension_numbers<[1], [0], [0], [1], [0, 0, 1, 1], [], []>} : vector<16x32xf32>, vector<32x96xf32>, vector<16x96xf32> -> vector<16x96xf32>
    %c1_79 = arith.constant 1 : index
    %c0_80 = arith.constant 0 : index
    %c0_81 = arith.constant 0 : index
    %168 = vector.load %arg6[%c1_79, %c0_80, %c0_81] : memref<2x1x96xf32, #tpu.memory_space<vmem>>, vector<1x1x96xf32>
    %169 = vector.shape_cast %168 : vector<1x1x96xf32> to vector<1x96xf32>
    %170 = vector.broadcast %169 : vector<1x96xf32> to vector<16x96xf32>
    %171 = arith.addf %167, %170 : vector<16x96xf32>
    %172 = vector.extract_strided_slice %171 {offsets = [0, 0], sizes = [16, 32], strides = [1, 1]} : vector<16x96xf32> to vector<16x32xf32>
    %173 = vector.shape_cast %172 : vector<16x32xf32> to vector<2x8x32xf32>
    %174 = vector.extract_strided_slice %171 {offsets = [0, 32], sizes = [16, 32], strides = [1, 1]} : vector<16x96xf32> to vector<16x32xf32>
    %175 = vector.shape_cast %174 : vector<16x32xf32> to vector<2x8x32xf32>
    %176 = vector.extract_strided_slice %171 {offsets = [0, 64], sizes = [16, 32], strides = [1, 1]} : vector<16x96xf32> to vector<16x32xf32>
    %177 = vector.shape_cast %176 : vector<16x32xf32> to vector<2x8x32xf32>
    %178 = vector.extract_strided_slice %173 {offsets = [0, 0, 0], sizes = [2, 8, 16], strides = [1, 1, 1]} : vector<2x8x32xf32> to vector<2x8x16xf32>
    %179 = vector.extract_strided_slice %175 {offsets = [0, 0, 0], sizes = [2, 8, 16], strides = [1, 1, 1]} : vector<2x8x32xf32> to vector<2x8x16xf32>
    %180 = vector.extract_strided_slice %177 {offsets = [0, 0, 0], sizes = [2, 8, 16], strides = [1, 1, 1]} : vector<2x8x32xf32> to vector<2x8x16xf32>
    "tpu.trace_start"() <{level = 10 : i32, message = "bqd,bkd->bqk"}> : () -> ()
    %cst_82 = arith.constant dense<0.000000e+00> : vector<2x8x8xf32>
    %181 = tpu.matmul %178, %179, %cst_82 {dimension_numbers = #tpu.dot_dimension_numbers<[2], [2], [1], [1], [0, 0, 0, 1, 1, 1], [0], [0]>} : vector<2x8x16xf32>, vector<2x8x16xf32>, vector<2x8x8xf32> -> vector<2x8x8xf32>
    "tpu.trace_stop"() : () -> ()
    %182 = vector.broadcast %1 : vector<2x1x8xf32> to vector<2x8x8xf32>
    %183 = arith.addf %181, %182 : vector<2x8x8xf32>
    %cst_83 = arith.constant dense<0xFF800000> : vector<2x8xf32>
    %184 = vector.multi_reduction <maximumf>, %183, %cst_83 [2] : vector<2x8x8xf32> to vector<2x8xf32>
    %185 = vector.shape_cast %184 : vector<2x8xf32> to vector<2x8x1xf32>
    %186 = vector.broadcast %185 : vector<2x8x1xf32> to vector<2x8x8xf32>
    %187 = arith.subf %183, %186 : vector<2x8x8xf32>
    %188 = math.exp %187 : vector<2x8x8xf32>
    %cst_84 = arith.constant dense<0.000000e+00> : vector<2x8xf32>
    %189 = vector.multi_reduction <add>, %188, %cst_84 [2] : vector<2x8x8xf32> to vector<2x8xf32>
    %190 = vector.shape_cast %189 : vector<2x8xf32> to vector<2x8x1xf32>
    %191 = tpu.reciprocal %190 {approx = true} : vector<2x8x1xf32> -> vector<2x8x1xf32>
    %192 = vector.broadcast %191 : vector<2x8x1xf32> to vector<2x8x8xf32>
    %193 = arith.mulf %188, %192 : vector<2x8x8xf32>
    "tpu.trace_start"() <{level = 10 : i32, message = "bqk,bkd->bqd"}> : () -> ()
    %cst_85 = arith.constant dense<0.000000e+00> : vector<2x8x16xf32>
    %194 = tpu.matmul %193, %180, %cst_85 {dimension_numbers = #tpu.dot_dimension_numbers<[2], [1], [1], [2], [0, 0, 0, 1, 1, 2], [0], [0]>} : vector<2x8x8xf32>, vector<2x8x16xf32>, vector<2x8x16xf32> -> vector<2x8x16xf32>
    "tpu.trace_stop"() : () -> ()
    %195 = vector.extract_strided_slice %173 {offsets = [0, 0, 16], sizes = [2, 8, 16], strides = [1, 1, 1]} : vector<2x8x32xf32> to vector<2x8x16xf32>
    %196 = vector.extract_strided_slice %175 {offsets = [0, 0, 16], sizes = [2, 8, 16], strides = [1, 1, 1]} : vector<2x8x32xf32> to vector<2x8x16xf32>
    %197 = vector.extract_strided_slice %177 {offsets = [0, 0, 16], sizes = [2, 8, 16], strides = [1, 1, 1]} : vector<2x8x32xf32> to vector<2x8x16xf32>
    "tpu.trace_start"() <{level = 10 : i32, message = "bqd,bkd->bqk"}> : () -> ()
    %cst_86 = arith.constant dense<0.000000e+00> : vector<2x8x8xf32>
    %198 = tpu.matmul %195, %196, %cst_86 {dimension_numbers = #tpu.dot_dimension_numbers<[2], [2], [1], [1], [0, 0, 0, 1, 1, 1], [0], [0]>} : vector<2x8x16xf32>, vector<2x8x16xf32>, vector<2x8x8xf32> -> vector<2x8x8xf32>
    "tpu.trace_stop"() : () -> ()
    %199 = vector.broadcast %1 : vector<2x1x8xf32> to vector<2x8x8xf32>
    %200 = arith.addf %198, %199 : vector<2x8x8xf32>
    %cst_87 = arith.constant dense<0xFF800000> : vector<2x8xf32>
    %201 = vector.multi_reduction <maximumf>, %200, %cst_87 [2] : vector<2x8x8xf32> to vector<2x8xf32>
    %202 = vector.shape_cast %201 : vector<2x8xf32> to vector<2x8x1xf32>
    %203 = vector.broadcast %202 : vector<2x8x1xf32> to vector<2x8x8xf32>
    %204 = arith.subf %200, %203 : vector<2x8x8xf32>
    %205 = math.exp %204 : vector<2x8x8xf32>
    %cst_88 = arith.constant dense<0.000000e+00> : vector<2x8xf32>
    %206 = vector.multi_reduction <add>, %205, %cst_88 [2] : vector<2x8x8xf32> to vector<2x8xf32>
    %207 = vector.shape_cast %206 : vector<2x8xf32> to vector<2x8x1xf32>
    %208 = tpu.reciprocal %207 {approx = true} : vector<2x8x1xf32> -> vector<2x8x1xf32>
    %209 = vector.broadcast %208 : vector<2x8x1xf32> to vector<2x8x8xf32>
    %210 = arith.mulf %205, %209 : vector<2x8x8xf32>
    "tpu.trace_start"() <{level = 10 : i32, message = "bqk,bkd->bqd"}> : () -> ()
    %cst_89 = arith.constant dense<0.000000e+00> : vector<2x8x16xf32>
    %211 = tpu.matmul %210, %197, %cst_89 {dimension_numbers = #tpu.dot_dimension_numbers<[2], [1], [1], [2], [0, 0, 0, 1, 1, 2], [0], [0]>} : vector<2x8x8xf32>, vector<2x8x16xf32>, vector<2x8x16xf32> -> vector<2x8x16xf32>
    "tpu.trace_stop"() : () -> ()
    %212 = tpu.concatenate %194, %211 in 2 : vector<2x8x16xf32>, vector<2x8x16xf32> -> vector<2x8x32xf32>
    %213 = vector.shape_cast %212 : vector<2x8x32xf32> to vector<16x32xf32>
    %c1_90 = arith.constant 1 : index
    %c0_91 = arith.constant 0 : index
    %c0_92 = arith.constant 0 : index
    %214 = vector.load %arg7[%c1_90, %c0_91, %c0_92] : memref<2x32x32xf32, #tpu.memory_space<vmem>>, vector<1x32x32xf32>
    %215 = vector.shape_cast %214 : vector<1x32x32xf32> to vector<32x32xf32>
    %cst_93 = arith.constant dense<0.000000e+00> : vector<16x32xf32>
    %216 = tpu.matmul %213, %215, %cst_93 {dimension_numbers = #tpu.dot_dimension_numbers<[1], [0], [0], [1], [0, 0, 1, 1], [], []>} : vector<16x32xf32>, vector<32x32xf32>, vector<16x32xf32> -> vector<16x32xf32>
    %c1_94 = arith.constant 1 : index
    %c0_95 = arith.constant 0 : index
    %c0_96 = arith.constant 0 : index
    %217 = vector.load %arg8[%c1_94, %c0_95, %c0_96] : memref<2x1x32xf32, #tpu.memory_space<vmem>>, vector<1x1x32xf32>
    %218 = vector.shape_cast %217 : vector<1x1x32xf32> to vector<1x32xf32>
    %219 = vector.broadcast %218 : vector<1x32xf32> to vector<16x32xf32>
    %220 = arith.addf %216, %219 : vector<16x32xf32>
    %221 = arith.addf %138, %220 : vector<16x32xf32>
    %c1_97 = arith.constant 1 : index
    %c0_98 = arith.constant 0 : index
    %c0_99 = arith.constant 0 : index
    %222 = vector.load %arg9[%c1_97, %c0_98, %c0_99] : memref<2x1x32xf32, #tpu.memory_space<vmem>>, vector<1x1x32xf32>
    %223 = vector.shape_cast %222 : vector<1x1x32xf32> to vector<1x32xf32>
    %c1_100 = arith.constant 1 : index
    %c0_101 = arith.constant 0 : index
    %c0_102 = arith.constant 0 : index
    %224 = vector.load %arg10[%c1_100, %c0_101, %c0_102] : memref<2x1x32xf32, #tpu.memory_space<vmem>>, vector<1x1x32xf32>
    %225 = vector.shape_cast %224 : vector<1x1x32xf32> to vector<1x32xf32>
    %cst_103 = arith.constant dense<0.000000e+00> : vector<16xf32>
    %226 = vector.multi_reduction <add>, %221, %cst_103 [1] : vector<16x32xf32> to vector<16xf32>
    %227 = vector.shape_cast %226 : vector<16xf32> to vector<16x1xf32>
    %cst_104 = arith.constant 3.200000e+01 : f32
    %228 = vector.broadcast %cst_104 : f32 to vector<16x1xf32>
    %229 = arith.divf %227, %228 : vector<16x1xf32>
    %230 = vector.broadcast %229 : vector<16x1xf32> to vector<16x32xf32>
    %231 = arith.subf %221, %230 : vector<16x32xf32>
    %232 = arith.mulf %231, %231 : vector<16x32xf32>
    %cst_105 = arith.constant dense<0.000000e+00> : vector<16xf32>
    %233 = vector.multi_reduction <add>, %232, %cst_105 [1] : vector<16x32xf32> to vector<16xf32>
    %234 = vector.shape_cast %233 : vector<16xf32> to vector<16x1xf32>
    %cst_106 = arith.constant 3.200000e+01 : f32
    %235 = vector.broadcast %cst_106 : f32 to vector<16x1xf32>
    %236 = arith.divf %234, %235 : vector<16x1xf32>
    %237 = vector.broadcast %229 : vector<16x1xf32> to vector<16x32xf32>
    %238 = arith.subf %221, %237 : vector<16x32xf32>
    %cst_107 = arith.constant 9.99999974E-6 : f32
    %239 = vector.broadcast %cst_107 : f32 to vector<16x1xf32>
    %240 = arith.addf %236, %239 : vector<16x1xf32>
    %241 = math.rsqrt %240 : vector<16x1xf32>
    %242 = vector.broadcast %241 : vector<16x1xf32> to vector<16x32xf32>
    %243 = arith.mulf %238, %242 : vector<16x32xf32>
    %244 = vector.broadcast %223 : vector<1x32xf32> to vector<16x32xf32>
    %245 = arith.mulf %243, %244 : vector<16x32xf32>
    %246 = vector.broadcast %225 : vector<1x32xf32> to vector<16x32xf32>
    %247 = arith.addf %245, %246 : vector<16x32xf32>
    %c1_108 = arith.constant 1 : index
    %c0_109 = arith.constant 0 : index
    %c0_110 = arith.constant 0 : index
    %248 = vector.load %arg11[%c1_108, %c0_109, %c0_110] : memref<2x32x128xf32, #tpu.memory_space<vmem>>, vector<1x32x128xf32>
    %249 = vector.shape_cast %248 : vector<1x32x128xf32> to vector<32x128xf32>
    %cst_111 = arith.constant dense<0.000000e+00> : vector<16x128xf32>
    %250 = tpu.matmul %247, %249, %cst_111 {dimension_numbers = #tpu.dot_dimension_numbers<[1], [0], [0], [1], [0, 0, 1, 1], [], []>} : vector<16x32xf32>, vector<32x128xf32>, vector<16x128xf32> -> vector<16x128xf32>
    %c1_112 = arith.constant 1 : index
    %c0_113 = arith.constant 0 : index
    %c0_114 = arith.constant 0 : index
    %251 = vector.load %arg12[%c1_112, %c0_113, %c0_114] : memref<2x1x128xf32, #tpu.memory_space<vmem>>, vector<1x1x128xf32>
    %252 = vector.shape_cast %251 : vector<1x1x128xf32> to vector<1x128xf32>
    %253 = vector.broadcast %252 : vector<1x128xf32> to vector<16x128xf32>
    %254 = arith.addf %250, %253 : vector<16x128xf32>
    %255 = arith.mulf %254, %254 : vector<16x128xf32>
    %256 = arith.mulf %254, %255 : vector<16x128xf32>
    %cst_115 = arith.constant 4.471500e-02 : f32
    %257 = vector.broadcast %cst_115 : f32 to vector<16x128xf32>
    %258 = arith.mulf %257, %256 : vector<16x128xf32>
    %259 = arith.addf %254, %258 : vector<16x128xf32>
    %cst_116 = arith.constant 0.797884583 : f32
    %260 = vector.broadcast %cst_116 : f32 to vector<16x128xf32>
    %261 = arith.mulf %260, %259 : vector<16x128xf32>
    %262 = math.tanh %261 : vector<16x128xf32>
    %cst_117 = arith.constant 1.000000e+00 : f32
    %263 = vector.broadcast %cst_117 : f32 to vector<16x128xf32>
    %264 = arith.addf %263, %262 : vector<16x128xf32>
    %cst_118 = arith.constant 5.000000e-01 : f32
    %265 = vector.broadcast %cst_118 : f32 to vector<16x128xf32>
    %266 = arith.mulf %265, %264 : vector<16x128xf32>
    %267 = arith.mulf %254, %266 : vector<16x128xf32>
    %c1_119 = arith.constant 1 : index
    %c0_120 = arith.constant 0 : index
    %c0_121 = arith.constant 0 : index
    %268 = vector.load %arg13[%c1_119, %c0_120, %c0_121] : memref<2x128x32xf32, #tpu.memory_space<vmem>>, vector<1x128x32xf32>
    %269 = vector.shape_cast %268 : vector<1x128x32xf32> to vector<128x32xf32>
    %cst_122 = arith.constant dense<0.000000e+00> : vector<16x32xf32>
    %270 = tpu.matmul %267, %269, %cst_122 {dimension_numbers = #tpu.dot_dimension_numbers<[1], [0], [0], [1], [0, 0, 1, 1], [], []>} : vector<16x128xf32>, vector<128x32xf32>, vector<16x32xf32> -> vector<16x32xf32>
    %c1_123 = arith.constant 1 : index
    %c0_124 = arith.constant 0 : index
    %c0_125 = arith.constant 0 : index
    %271 = vector.load %arg14[%c1_123, %c0_124, %c0_125] : memref<2x1x32xf32, #tpu.memory_space<vmem>>, vector<1x1x32xf32>
    %272 = vector.shape_cast %271 : vector<1x1x32xf32> to vector<1x32xf32>
    %273 = vector.broadcast %272 : vector<1x32xf32> to vector<16x32xf32>
    %274 = arith.addf %270, %273 : vector<16x32xf32>
    %275 = arith.addf %221, %274 : vector<16x32xf32>
    %c0_126 = arith.constant 0 : index
    %c0_127 = arith.constant 0 : index
    %276 = vector.load %arg15[%c0_126, %c0_127] : memref<1x32xf32, #tpu.memory_space<vmem>>, vector<1x32xf32>
    %c0_128 = arith.constant 0 : index
    %c0_129 = arith.constant 0 : index
    %277 = vector.load %arg16[%c0_128, %c0_129] : memref<1x32xf32, #tpu.memory_space<vmem>>, vector<1x32xf32>
    %cst_130 = arith.constant dense<0.000000e+00> : vector<16xf32>
    %278 = vector.multi_reduction <add>, %275, %cst_130 [1] : vector<16x32xf32> to vector<16xf32>
    %279 = vector.shape_cast %278 : vector<16xf32> to vector<16x1xf32>
    %cst_131 = arith.constant 3.200000e+01 : f32
    %280 = vector.broadcast %cst_131 : f32 to vector<16x1xf32>
    %281 = arith.divf %279, %280 : vector<16x1xf32>
    %282 = vector.broadcast %281 : vector<16x1xf32> to vector<16x32xf32>
    %283 = arith.subf %275, %282 : vector<16x32xf32>
    %284 = arith.mulf %283, %283 : vector<16x32xf32>
    %cst_132 = arith.constant dense<0.000000e+00> : vector<16xf32>
    %285 = vector.multi_reduction <add>, %284, %cst_132 [1] : vector<16x32xf32> to vector<16xf32>
    %286 = vector.shape_cast %285 : vector<16xf32> to vector<16x1xf32>
    %cst_133 = arith.constant 3.200000e+01 : f32
    %287 = vector.broadcast %cst_133 : f32 to vector<16x1xf32>
    %288 = arith.divf %286, %287 : vector<16x1xf32>
    %289 = vector.broadcast %281 : vector<16x1xf32> to vector<16x32xf32>
    %290 = arith.subf %275, %289 : vector<16x32xf32>
    %cst_134 = arith.constant 9.99999993E-9 : f32
    %291 = vector.broadcast %cst_134 : f32 to vector<16x1xf32>
    %292 = arith.addf %288, %291 : vector<16x1xf32>
    %293 = math.rsqrt %292 : vector<16x1xf32>
    %294 = vector.broadcast %293 : vector<16x1xf32> to vector<16x32xf32>
    %295 = arith.mulf %290, %294 : vector<16x32xf32>
    %296 = vector.broadcast %276 : vector<1x32xf32> to vector<16x32xf32>
    %297 = arith.mulf %295, %296 : vector<16x32xf32>
    %298 = vector.broadcast %277 : vector<1x32xf32> to vector<16x32xf32>
    %299 = arith.addf %297, %298 : vector<16x32xf32>
    %c0_135 = arith.constant 0 : index
    %c0_136 = arith.constant 0 : index
    %300 = vector.load %arg17[%c0_135, %c0_136] : memref<16x32xf32, #tpu.memory_space<vmem>>, vector<16x32xf32>
    tpu.vector_store %arg17[%c0_135, %c0_136], %299 {strides = array<i32>} : memref<16x32xf32, #tpu.memory_space<vmem>>, vector<16x32xf32>,
    return
  }
  func.func @transform_0(%arg0: i32) -> (i32, i32) {
    %c0_i32 = arith.constant 0 : i32
    %c0_i32_0 = arith.constant 0 : i32
    %c0_i32_1 = arith.constant 0 : i32
    return %c0_i32, %c0_i32_0 : i32, i32
  }
  func.func @transform_1(%arg0: i32) -> (i32, i32, i32) {
    %c0_i32 = arith.constant 0 : i32
    %c0_i32_0 = arith.constant 0 : i32
    %c0_i32_1 = arith.constant 0 : i32
    %c0_i32_2 = arith.constant 0 : i32
    return %c0_i32, %c0_i32_0, %c0_i32_1 : i32, i32, i32
  }
  func.func @transform_2(%arg0: i32) -> (i32, i32, i32) {
    %c0_i32 = arith.constant 0 : i32
    %c0_i32_0 = arith.constant 0 : i32
    %c0_i32_1 = arith.constant 0 : i32
    %c0_i32_2 = arith.constant 0 : i32
    return %c0_i32, %c0_i32_0, %c0_i32_1 : i32, i32, i32
  }
  func.func @transform_3(%arg0: i32) -> (i32, i32, i32) {
    %c0_i32 = arith.constant 0 : i32
    %c0_i32_0 = arith.constant 0 : i32
    %c0_i32_1 = arith.constant 0 : i32
    %c0_i32_2 = arith.constant 0 : i32
    return %c0_i32, %c0_i32_0, %c0_i32_1 : i32, i32, i32
  }
  func.func @transform_4(%arg0: i32) -> (i32, i32, i32) {
    %c0_i32 = arith.constant 0 : i32
    %c0_i32_0 = arith.constant 0 : i32
    %c0_i32_1 = arith.constant 0 : i32
    %c0_i32_2 = arith.constant 0 : i32
    return %c0_i32, %c0_i32_0, %c0_i32_1 : i32, i32, i32
  }
  func.func @transform_5(%arg0: i32) -> (i32, i32, i32) {
    %c0_i32 = arith.constant 0 : i32
    %c0_i32_0 = arith.constant 0 : i32
    %c0_i32_1 = arith.constant 0 : i32
    %c0_i32_2 = arith.constant 0 : i32
    return %c0_i32, %c0_i32_0, %c0_i32_1 : i32, i32, i32
  }
  func.func @transform_6(%arg0: i32) -> (i32, i32, i32) {
    %c0_i32 = arith.constant 0 : i32
    %c0_i32_0 = arith.constant 0 : i32
    %c0_i32_1 = arith.constant 0 : i32
    %c0_i32_2 = arith.constant 0 : i32
    return %c0_i32, %c0_i32_0, %c0_i32_1 : i32, i32, i32
  }
  func.func @transform_7(%arg0: i32) -> (i32, i32, i32) {
    %c0_i32 = arith.constant 0 : i32
    %c0_i32_0 = arith.constant 0 : i32
    %c0_i32_1 = arith.constant 0 : i32
    %c0_i32_2 = arith.constant 0 : i32
    return %c0_i32, %c0_i32_0, %c0_i32_1 : i32, i32, i32
  }
  func.func @transform_8(%arg0: i32) -> (i32, i32, i32) {
    %c0_i32 = arith.constant 0 : i32
    %c0_i32_0 = arith.constant 0 : i32
    %c0_i32_1 = arith.constant 0 : i32
    %c0_i32_2 = arith.constant 0 : i32
    return %c0_i32, %c0_i32_0, %c0_i32_1 : i32, i32, i32
  }
  func.func @transform_9(%arg0: i32) -> (i32, i32, i32) {
    %c0_i32 = arith.constant 0 : i32
    %c0_i32_0 = arith.constant 0 : i32
    %c0_i32_1 = arith.constant 0 : i32
    %c0_i32_2 = arith.constant 0 : i32
    return %c0_i32, %c0_i32_0, %c0_i32_1 : i32, i32, i32
  }
  func.func @transform_10(%arg0: i32) -> (i32, i32, i32) {
    %c0_i32 = arith.constant 0 : i32
    %c0_i32_0 = arith.constant 0 : i32
    %c0_i32_1 = arith.constant 0 : i32
    %c0_i32_2 = arith.constant 0 : i32
    return %c0_i32, %c0_i32_0, %c0_i32_1 : i32, i32, i32
  }
  func.func @transform_11(%arg0: i32) -> (i32, i32, i32) {
    %c0_i32 = arith.constant 0 : i32
    %c0_i32_0 = arith.constant 0 : i32
    %c0_i32_1 = arith.constant 0 : i32
    %c0_i32_2 = arith.constant 0 : i32
    return %c0_i32, %c0_i32_0, %c0_i32_1 : i32, i32, i32
  }
  func.func @transform_12(%arg0: i32) -> (i32, i32, i32) {
    %c0_i32 = arith.constant 0 : i32
    %c0_i32_0 = arith.constant 0 : i32
    %c0_i32_1 = arith.constant 0 : i32
    %c0_i32_2 = arith.constant 0 : i32
    return %c0_i32, %c0_i32_0, %c0_i32_1 : i32, i32, i32
  }
  func.func @transform_13(%arg0: i32) -> (i32, i32, i32) {
    %c0_i32 = arith.constant 0 : i32
    %c0_i32_0 = arith.constant 0 : i32
    %c0_i32_1 = arith.constant 0 : i32
    %c0_i32_2 = arith.constant 0 : i32
    return %c0_i32, %c0_i32_0, %c0_i32_1 : i32, i32, i32
  }
  func.func @transform_14(%arg0: i32) -> (i32, i32) {
    %c0_i32 = arith.constant 0 : i32
    %c0_i32_0 = arith.constant 0 : i32
    %c0_i32_1 = arith.constant 0 : i32
    return %c0_i32, %c0_i32_0 : i32, i32
  }
  func.func @transform_15(%arg0: i32) -> (i32, i32) {
    %c0_i32 = arith.constant 0 : i32
    %c0_i32_0 = arith.constant 0 : i32
    %c0_i32_1 = arith.constant 0 : i32
    return %c0_i32, %c0_i32_0 : i32, i32
  }
  func.func @transform_16(%arg0: i32) -> (i32, i32) {
    %c0_i32 = arith.constant 0 : i32
    %c0_i32_0 = arith.constant 0 : i32
    %c0_i32_1 = arith.constant 0 : i32
    return %c0_i32, %c0_i32_0 : i32, i32
  }
}

</mosaic_0001>

<llo_original>
// kernel: sasrec_forward.1
$region0: #{sasrec_forward.1}
  #allocation0 [shape = 'u32[]', space=smem, size = 0x4, offset = 0x4, fixed_abs, tag = 'smem constant byte address 0x4 - core index']
  #allocation1 [shape = 'u32[144,128]{1,0:T(1,128)}', space=vmem, size = 0x12000, scoped, tag = 'internal scratch']
  %s0 = inlined_call_operand.vmem [shape: f32[16,32], index: 0, kind: input, shape index: {}]
  %s1 = inlined_call_operand.vmem [shape: f32[2,1,8], index: 1, kind: input, shape index: {}]
  %s2 = inlined_call_operand.vmem [shape: f32[2,1,32], index: 2, kind: input, shape index: {}]
  %s3 = inlined_call_operand.vmem [shape: f32[2,1,32], index: 3, kind: input, shape index: {}]
  %s4 = inlined_call_operand.vmem [shape: f32[2,32,96], index: 4, kind: input, shape index: {}]
  %s5 = inlined_call_operand.vmem [shape: f32[2,1,96], index: 5, kind: input, shape index: {}]
  %s6 = inlined_call_operand.vmem [shape: f32[2,32,32], index: 6, kind: input, shape index: {}]
  %s7 = inlined_call_operand.vmem [shape: f32[2,1,32], index: 7, kind: input, shape index: {}]
  %s8 = inlined_call_operand.vmem [shape: f32[2,1,32], index: 8, kind: input, shape index: {}]
  %s9 = inlined_call_operand.vmem [shape: f32[2,1,32], index: 9, kind: input, shape index: {}]
  %s10 = inlined_call_operand.vmem [shape: f32[2,32,128], index: 10, kind: input, shape index: {}]
  %s11 = inlined_call_operand.vmem [shape: f32[2,1,128], index: 11, kind: input, shape index: {}]
  %s12 = inlined_call_operand.vmem [shape: f32[2,128,32], index: 12, kind: input, shape index: {}]
  %s13 = inlined_call_operand.vmem [shape: f32[2,1,32], index: 13, kind: input, shape index: {}]
  %s14 = inlined_call_operand.vmem [shape: f32[1,32], index: 14, kind: input, shape index: {}]
  %s15 = inlined_call_operand.vmem [shape: f32[1,32], index: 15, kind: input, shape index: {}]
  %s16 = inlined_call_operand.hbm [shape: f32[16,32], index: 16, kind: output, shape index: {}]
  %s17 = sld [smem:[#allocation0]]
  $region74: #{sasrec_forward.1} parent=0
    _
  %s19 = ssub.s32 1, %s17
  %s20 = scalar_select 0, %s19, %s17
  $region1: #{sasrec_forward.1} parent=0
    #allocation2 [shape = 'u8[8192]{0}', space=vmem, size = 0x2000, scoped, tag = 'output window, operand 0, single buffered']
    #allocation3 [shape = 's32[1]{0}', space=sflag, size = 0x4, scoped, tag = 'scoped memory for sasrec_forward.1']
    %21 = vsyncpa [#allocation3], 0
    // Predicated region
    $region2: #{sasrec_forward.1} parent=1 // pred_check
      _
    $region3: #{sasrec_forward.1} parent=1 // pred_check_branch
      %23 = sbr.rel (0) target = $region5
    $region4: #{sasrec_forward.1} parent=1 // pred_region
      _
    $region5: #{sasrec_forward.1} parent=1 // pred_fallthru
      _
    // Predicated region
    $region6: #{sasrec_forward.1} parent=1 // pred_check
      _
    $region7: #{sasrec_forward.1} parent=1 // pred_check_branch
      %25 = sbr.rel (0) target = $region9
    $region8: #{sasrec_forward.1} parent=1 // pred_region
      _
    $region9: #{sasrec_forward.1} parent=1 // pred_fallthru
      _
    // Predicated region
    $region10: #{sasrec_forward.1} parent=1 // pred_check
      _
    $region11: #{sasrec_forward.1} parent=1 // pred_check_branch
      %27 = sbr.rel (0) target = $region13
    $region12: #{sasrec_forward.1} parent=1 // pred_region
      _
    $region13: #{sasrec_forward.1} parent=1 // pred_fallthru
      _
    // Predicated region
    $region14: #{sasrec_forward.1} parent=1 // pred_check
      _
    $region15: #{sasrec_forward.1} parent=1 // pred_check_branch
      %29 = sbr.rel (0) target = $region17
    $region16: #{sasrec_forward.1} parent=1 // pred_region
      _
    $region17: #{sasrec_forward.1} parent=1 // pred_fallthru
      _
    // Predicated region
    $region18: #{sasrec_forward.1} parent=1 // pred_check
      _
    $region19: #{sasrec_forward.1} parent=1 // pred_check_branch
      %31 = sbr.rel (0) target = $region21
    $region20: #{sasrec_forward.1} parent=1 // pred_region
      _
    $region21: #{sasrec_forward.1} parent=1 // pred_fallthru
      _
    // Predicated region
    $region22: #{sasrec_forward.1} parent=1 // pred_check
      _
    $region23: #{sasrec_forward.1} parent=1 // pred_check_branch
      %33 = sbr.rel (0) target = $region25
    $region24: #{sasrec_forward.1} parent=1 // pred_region
      _
    $region25: #{sasrec_forward.1} parent=1 // pred_fallthru
      _
    // Predicated region
    $region26: #{sasrec_forward.1} parent=1 // pred_check
      _
    $region27: #{sasrec_forward.1} parent=1 // pred_check_branch
      %35 = sbr.rel (0) target = $region29
    $region28: #{sasrec_forward.1} parent=1 // pred_region
      _
    $region29: #{sasrec_forward.1} parent=1 // pred_fallthru
      _
    // Predicated region
    $region30: #{sasrec_forward.1} parent=1 // pred_check
      _
    $region31: #{sasrec_forward.1} parent=1 // pred_check_branch
      %37 = sbr.rel (0) target = $region33
    $region32: #{sasrec_forward.1} parent=1 // pred_region
      _
    $region33: #{sasrec_forward.1} parent=1 // pred_fallthru
      _
    // Predicated region
    $region34: #{sasrec_forward.1} parent=1 // pred_check
      _
    $region35: #{sasrec_forward.1} parent=1 // pred_check_branch
      %39 = sbr.rel (0) target = $region37
    $region36: #{sasrec_forward.1} parent=1 // pred_region
      _
    $region37: #{sasrec_forward.1} parent=1 // pred_fallthru
      _
    // Predicated region
    $region38: #{sasrec_forward.1} parent=1 // pred_check
      _
    $region39: #{sasrec_forward.1} parent=1 // pred_check_branch
      %41 = sbr.rel (0) target = $region41
    $region40: #{sasrec_forward.1} parent=1 // pred_region
      _
    $region41: #{sasrec_forward.1} parent=1 // pred_fallthru
      _
    // Predicated region
    $region42: #{sasrec_forward.1} parent=1 // pred_check
      _
    $region43: #{sasrec_forward.1} parent=1 // pred_check_branch
      %43 = sbr.rel (0) target = $region45
    $region44: #{sasrec_forward.1} parent=1 // pred_region
      _
    $region45: #{sasrec_forward.1} parent=1 // pred_fallthru
      _
    // Predicated region
    $region46: #{sasrec_forward.1} parent=1 // pred_check
      _
    $region47: #{sasrec_forward.1} parent=1 // pred_check_branch
      %45 = sbr.rel (0) target = $region49
    $region48: #{sasrec_forward.1} parent=1 // pred_region
      _
    $region49: #{sasrec_forward.1} parent=1 // pred_fallthru
      _
    // Predicated region
    $region50: #{sasrec_forward.1} parent=1 // pred_check
      _
    $region51: #{sasrec_forward.1} parent=1 // pred_check_branch
      %47 = sbr.rel (0) target = $region53
    $region52: #{sasrec_forward.1} parent=1 // pred_region
      _
    $region53: #{sasrec_forward.1} parent=1 // pred_fallthru
      _
    // Predicated region
    $region54: #{sasrec_forward.1} parent=1 // pred_check
      _
    $region55: #{sasrec_forward.1} parent=1 // pred_check_branch
      %49 = sbr.rel (0) target = $region57
    $region56: #{sasrec_forward.1} parent=1 // pred_region
      _
    $region57: #{sasrec_forward.1} parent=1 // pred_fallthru
      _
    // Predicated region
    $region58: #{sasrec_forward.1} parent=1 // pred_check
      _
    $region59: #{sasrec_forward.1} parent=1 // pred_check_branch
      %51 = sbr.rel (0) target = $region61
    $region60: #{sasrec_forward.1} parent=1 // pred_region
      _
    $region61: #{sasrec_forward.1} parent=1 // pred_fallthru
      _
    // Predicated region
    $region62: #{sasrec_forward.1} parent=1 // pred_check
      _
    $region63: #{sasrec_forward.1} parent=1 // pred_check_branch
      %53 = sbr.rel (0) target = $region65
    $region64: #{sasrec_forward.1} parent=1 // pred_region
      _
    $region65: #{sasrec_forward.1} parent=1 // pred_fallthru
      _
    %v54 = vld [vmem:[%s0] sm:$0xff]
    %v55 = vld [vmem:[%s0 + $0x8] sm:$0xff]
    %v56 = vld [vmem:[%s1] sm:$0x1]
    %v57 = vld [vmem:[%s1 + $0x1] sm:$0x1]
    %v58 = vld [vmem:[%s2] sm:$0x1]
    %v59 = vld [vmem:[%s3] sm:$0x1]
    %vm60 = vcmask 261120
    %v61 = vsel %vm60, %v54, 0.0
    %62 = vadd.xlane.f32.xlu0 %v61
    %v63 = vpop.xlane.xlu0 %62
    %v64 = vsel %vm60, %v55, 0.0
    %65 = vadd.xlane.f32.xlu0 %v64
    %v66 = vpop.xlane.xlu0 %65
    %v67 = vrcp.pop 32.0
    %v68 = vmul.f32 %v63, %v67
    %v69 = vmul.f32 %v66, %v67
    %v70 = vsub.f32 %v54, %v68
    %v71 = vsub.f32 %v55, %v69
    %v72 = vmul.f32 %v70, %v70
    %v73 = vmul.f32 %v71, %v71
    %v74 = vsel %vm60, %v72, 0.0
    %75 = vadd.xlane.f32.xlu0 %v74
    %v76 = vpop.xlane.xlu0 %75
    %v77 = vsel %vm60, %v73, 0.0
    %78 = vadd.xlane.f32.xlu0 %v77
    %v79 = vpop.xlane.xlu0 %78
    %v80 = vmul.f32 %v76, %v67
    %v81 = vmul.f32 %v79, %v67
    %v82 = vadd.f32 %v80, 1e-05
    %v83 = vadd.f32 %v81, 1e-05
    %v84 = vrsqrt.pop %v82
    %v85 = vrsqrt.pop %v83
    %v86 = vmul.f32 %v70, %v84
    %v87 = vmul.f32 %v71, %v85
    %v89 = vlaneseq
    %v90 = vshrl.u32 %v89, 7
    %v91 = vsub.s32 0, %v90
    %v92 = vrot.slane %v58, %v91
    %v94 = vmul.f32 %v86, %v92
    %v95 = vmul.f32 %v87, %v92
    %v97 = vlaneseq
    %v98 = vshrl.u32 %v97, 7
    %v99 = vsub.s32 0, %v98
    %v100 = vrot.slane %v59, %v99
    %v102 = vadd.f32 %v94, %v100
    %v103 = vadd.f32 %v95, %v100
    %v104 = vld [vmem:[%s4] sm:$0xff]
    %v105 = vld [vmem:[%s4 + $0x8] sm:$0xff]
    %v106 = vld [vmem:[%s4 + $0x10] sm:$0xff]
    %v107 = vld [vmem:[%s4 + $0x18] sm:$0xff]
    %v108 = vld [vmem:[%s5] sm:$0x1]
    %v110 = vlaneseq
    %v111 = vshrl.u32 %v110, 7
    %v112 = vsub.s32 0, %v111
    %v113 = vrot.slane %v108, %v112
    %v116 = vsel %vm60, %v102, 0
    %v119 = vsel %vm60, %v103, 0
    %121 = vmatprep.subr.mxu0 0.0
    %122 = vmatpush1.msra.mxu0 %v104
    %123 = vmatprep.subr.mxu0 0.0
    %124 = vmatpush1.msra.mxu0 %v105
    %125 = vmatprep.subr.mxu0 0.0
    %126 = vmatpush1.msra.mxu0 %v106
    %127 = vmatprep.subr.mxu0 0.0
    %128 = vmatpush1.msra.mxu0 %v107
    %129 = vmatprep.subr.mxu0 0.0
    %130 = vmatpush1.msra.mxu0 0.0
    %131 = vmatprep.subr.mxu0 0.0
    %132 = vmatpush1.msra.mxu0 0.0
    %133 = vmatprep.subr.mxu0 0.0
    %134 = vmatpush1.msra.mxu0 0.0
    %135 = vmatprep.subr.mxu0 0.0
    %136 = vmatpush1.msra.mxu0 0.0
    %137 = vmatprep.subr.mxu0 0.0
    %138 = vmatpush1.msra.mxu0 0.0
    %139 = vmatprep.subr.mxu0 0.0
    %140 = vmatpush1.msra.mxu0 0.0
    %141 = vmatprep.subr.mxu0 0.0
    %142 = vmatpush1.msra.mxu0 0.0
    %143 = vmatprep.subr.mxu0 0.0
    %144 = vmatpush1.msra.mxu0 0.0
    %145 = vmatprep.subr.mxu0 0.0
    %146 = vmatpush1.msra.mxu0 0.0
    %147 = vmatprep.subr.mxu0 0.0
    %148 = vmatpush1.msra.mxu0 0.0
    %149 = vmatprep.subr.mxu0 0.0
    %150 = vmatpush1.msra.mxu0 0.0
    %151 = vmatprep.subr.mxu0 0.0
    %152 = vmatpush1.msra.mxu0 0.0
    %153 = vmatprep.subr.mxu0 0.0
    %154 = vmatpush1.msra.mxu0 0.0
    %155 = vmatprep.subr.mxu0 0.0
    %156 = vmatpush1.msra.mxu0 0.0
    %157 = vmatprep.subr.mxu0 0.0
    %158 = vmatpush1.msra.mxu0 0.0
    %159 = vmatprep.subr.mxu0 0.0
    %160 = vmatpush1.msra.mxu0 0.0
    %161 = vmatprep.subr.mxu0 0.0
    %162 = vmatpush1.msra.mxu0 0.0
    %163 = vmatprep.subr.mxu0 0.0
    %164 = vmatpush1.msra.mxu0 0.0
    %165 = vmatprep.subr.mxu0 0.0
    %166 = vmatpush1.msra.mxu0 0.0
    %167 = vmatprep.subr.mxu0 0.0
    %168 = vmatpush1.msra.mxu0 0.0
    %169 = vmatprep.subr.mxu0 0.0
    %170 = vmatpush1.msra.mxu0 0.0
    %171 = vmatprep.subr.mxu0 0.0
    %172 = vmatpush1.msra.mxu0 0.0
    %173 = vmatprep.subr.mxu0 0.0
    %174 = vmatpush1.msra.mxu0 0.0
    %175 = vmatprep.subr.mxu0 0.0
    %176 = vmatpush1.msra.mxu0 0.0
    %177 = vmatprep.subr.mxu0 0.0
    %178 = vmatpush1.msra.mxu0 0.0
    %179 = vmatprep.subr.mxu0 0.0
    %180 = vmatpush1.msra.mxu0 0.0
    %181 = vmatprep.subr.mxu0 0.0
    %182 = vmatpush1.msra.mxu0 0.0
    %183 = vmatprep.subr.mxu0 0.0
    %184 = vmatpush1.msra.mxu0 0.0
    %185 = vmatprep.mubr.f32.mxu0 0.0
    %186 = vmatmul.mubr.f32.gmra.mrb[0].mxu0 %v116
    %v187 = vpop.f32.mrb[0].mxu0
    %v188 = vadd.f32 %v113, %v187
    %v189 = vpop.f32.mrb[0].mxu0
    %190 = vmatprep.mubr.f32.mxu0 0.0
    %191 = vmatmul.mubr.f32.gmra.mrb[0].mxu0 %v119
    %v192 = vpop.f32.mrb[0].mxu0
    %v193 = vadd.f32 %v113, %v192
    %v194 = vpop.f32.mrb[0].mxu0
    %195 = vdwg.mxu0
    %v198 = vlaneseq
    %v199 = vshrl.u32 %v198, 7
    %v200 = vsub.s32 0, %v199
    %v201 = vrot.slane %v56, %v200
    %v202 = vlaneseq
    %v203 = vshrl.u32 %v202, 7
    %v204 = vsub.s32 0, %v203
    %v205 = vrot.slane %v57, %v204
    %209 = vrot.lane.b32.xlu0 %v188, 96
    %v210 = vpop.permute.xlu0 %209
    %vm211 = vcmask 130048
    %v212 = vsel %vm211, %v188, 0
    %v214 = vsel %vm211, %v210, 0
    %216 = vmatprep.subr.mxu0 0.0
    %217 = vmatpush1.xpose.msra.mxu0 %v214
    %218 = vmatprep.subr.mxu0 0.0
    %219 = vmatpush1.xpose.msra.mxu0 0.0
    %220 = vmatprep.subr.mxu0 0.0
    %221 = vmatpush1.xpose.msra.mxu0 0.0
    %222 = vmatprep.subr.mxu0 0.0
    %223 = vmatpush1.xpose.msra.mxu0 0.0
    %224 = vmatprep.subr.mxu0 0.0
    %225 = vmatpush1.xpose.msra.mxu0 0.0
    %226 = vmatprep.subr.mxu0 0.0
    %227 = vmatpush1.xpose.msra.mxu0 0.0
    %228 = vmatprep.subr.mxu0 0.0
    %229 = vmatpush1.xpose.msra.mxu0 0.0
    %230 = vmatprep.subr.mxu0 0.0
    %231 = vmatpush1.xpose.msra.mxu0 0.0
    %232 = vmatprep.subr.mxu0 0.0
    %233 = vmatpush1.xpose.msra.mxu0 0.0
    %234 = vmatprep.subr.mxu0 0.0
    %235 = vmatpush1.xpose.msra.mxu0 0.0
    %236 = vmatprep.subr.mxu0 0.0
    %237 = vmatpush1.xpose.msra.mxu0 0.0
    %238 = vmatprep.subr.mxu0 0.0
    %239 = vmatpush1.xpose.msra.mxu0 0.0
    %240 = vmatprep.subr.mxu0 0.0
    %241 = vmatpush1.xpose.msra.mxu0 0.0
    %242 = vmatprep.subr.mxu0 0.0
    %243 = vmatpush1.xpose.msra.mxu0 0.0
    %244 = vmatprep.subr.mxu0 0.0
    %245 = vmatpush1.xpose.msra.mxu0 0.0
    %246 = vmatprep.subr.mxu0 0.0
    %247 = vmatpush1.xpose.msra.mxu0 0.0
    %248 = vmatprep.subr.mxu0 0.0
    %249 = vmatpush1.xpose.msra.mxu0 0.0
    %250 = vmatprep.subr.mxu0 0.0
    %251 = vmatpush1.xpose.msra.mxu0 0.0
    %252 = vmatprep.subr.mxu0 0.0
    %253 = vmatpush1.xpose.msra.mxu0 0.0
    %254 = vmatprep.subr.mxu0 0.0
    %255 = vmatpush1.xpose.msra.mxu0 0.0
    %256 = vmatprep.subr.mxu0 0.0
    %257 = vmatpush1.xpose.msra.mxu0 0.0
    %258 = vmatprep.subr.mxu0 0.0
    %259 = vmatpush1.xpose.msra.mxu0 0.0
    %260 = vmatprep.subr.mxu0 0.0
    %261 = vmatpush1.xpose.msra.mxu0 0.0
    %262 = vmatprep.subr.mxu0 0.0
    %263 = vmatpush1.xpose.msra.mxu0 0.0
    %264 = vmatprep.subr.mxu0 0.0
    %265 = vmatpush1.xpose.msra.mxu0 0.0
    %266 = vmatprep.subr.mxu0 0.0
    %267 = vmatpush1.xpose.msra.mxu0 0.0
    %268 = vmatprep.subr.mxu0 0.0
    %269 = vmatpush1.xpose.msra.mxu0 0.0
    %270 = vmatprep.subr.mxu0 0.0
    %271 = vmatpush1.xpose.msra.mxu0 0.0
    %272 = vmatprep.subr.mxu0 0.0
    %273 = vmatpush1.xpose.msra.mxu0 0.0
    %274 = vmatprep.subr.mxu0 0.0
    %275 = vmatpush1.xpose.msra.mxu0 0.0
    %276 = vmatprep.subr.mxu0 0.0
    %277 = vmatpush1.xpose.msra.mxu0 0.0
    %278 = vmatprep.subr.mxu0 0.0
    %279 = vmatpush1.xpose.msra.mxu0 0.0
    %280 = vmatprep.mubr.f32.mxu0 0.0
    %281 = vmatmul.mubr.f32.gmra.mrb[0].mxu0 %v212
    %v282 = vpop.f32.mrb[0].mxu0
    %v283 = vadd.f32 %v201, %v282
    %v284 = vpop.f32.mrb[0].mxu0
    %285 = vdwg.mxu0
    %287 = vrot.lane.b32.xlu0 %v193, 96
    %v288 = vpop.permute.xlu0 %287
    %v289 = vsel %vm211, %v193, 0
    %v291 = vsel %vm211, %v288, 0
    %293 = vmatprep.subr.mxu0 0.0
    %294 = vmatpush1.xpose.msra.mxu0 %v291
    %295 = vmatprep.subr.mxu0 0.0
    %296 = vmatpush1.xpose.msra.mxu0 0.0
    %297 = vmatprep.subr.mxu0 0.0
    %298 = vmatpush1.xpose.msra.mxu0 0.0
    %299 = vmatprep.subr.mxu0 0.0
    %300 = vmatpush1.xpose.msra.mxu0 0.0
    %301 = vmatprep.subr.mxu0 0.0
    %302 = vmatpush1.xpose.msra.mxu0 0.0
    %303 = vmatprep.subr.mxu0 0.0
    %304 = vmatpush1.xpose.msra.mxu0 0.0
    %305 = vmatprep.subr.mxu0 0.0
    %306 = vmatpush1.xpose.msra.mxu0 0.0
    %307 = vmatprep.subr.mxu0 0.0
    %308 = vmatpush1.xpose.msra.mxu0 0.0
    %309 = vmatprep.subr.mxu0 0.0
    %310 = vmatpush1.xpose.msra.mxu0 0.0
    %311 = vmatprep.subr.mxu0 0.0
    %312 = vmatpush1.xpose.msra.mxu0 0.0
    %313 = vmatprep.subr.mxu0 0.0
    %314 = vmatpush1.xpose.msra.mxu0 0.0
    %315 = vmatprep.subr.mxu0 0.0
    %316 = vmatpush1.xpose.msra.mxu0 0.0
    %317 = vmatprep.subr.mxu0 0.0
    %318 = vmatpush1.xpose.msra.mxu0 0.0
    %319 = vmatprep.subr.mxu0 0.0
    %320 = vmatpush1.xpose.msra.mxu0 0.0
    %321 = vmatprep.subr.mxu0 0.0
    %322 = vmatpush1.xpose.msra.mxu0 0.0
    %323 = vmatprep.subr.mxu0 0.0
    %324 = vmatpush1.xpose.msra.mxu0 0.0
    %325 = vmatprep.subr.mxu0 0.0
    %326 = vmatpush1.xpose.msra.mxu0 0.0
    %327 = vmatprep.subr.mxu0 0.0
    %328 = vmatpush1.xpose.msra.mxu0 0.0
    %329 = vmatprep.subr.mxu0 0.0
    %330 = vmatpush1.xpose.msra.mxu0 0.0
    %331 = vmatprep.subr.mxu0 0.0
    %332 = vmatpush1.xpose.msra.mxu0 0.0
    %333 = vmatprep.subr.mxu0 0.0
    %334 = vmatpush1.xpose.msra.mxu0 0.0
    %335 = vmatprep.subr.mxu0 0.0
    %336 = vmatpush1.xpose.msra.mxu0 0.0
    %337 = vmatprep.subr.mxu0 0.0
    %338 = vmatpush1.xpose.msra.mxu0 0.0
    %339 = vmatprep.subr.mxu0 0.0
    %340 = vmatpush1.xpose.msra.mxu0 0.0
    %341 = vmatprep.subr.mxu0 0.0
    %342 = vmatpush1.xpose.msra.mxu0 0.0
    %343 = vmatprep.subr.mxu0 0.0
    %344 = vmatpush1.xpose.msra.mxu0 0.0
    %345 = vmatprep.subr.mxu0 0.0
    %346 = vmatpush1.xpose.msra.mxu0 0.0
    %347 = vmatprep.subr.mxu0 0.0
    %348 = vmatpush1.xpose.msra.mxu0 0.0
    %349 = vmatprep.subr.mxu0 0.0
    %350 = vmatpush1.xpose.msra.mxu0 0.0
    %351 = vmatprep.subr.mxu0 0.0
    %352 = vmatpush1.xpose.msra.mxu0 0.0
    %353 = vmatprep.subr.mxu0 0.0
    %354 = vmatpush1.xpose.msra.mxu0 0.0
    %355 = vmatprep.subr.mxu0 0.0
    %356 = vmatpush1.xpose.msra.mxu0 0.0
    %357 = vmatprep.mubr.f32.mxu0 0.0
    %358 = vmatmul.mubr.f32.gmra.mrb[0].mxu0 %v289
    %v359 = vpop.f32.mrb[0].mxu0
    %v360 = vadd.f32 %v205, %v359
    %v361 = vpop.f32.mrb[0].mxu0
    %362 = vdwg.mxu0
    %vm363 = vcmask 64512
    %v364 = vsel %vm363, %v283, -inf
    %365 = vmax.xlane.f32.xlu0 %v364
    %v366 = vpop.xlane.xlu0 %365
    %v367 = vsel %vm363, %v360, -inf
    %368 = vmax.xlane.f32.xlu0 %v367
    %v369 = vpop.xlane.xlu0 %368
    %v370 = vsub.f32 %v283, %v366
    %v371 = vsub.f32 %v360, %v369
    %v372 = vmul.f32 %v370, 1.442695
    %v373 = vpow.pop %v372
    %v374 = vmul.f32 %v371, 1.442695
    %v375 = vpow.pop %v374
    %v376 = vsel %vm363, %v373, 0.0
    %377 = vadd.xlane.f32.xlu0 %v376
    %v378 = vpop.xlane.xlu0 %377
    %v379 = vsel %vm363, %v375, 0.0
    %380 = vadd.xlane.f32.xlu0 %v379
    %v381 = vpop.xlane.xlu0 %380
    %v382 = vrcp.pop %v378
    %v383 = vrcp.pop %v381
    %v384 = vmul.f32 %v373, %v382
    %v385 = vmul.f32 %v375, %v383
    %386 = vrot.lane.b32.xlu0 %v188, 64
    %v387 = vpop.permute.xlu0 %386
    %v390 = vsel %vm363, %v384, 0
    %392 = vmatprep.subr.mxu0 0.0
    %393 = vmatpush1.msra.mxu0 %v387
    %394 = vmatprep.subr.mxu0 0.0
    %395 = vmatpush1.msra.mxu0 0.0
    %396 = vmatprep.subr.mxu0 0.0
    %397 = vmatpush1.msra.mxu0 0.0
    %398 = vmatprep.subr.mxu0 0.0
    %399 = vmatpush1.msra.mxu0 0.0
    %400 = vmatprep.subr.mxu0 0.0
    %401 = vmatpush1.msra.mxu0 0.0
    %402 = vmatprep.subr.mxu0 0.0
    %403 = vmatpush1.msra.mxu0 0.0
    %404 = vmatprep.subr.mxu0 0.0
    %405 = vmatpush1.msra.mxu0 0.0
    %406 = vmatprep.subr.mxu0 0.0
    %407 = vmatpush1.msra.mxu0 0.0
    %408 = vmatprep.subr.mxu0 0.0
    %409 = vmatpush1.msra.mxu0 0.0
    %410 = vmatprep.subr.mxu0 0.0
    %411 = vmatpush1.msra.mxu0 0.0
    %412 = vmatprep.subr.mxu0 0.0
    %413 = vmatpush1.msra.mxu0 0.0
    %414 = vmatprep.subr.mxu0 0.0
    %415 = vmatpush1.msra.mxu0 0.0
    %416 = vmatprep.subr.mxu0 0.0
    %417 = vmatpush1.msra.mxu0 0.0
    %418 = vmatprep.subr.mxu0 0.0
    %419 = vmatpush1.msra.mxu0 0.0
    %420 = vmatprep.subr.mxu0 0.0
    %421 = vmatpush1.msra.mxu0 0.0
    %422 = vmatprep.subr.mxu0 0.0
    %423 = vmatpush1.msra.mxu0 0.0
    %424 = vmatprep.subr.mxu0 0.0
    %425 = vmatpush1.msra.mxu0 0.0
    %426 = vmatprep.subr.mxu0 0.0
    %427 = vmatpush1.msra.mxu0 0.0
    %428 = vmatprep.subr.mxu0 0.0
    %429 = vmatpush1.msra.mxu0 0.0
    %430 = vmatprep.subr.mxu0 0.0
    %431 = vmatpush1.msra.mxu0 0.0
    %432 = vmatprep.subr.mxu0 0.0
    %433 = vmatpush1.msra.mxu0 0.0
    %434 = vmatprep.subr.mxu0 0.0
    %435 = vmatpush1.msra.mxu0 0.0
    %436 = vmatprep.subr.mxu0 0.0
    %437 = vmatpush1.msra.mxu0 0.0
    %438 = vmatprep.subr.mxu0 0.0
    %439 = vmatpush1.msra.mxu0 0.0
    %440 = vmatprep.subr.mxu0 0.0
    %441 = vmatpush1.msra.mxu0 0.0
    %442 = vmatprep.subr.mxu0 0.0
    %443 = vmatpush1.msra.mxu0 0.0
    %444 = vmatprep.subr.mxu0 0.0
    %445 = vmatpush1.msra.mxu0 0.0
    %446 = vmatprep.subr.mxu0 0.0
    %447 = vmatpush1.msra.mxu0 0.0
    %448 = vmatprep.subr.mxu0 0.0
    %449 = vmatpush1.msra.mxu0 0.0
    %450 = vmatprep.subr.mxu0 0.0
    %451 = vmatpush1.msra.mxu0 0.0
    %452 = vmatprep.subr.mxu0 0.0
    %453 = vmatpush1.msra.mxu0 0.0
    %454 = vmatprep.subr.mxu0 0.0
    %455 = vmatpush1.msra.mxu0 0.0
    %456 = vmatprep.mubr.f32.mxu0 0.0
    %457 = vmatmul.mubr.f32.gmra.mrb[0].mxu0 %v390
    %v458 = vpop.f32.mrb[0].mxu0
    %v459 = vadd.f32 0.0, %v458
    %v460 = vpop.f32.mrb[0].mxu0
    %461 = vdwg.mxu0
    %462 = vrot.lane.b32.xlu0 %v193, 64
    %v463 = vpop.permute.xlu0 %462
    %v466 = vsel %vm363, %v385, 0
    %468 = vmatprep.subr.mxu0 0.0
    %469 = vmatpush1.msra.mxu0 %v463
    %470 = vmatprep.subr.mxu0 0.0
    %471 = vmatpush1.msra.mxu0 0.0
    %472 = vmatprep.subr.mxu0 0.0
    %473 = vmatpush1.msra.mxu0 0.0
    %474 = vmatprep.subr.mxu0 0.0
    %475 = vmatpush1.msra.mxu0 0.0
    %476 = vmatprep.subr.mxu0 0.0
    %477 = vmatpush1.msra.mxu0 0.0
    %478 = vmatprep.subr.mxu0 0.0
    %479 = vmatpush1.msra.mxu0 0.0
    %480 = vmatprep.subr.mxu0 0.0
    %481 = vmatpush1.msra.mxu0 0.0
    %482 = vmatprep.subr.mxu0 0.0
    %483 = vmatpush1.msra.mxu0 0.0
    %484 = vmatprep.subr.mxu0 0.0
    %485 = vmatpush1.msra.mxu0 0.0
    %486 = vmatprep.subr.mxu0 0.0
    %487 = vmatpush1.msra.mxu0 0.0
    %488 = vmatprep.subr.mxu0 0.0
    %489 = vmatpush1.msra.mxu0 0.0
    %490 = vmatprep.subr.mxu0 0.0
    %491 = vmatpush1.msra.mxu0 0.0
    %492 = vmatprep.subr.mxu0 0.0
    %493 = vmatpush1.msra.mxu0 0.0
    %494 = vmatprep.subr.mxu0 0.0
    %495 = vmatpush1.msra.mxu0 0.0
    %496 = vmatprep.subr.mxu0 0.0
    %497 = vmatpush1.msra.mxu0 0.0
    %498 = vmatprep.subr.mxu0 0.0
    %499 = vmatpush1.msra.mxu0 0.0
    %500 = vmatprep.subr.mxu0 0.0
    %501 = vmatpush1.msra.mxu0 0.0
    %502 = vmatprep.subr.mxu0 0.0
    %503 = vmatpush1.msra.mxu0 0.0
    %504 = vmatprep.subr.mxu0 0.0
    %505 = vmatpush1.msra.mxu0 0.0
    %506 = vmatprep.subr.mxu0 0.0
    %507 = vmatpush1.msra.mxu0 0.0
    %508 = vmatprep.subr.mxu0 0.0
    %509 = vmatpush1.msra.mxu0 0.0
    %510 = vmatprep.subr.mxu0 0.0
    %511 = vmatpush1.msra.mxu0 0.0
    %512 = vmatprep.subr.mxu0 0.0
    %513 = vmatpush1.msra.mxu0 0.0
    %514 = vmatprep.subr.mxu0 0.0
    %515 = vmatpush1.msra.mxu0 0.0
    %516 = vmatprep.subr.mxu0 0.0
    %517 = vmatpush1.msra.mxu0 0.0
    %518 = vmatprep.subr.mxu0 0.0
    %519 = vmatpush1.msra.mxu0 0.0
    %520 = vmatprep.subr.mxu0 0.0
    %521 = vmatpush1.msra.mxu0 0.0
    %522 = vmatprep.subr.mxu0 0.0
    %523 = vmatpush1.msra.mxu0 0.0
    %524 = vmatprep.subr.mxu0 0.0
    %525 = vmatpush1.msra.mxu0 0.0
    %526 = vmatprep.subr.mxu0 0.0
    %527 = vmatpush1.msra.mxu0 0.0
    %528 = vmatprep.subr.mxu0 0.0
    %529 = vmatpush1.msra.mxu0 0.0
    %530 = vmatprep.subr.mxu0 0.0
    %531 = vmatpush1.msra.mxu0 0.0
    %532 = vmatprep.mubr.f32.mxu0 0.0
    %533 = vmatmul.mubr.f32.gmra.mrb[0].mxu0 %v466
    %v534 = vpop.f32.mrb[0].mxu0
    %v535 = vadd.f32 0.0, %v534
    %v536 = vpop.f32.mrb[0].mxu0
    %537 = vdwg.mxu0
    %538 = vrot.lane.b32.xlu0 %v188, 112
    %v539 = vpop.permute.xlu0 %538
    %540 = vrot.lane.b32.xlu0 %v188, 80
    %v541 = vpop.permute.xlu0 %540
    %v542 = vsel %vm211, %v539, 0
    %v544 = vsel %vm211, %v541, 0
    %546 = vmatprep.subr.mxu0 0.0
    %547 = vmatpush1.xpose.msra.mxu0 %v544
    %548 = vmatprep.subr.mxu0 0.0
    %549 = vmatpush1.xpose.msra.mxu0 0.0
    %550 = vmatprep.subr.mxu0 0.0
    %551 = vmatpush1.xpose.msra.mxu0 0.0
    %552 = vmatprep.subr.mxu0 0.0
    %553 = vmatpush1.xpose.msra.mxu0 0.0
    %554 = vmatprep.subr.mxu0 0.0
    %555 = vmatpush1.xpose.msra.mxu0 0.0
    %556 = vmatprep.subr.mxu0 0.0
    %557 = vmatpush1.xpose.msra.mxu0 0.0
    %558 = vmatprep.subr.mxu0 0.0
    %559 = vmatpush1.xpose.msra.mxu0 0.0
    %560 = vmatprep.subr.mxu0 0.0
    %561 = vmatpush1.xpose.msra.mxu0 0.0
    %562 = vmatprep.subr.mxu0 0.0
    %563 = vmatpush1.xpose.msra.mxu0 0.0
    %564 = vmatprep.subr.mxu0 0.0
    %565 = vmatpush1.xpose.msra.mxu0 0.0
    %566 = vmatprep.subr.mxu0 0.0
    %567 = vmatpush1.xpose.msra.mxu0 0.0
    %568 = vmatprep.subr.mxu0 0.0
    %569 = vmatpush1.xpose.msra.mxu0 0.0
    %570 = vmatprep.subr.mxu0 0.0
    %571 = vmatpush1.xpose.msra.mxu0 0.0
    %572 = vmatprep.subr.mxu0 0.0
    %573 = vmatpush1.xpose.msra.mxu0 0.0
    %574 = vmatprep.subr.mxu0 0.0
    %575 = vmatpush1.xpose.msra.mxu0 0.0
    %576 = vmatprep.subr.mxu0 0.0
    %577 = vmatpush1.xpose.msra.mxu0 0.0
    %578 = vmatprep.subr.mxu0 0.0
    %579 = vmatpush1.xpose.msra.mxu0 0.0
    %580 = vmatprep.subr.mxu0 0.0
    %581 = vmatpush1.xpose.msra.mxu0 0.0
    %582 = vmatprep.subr.mxu0 0.0
    %583 = vmatpush1.xpose.msra.mxu0 0.0
    %584 = vmatprep.subr.mxu0 0.0
    %585 = vmatpush1.xpose.msra.mxu0 0.0
    %586 = vmatprep.subr.mxu0 0.0
    %587 = vmatpush1.xpose.msra.mxu0 0.0
    %588 = vmatprep.subr.mxu0 0.0
    %589 = vmatpush1.xpose.msra.mxu0 0.0
    %590 = vmatprep.subr.mxu0 0.0
    %591 = vmatpush1.xpose.msra.mxu0 0.0
    %592 = vmatprep.subr.mxu0 0.0
    %593 = vmatpush1.xpose.msra.mxu0 0.0
    %594 = vmatprep.subr.mxu0 0.0
    %595 = vmatpush1.xpose.msra.mxu0 0.0
    %596 = vmatprep.subr.mxu0 0.0
    %597 = vmatpush1.xpose.msra.mxu0 0.0
    %598 = vmatprep.subr.mxu0 0.0
    %599 = vmatpush1.xpose.msra.mxu0 0.0
    %600 = vmatprep.subr.mxu0 0.0
    %601 = vmatpush1.xpose.msra.mxu0 0.0
    %602 = vmatprep.subr.mxu0 0.0
    %603 = vmatpush1.xpose.msra.mxu0 0.0
    %604 = vmatprep.subr.mxu0 0.0
    %605 = vmatpush1.xpose.msra.mxu0 0.0
    %606 = vmatprep.subr.mxu0 0.0
    %607 = vmatpush1.xpose.msra.mxu0 0.0
    %608 = vmatprep.subr.mxu0 0.0
    %609 = vmatpush1.xpose.msra.mxu0 0.0
    %610 = vmatprep.mubr.f32.mxu0 0.0
    %611 = vmatmul.mubr.f32.gmra.mrb[0].mxu0 %v542
    %v612 = vpop.f32.mrb[0].mxu0
    %v613 = vadd.f32 %v201, %v612
    %v614 = vpop.f32.mrb[0].mxu0
    %615 = vdwg.mxu0
    %616 = vrot.lane.b32.xlu0 %v193, 112
    %v617 = vpop.permute.xlu0 %616
    %618 = vrot.lane.b32.xlu0 %v193, 80
    %v619 = vpop.permute.xlu0 %618
    %v620 = vsel %vm211, %v617, 0
    %v622 = vsel %vm211, %v619, 0
    %624 = vmatprep.subr.mxu0 0.0
    %625 = vmatpush1.xpose.msra.mxu0 %v622
    %626 = vmatprep.subr.mxu0 0.0
    %627 = vmatpush1.xpose.msra.mxu0 0.0
    %628 = vmatprep.subr.mxu0 0.0
    %629 = vmatpush1.xpose.msra.mxu0 0.0
    %630 = vmatprep.subr.mxu0 0.0
    %631 = vmatpush1.xpose.msra.mxu0 0.0
    %632 = vmatprep.subr.mxu0 0.0
    %633 = vmatpush1.xpose.msra.mxu0 0.0
    %634 = vmatprep.subr.mxu0 0.0
    %635 = vmatpush1.xpose.msra.mxu0 0.0
    %636 = vmatprep.subr.mxu0 0.0
    %637 = vmatpush1.xpose.msra.mxu0 0.0
    %638 = vmatprep.subr.mxu0 0.0
    %639 = vmatpush1.xpose.msra.mxu0 0.0
    %640 = vmatprep.subr.mxu0 0.0
    %641 = vmatpush1.xpose.msra.mxu0 0.0
    %642 = vmatprep.subr.mxu0 0.0
    %643 = vmatpush1.xpose.msra.mxu0 0.0
    %644 = vmatprep.subr.mxu0 0.0
    %645 = vmatpush1.xpose.msra.mxu0 0.0
    %646 = vmatprep.subr.mxu0 0.0
    %647 = vmatpush1.xpose.msra.mxu0 0.0
    %648 = vmatprep.subr.mxu0 0.0
    %649 = vmatpush1.xpose.msra.mxu0 0.0
    %650 = vmatprep.subr.mxu0 0.0
    %651 = vmatpush1.xpose.msra.mxu0 0.0
    %652 = vmatprep.subr.mxu0 0.0
    %653 = vmatpush1.xpose.msra.mxu0 0.0
    %654 = vmatprep.subr.mxu0 0.0
    %655 = vmatpush1.xpose.msra.mxu0 0.0
    %656 = vmatprep.subr.mxu0 0.0
    %657 = vmatpush1.xpose.msra.mxu0 0.0
    %658 = vmatprep.subr.mxu0 0.0
    %659 = vmatpush1.xpose.msra.mxu0 0.0
    %660 = vmatprep.subr.mxu0 0.0
    %661 = vmatpush1.xpose.msra.mxu0 0.0
    %662 = vmatprep.subr.mxu0 0.0
    %663 = vmatpush1.xpose.msra.mxu0 0.0
    %664 = vmatprep.subr.mxu0 0.0
    %665 = vmatpush1.xpose.msra.mxu0 0.0
    %666 = vmatprep.subr.mxu0 0.0
    %667 = vmatpush1.xpose.msra.mxu0 0.0
    %668 = vmatprep.subr.mxu0 0.0
    %669 = vmatpush1.xpose.msra.mxu0 0.0
    %670 = vmatprep.subr.mxu0 0.0
    %671 = vmatpush1.xpose.msra.mxu0 0.0
    %672 = vmatprep.subr.mxu0 0.0
    %673 = vmatpush1.xpose.msra.mxu0 0.0
    %674 = vmatprep.subr.mxu0 0.0
    %675 = vmatpush1.xpose.msra.mxu0 0.0
    %676 = vmatprep.subr.mxu0 0.0
    %677 = vmatpush1.xpose.msra.mxu0 0.0
    %678 = vmatprep.subr.mxu0 0.0
    %679 = vmatpush1.xpose.msra.mxu0 0.0
    %680 = vmatprep.subr.mxu0 0.0
    %681 = vmatpush1.xpose.msra.mxu0 0.0
    %682 = vmatprep.subr.mxu0 0.0
    %683 = vmatpush1.xpose.msra.mxu0 0.0
    %684 = vmatprep.subr.mxu0 0.0
    %685 = vmatpush1.xpose.msra.mxu0 0.0
    %686 = vmatprep.subr.mxu0 0.0
    %687 = vmatpush1.xpose.msra.mxu0 0.0
    %688 = vmatprep.mubr.f32.mxu0 0.0
    %689 = vmatmul.mubr.f32.gmra.mrb[0].mxu0 %v620
    %v690 = vpop.f32.mrb[0].mxu0
    %v691 = vadd.f32 %v205, %v690
    %v692 = vpop.f32.mrb[0].mxu0
    %693 = vdwg.mxu0
    %v694 = vsel %vm363, %v613, -inf
    %695 = vmax.xlane.f32.xlu0 %v694
    %v696 = vpop.xlane.xlu0 %695
    %v697 = vsel %vm363, %v691, -inf
    %698 = vmax.xlane.f32.xlu0 %v697
    %v699 = vpop.xlane.xlu0 %698
    %v700 = vsub.f32 %v613, %v696
    %v701 = vsub.f32 %v691, %v699
    %v702 = vmul.f32 %v700, 1.442695
    %v703 = vpow.pop %v702
    %v704 = vmul.f32 %v701, 1.442695
    %v705 = vpow.pop %v704
    %v706 = vsel %vm363, %v703, 0.0
    %707 = vadd.xlane.f32.xlu0 %v706
    %v708 = vpop.xlane.xlu0 %707
    %v709 = vsel %vm363, %v705, 0.0
    %710 = vadd.xlane.f32.xlu0 %v709
    %v711 = vpop.xlane.xlu0 %710
    %v712 = vrcp.pop %v708
    %v713 = vrcp.pop %v711
    %v714 = vmul.f32 %v703, %v712
    %v715 = vmul.f32 %v705, %v713
    %716 = vrot.lane.b32.xlu0 %v188, 48
    %v717 = vpop.permute.xlu0 %716
    %v720 = vsel %vm363, %v714, 0
    %722 = vmatprep.subr.mxu0 0.0
    %723 = vmatpush1.msra.mxu0 %v717
    %724 = vmatprep.subr.mxu0 0.0
    %725 = vmatpush1.msra.mxu0 0.0
    %726 = vmatprep.subr.mxu0 0.0
    %727 = vmatpush1.msra.mxu0 0.0
    %728 = vmatprep.subr.mxu0 0.0
    %729 = vmatpush1.msra.mxu0 0.0
    %730 = vmatprep.subr.mxu0 0.0
    %731 = vmatpush1.msra.mxu0 0.0
    %732 = vmatprep.subr.mxu0 0.0
    %733 = vmatpush1.msra.mxu0 0.0
    %734 = vmatprep.subr.mxu0 0.0
    %735 = vmatpush1.msra.mxu0 0.0
    %736 = vmatprep.subr.mxu0 0.0
    %737 = vmatpush1.msra.mxu0 0.0
    %738 = vmatprep.subr.mxu0 0.0
    %739 = vmatpush1.msra.mxu0 0.0
    %740 = vmatprep.subr.mxu0 0.0
    %741 = vmatpush1.msra.mxu0 0.0
    %742 = vmatprep.subr.mxu0 0.0
    %743 = vmatpush1.msra.mxu0 0.0
    %744 = vmatprep.subr.mxu0 0.0
    %745 = vmatpush1.msra.mxu0 0.0
    %746 = vmatprep.subr.mxu0 0.0
    %747 = vmatpush1.msra.mxu0 0.0
    %748 = vmatprep.subr.mxu0 0.0
    %749 = vmatpush1.msra.mxu0 0.0
    %750 = vmatprep.subr.mxu0 0.0
    %751 = vmatpush1.msra.mxu0 0.0
    %752 = vmatprep.subr.mxu0 0.0
    %753 = vmatpush1.msra.mxu0 0.0
    %754 = vmatprep.subr.mxu0 0.0
    %755 = vmatpush1.msra.mxu0 0.0
    %756 = vmatprep.subr.mxu0 0.0
    %757 = vmatpush1.msra.mxu0 0.0
    %758 = vmatprep.subr.mxu0 0.0
    %759 = vmatpush1.msra.mxu0 0.0
    %760 = vmatprep.subr.mxu0 0.0
    %761 = vmatpush1.msra.mxu0 0.0
    %762 = vmatprep.subr.mxu0 0.0
    %763 = vmatpush1.msra.mxu0 0.0
    %764 = vmatprep.subr.mxu0 0.0
    %765 = vmatpush1.msra.mxu0 0.0
    %766 = vmatprep.subr.mxu0 0.0
    %767 = vmatpush1.msra.mxu0 0.0
    %768 = vmatprep.subr.mxu0 0.0
    %769 = vmatpush1.msra.mxu0 0.0
    %770 = vmatprep.subr.mxu0 0.0
    %771 = vmatpush1.msra.mxu0 0.0
    %772 = vmatprep.subr.mxu0 0.0
    %773 = vmatpush1.msra.mxu0 0.0
    %774 = vmatprep.subr.mxu0 0.0
    %775 = vmatpush1.msra.mxu0 0.0
    %776 = vmatprep.subr.mxu0 0.0
    %777 = vmatpush1.msra.mxu0 0.0
    %778 = vmatprep.subr.mxu0 0.0
    %779 = vmatpush1.msra.mxu0 0.0
    %780 = vmatprep.subr.mxu0 0.0
    %781 = vmatpush1.msra.mxu0 0.0
    %782 = vmatprep.subr.mxu0 0.0
    %783 = vmatpush1.msra.mxu0 0.0
    %784 = vmatprep.subr.mxu0 0.0
    %785 = vmatpush1.msra.mxu0 0.0
    %786 = vmatprep.mubr.f32.mxu0 0.0
    %787 = vmatmul.mubr.f32.gmra.mrb[0].mxu0 %v720
    %v788 = vpop.f32.mrb[0].mxu0
    %v789 = vadd.f32 0.0, %v788
    %v790 = vpop.f32.mrb[0].mxu0
    %791 = vdwg.mxu0
    %792 = vrot.lane.b32.xlu0 %v193, 48
    %v793 = vpop.permute.xlu0 %792
    %v796 = vsel %vm363, %v715, 0
    %798 = vmatprep.subr.mxu0 0.0
    %799 = vmatpush1.msra.mxu0 %v793
    %800 = vmatprep.subr.mxu0 0.0
    %801 = vmatpush1.msra.mxu0 0.0
    %802 = vmatprep.subr.mxu0 0.0
    %803 = vmatpush1.msra.mxu0 0.0
    %804 = vmatprep.subr.mxu0 0.0
    %805 = vmatpush1.msra.mxu0 0.0
    %806 = vmatprep.subr.mxu0 0.0
    %807 = vmatpush1.msra.mxu0 0.0
    %808 = vmatprep.subr.mxu0 0.0
    %809 = vmatpush1.msra.mxu0 0.0
    %810 = vmatprep.subr.mxu0 0.0
    %811 = vmatpush1.msra.mxu0 0.0
    %812 = vmatprep.subr.mxu0 0.0
    %813 = vmatpush1.msra.mxu0 0.0
    %814 = vmatprep.subr.mxu0 0.0
    %815 = vmatpush1.msra.mxu0 0.0
    %816 = vmatprep.subr.mxu0 0.0
    %817 = vmatpush1.msra.mxu0 0.0
    %818 = vmatprep.subr.mxu0 0.0
    %819 = vmatpush1.msra.mxu0 0.0
    %820 = vmatprep.subr.mxu0 0.0
    %821 = vmatpush1.msra.mxu0 0.0
    %822 = vmatprep.subr.mxu0 0.0
    %823 = vmatpush1.msra.mxu0 0.0
    %824 = vmatprep.subr.mxu0 0.0
    %825 = vmatpush1.msra.mxu0 0.0
    %826 = vmatprep.subr.mxu0 0.0
    %827 = vmatpush1.msra.mxu0 0.0
    %828 = vmatprep.subr.mxu0 0.0
    %829 = vmatpush1.msra.mxu0 0.0
    %830 = vmatprep.subr.mxu0 0.0
    %831 = vmatpush1.msra.mxu0 0.0
    %832 = vmatprep.subr.mxu0 0.0
    %833 = vmatpush1.msra.mxu0 0.0
    %834 = vmatprep.subr.mxu0 0.0
    %835 = vmatpush1.msra.mxu0 0.0
    %836 = vmatprep.subr.mxu0 0.0
    %837 = vmatpush1.msra.mxu0 0.0
    %838 = vmatprep.subr.mxu0 0.0
    %839 = vmatpush1.msra.mxu0 0.0
    %840 = vmatprep.subr.mxu0 0.0
    %841 = vmatpush1.msra.mxu0 0.0
    %842 = vmatprep.subr.mxu0 0.0
    %843 = vmatpush1.msra.mxu0 0.0
    %844 = vmatprep.subr.mxu0 0.0
    %845 = vmatpush1.msra.mxu0 0.0
    %846 = vmatprep.subr.mxu0 0.0
    %847 = vmatpush1.msra.mxu0 0.0
    %848 = vmatprep.subr.mxu0 0.0
    %849 = vmatpush1.msra.mxu0 0.0
    %850 = vmatprep.subr.mxu0 0.0
    %851 = vmatpush1.msra.mxu0 0.0
    %852 = vmatprep.subr.mxu0 0.0
    %853 = vmatpush1.msra.mxu0 0.0
    %854 = vmatprep.subr.mxu0 0.0
    %855 = vmatpush1.msra.mxu0 0.0
    %856 = vmatprep.subr.mxu0 0.0
    %857 = vmatpush1.msra.mxu0 0.0
    %858 = vmatprep.subr.mxu0 0.0
    %859 = vmatpush1.msra.mxu0 0.0
    %860 = vmatprep.subr.mxu0 0.0
    %861 = vmatpush1.msra.mxu0 0.0
    %862 = vmatprep.mubr.f32.mxu0 0.0
    %863 = vmatmul.mubr.f32.gmra.mrb[0].mxu0 %v796
    %v864 = vpop.f32.mrb[0].mxu0
    %v865 = vadd.f32 0.0, %v864
    %v866 = vpop.f32.mrb[0].mxu0
    %867 = vdwg.mxu0
    %870 = vrot.lane.b32.xlu0 %v789, 16
    %v871 = vpop.permute.xlu0 %870
    %872 = vrot.lane.b32.xlu0 %v865, 16
    %v873 = vpop.permute.xlu0 %872
    %v876 = vsel %vm211, %v459, %v871
    %v877 = vsel %vm211, %v535, %v873
    %v878 = vld [vmem:[%s6] sm:$0xff]
    %v879 = vld [vmem:[%s6 + $0x8] sm:$0xff]
    %v880 = vld [vmem:[%s6 + $0x10] sm:$0xff]
    %v881 = vld [vmem:[%s6 + $0x18] sm:$0xff]
    %v882 = vld [vmem:[%s7] sm:$0x1]
    %v884 = vlaneseq
    %v885 = vshrl.u32 %v884, 7
    %v886 = vsub.s32 0, %v885
    %v887 = vrot.slane %v882, %v886
    %v890 = vsel %vm60, %v876, 0
    %v893 = vsel %vm60, %v877, 0
    %895 = vmatprep.subr.mxu0 0.0
    %896 = vmatpush1.msra.mxu0 %v878
    %897 = vmatprep.subr.mxu0 0.0
    %898 = vmatpush1.msra.mxu0 %v879
    %899 = vmatprep.subr.mxu0 0.0
    %900 = vmatpush1.msra.mxu0 %v880
    %901 = vmatprep.subr.mxu0 0.0
    %902 = vmatpush1.msra.mxu0 %v881
    %903 = vmatprep.subr.mxu0 0.0
    %904 = vmatpush1.msra.mxu0 0.0
    %905 = vmatprep.subr.mxu0 0.0
    %906 = vmatpush1.msra.mxu0 0.0
    %907 = vmatprep.subr.mxu0 0.0
    %908 = vmatpush1.msra.mxu0 0.0
    %909 = vmatprep.subr.mxu0 0.0
    %910 = vmatpush1.msra.mxu0 0.0
    %911 = vmatprep.subr.mxu0 0.0
    %912 = vmatpush1.msra.mxu0 0.0
    %913 = vmatprep.subr.mxu0 0.0
    %914 = vmatpush1.msra.mxu0 0.0
    %915 = vmatprep.subr.mxu0 0.0
    %916 = vmatpush1.msra.mxu0 0.0
    %917 = vmatprep.subr.mxu0 0.0
    %918 = vmatpush1.msra.mxu0 0.0
    %919 = vmatprep.subr.mxu0 0.0
    %920 = vmatpush1.msra.mxu0 0.0
    %921 = vmatprep.subr.mxu0 0.0
    %922 = vmatpush1.msra.mxu0 0.0
    %923 = vmatprep.subr.mxu0 0.0
    %924 = vmatpush1.msra.mxu0 0.0
    %925 = vmatprep.subr.mxu0 0.0
    %926 = vmatpush1.msra.mxu0 0.0
    %927 = vmatprep.subr.mxu0 0.0
    %928 = vmatpush1.msra.mxu0 0.0
    %929 = vmatprep.subr.mxu0 0.0
    %930 = vmatpush1.msra.mxu0 0.0
    %931 = vmatprep.subr.mxu0 0.0
    %932 = vmatpush1.msra.mxu0 0.0
    %933 = vmatprep.subr.mxu0 0.0
    %934 = vmatpush1.msra.mxu0 0.0
    %935 = vmatprep.subr.mxu0 0.0
    %936 = vmatpush1.msra.mxu0 0.0
    %937 = vmatprep.subr.mxu0 0.0
    %938 = vmatpush1.msra.mxu0 0.0
    %939 = vmatprep.subr.mxu0 0.0
    %940 = vmatpush1.msra.mxu0 0.0
    %941 = vmatprep.subr.mxu0 0.0
    %942 = vmatpush1.msra.mxu0 0.0
    %943 = vmatprep.subr.mxu0 0.0
    %944 = vmatpush1.msra.mxu0 0.0
    %945 = vmatprep.subr.mxu0 0.0
    %946 = vmatpush1.msra.mxu0 0.0
    %947 = vmatprep.subr.mxu0 0.0
    %948 = vmatpush1.msra.mxu0 0.0
    %949 = vmatprep.subr.mxu0 0.0
    %950 = vmatpush1.msra.mxu0 0.0
    %951 = vmatprep.subr.mxu0 0.0
    %952 = vmatpush1.msra.mxu0 0.0
    %953 = vmatprep.subr.mxu0 0.0
    %954 = vmatpush1.msra.mxu0 0.0
    %955 = vmatprep.subr.mxu0 0.0
    %956 = vmatpush1.msra.mxu0 0.0
    %957 = vmatprep.subr.mxu0 0.0
    %958 = vmatpush1.msra.mxu0 0.0
    %959 = vmatprep.mubr.f32.mxu0 0.0
    %960 = vmatmul.mubr.f32.gmra.mrb[0].mxu0 %v890
    %v961 = vpop.f32.mrb[0].mxu0
    %v962 = vadd.f32 %v887, %v961
    %v963 = vpop.f32.mrb[0].mxu0
    %964 = vmatprep.mubr.f32.mxu0 0.0
    %965 = vmatmul.mubr.f32.gmra.mrb[0].mxu0 %v893
    %v966 = vpop.f32.mrb[0].mxu0
    %v967 = vadd.f32 %v887, %v966
    %v968 = vpop.f32.mrb[0].mxu0
    %969 = vdwg.mxu0
    %v970 = vadd.f32 %v54, %v962
    %v971 = vadd.f32 %v55, %v967
    %v972 = vld [vmem:[%s8] sm:$0x1]
    %v973 = vld [vmem:[%s9] sm:$0x1]
    %v974 = vsel %vm60, %v970, 0.0
    %975 = vadd.xlane.f32.xlu0 %v974
    %v976 = vpop.xlane.xlu0 %975
    %v977 = vsel %vm60, %v971, 0.0
    %978 = vadd.xlane.f32.xlu0 %v977
    %v979 = vpop.xlane.xlu0 %978
    %v980 = vmul.f32 %v976, %v67
    %v981 = vmul.f32 %v979, %v67
    %v982 = vsub.f32 %v970, %v980
    %v983 = vsub.f32 %v971, %v981
    %v984 = vmul.f32 %v982, %v982
    %v985 = vmul.f32 %v983, %v983
    %v986 = vsel %vm60, %v984, 0.0
    %987 = vadd.xlane.f32.xlu0 %v986
    %v988 = vpop.xlane.xlu0 %987
    %v989 = vsel %vm60, %v985, 0.0
    %990 = vadd.xlane.f32.xlu0 %v989
    %v991 = vpop.xlane.xlu0 %990
    %v992 = vmul.f32 %v988, %v67
    %v993 = vmul.f32 %v991, %v67
    %v994 = vadd.f32 %v992, 1e-05
    %v995 = vadd.f32 %v993, 1e-05
    %v996 = vrsqrt.pop %v994
    %v997 = vrsqrt.pop %v995
    %v998 = vmul.f32 %v982, %v996
    %v999 = vmul.f32 %v983, %v997
    %v1001 = vlaneseq
    %v1002 = vshrl.u32 %v1001, 7
    %v1003 = vsub.s32 0, %v1002
    %v1004 = vrot.slane %v972, %v1003
    %v1006 = vmul.f32 %v998, %v1004
    %v1007 = vmul.f32 %v999, %v1004
    %v1009 = vlaneseq
    %v1010 = vshrl.u32 %v1009, 7
    %v1011 = vsub.s32 0, %v1010
    %v1012 = vrot.slane %v973, %v1011
    %v1014 = vadd.f32 %v1006, %v1012
    %v1015 = vadd.f32 %v1007, %v1012
    %v1016 = vld [vmem:[%s10] sm:$0xff]
    %v1017 = vld [vmem:[%s10 + $0x8] sm:$0xff]
    %v1018 = vld [vmem:[%s10 + $0x10] sm:$0xff]
    %v1019 = vld [vmem:[%s10 + $0x18] sm:$0xff]
    %v1020 = vld [vmem:[%s11] sm:$0x1]
    %v1022 = vlaneseq
    %v1023 = vshrl.u32 %v1022, 7
    %v1024 = vsub.s32 0, %v1023
    %v1025 = vrot.slane %v1020, %v1024
    %v1028 = vsel %vm60, %v1014, 0
    %v1031 = vsel %vm60, %v1015, 0
    %1033 = vmatprep.subr.mxu0 0.0
    %1034 = vmatpush1.msra.mxu0 %v1016
    %1035 = vmatprep.subr.mxu0 0.0
    %1036 = vmatpush1.msra.mxu0 %v1017
    %1037 = vmatprep.subr.mxu0 0.0
    %1038 = vmatpush1.msra.mxu0 %v1018
    %1039 = vmatprep.subr.mxu0 0.0
    %1040 = vmatpush1.msra.mxu0 %v1019
    %1041 = vmatprep.subr.mxu0 0.0
    %1042 = vmatpush1.msra.mxu0 0.0
    %1043 = vmatprep.subr.mxu0 0.0
    %1044 = vmatpush1.msra.mxu0 0.0
    %1045 = vmatprep.subr.mxu0 0.0
    %1046 = vmatpush1.msra.mxu0 0.0
    %1047 = vmatprep.subr.mxu0 0.0
    %1048 = vmatpush1.msra.mxu0 0.0
    %1049 = vmatprep.subr.mxu0 0.0
    %1050 = vmatpush1.msra.mxu0 0.0
    %1051 = vmatprep.subr.mxu0 0.0
    %1052 = vmatpush1.msra.mxu0 0.0
    %1053 = vmatprep.subr.mxu0 0.0
    %1054 = vmatpush1.msra.mxu0 0.0
    %1055 = vmatprep.subr.mxu0 0.0
    %1056 = vmatpush1.msra.mxu0 0.0
    %1057 = vmatprep.subr.mxu0 0.0
    %1058 = vmatpush1.msra.mxu0 0.0
    %1059 = vmatprep.subr.mxu0 0.0
    %1060 = vmatpush1.msra.mxu0 0.0
    %1061 = vmatprep.subr.mxu0 0.0
    %1062 = vmatpush1.msra.mxu0 0.0
    %1063 = vmatprep.subr.mxu0 0.0
    %1064 = vmatpush1.msra.mxu0 0.0
    %1065 = vmatprep.subr.mxu0 0.0
    %1066 = vmatpush1.msra.mxu0 0.0
    %1067 = vmatprep.subr.mxu0 0.0
    %1068 = vmatpush1.msra.mxu0 0.0
    %1069 = vmatprep.subr.mxu0 0.0
    %1070 = vmatpush1.msra.mxu0 0.0
    %1071 = vmatprep.subr.mxu0 0.0
    %1072 = vmatpush1.msra.mxu0 0.0
    %1073 = vmatprep.subr.mxu0 0.0
    %1074 = vmatpush1.msra.mxu0 0.0
    %1075 = vmatprep.subr.mxu0 0.0
    %1076 = vmatpush1.msra.mxu0 0.0
    %1077 = vmatprep.subr.mxu0 0.0
    %1078 = vmatpush1.msra.mxu0 0.0
    %1079 = vmatprep.subr.mxu0 0.0
    %1080 = vmatpush1.msra.mxu0 0.0
    %1081 = vmatprep.subr.mxu0 0.0
    %1082 = vmatpush1.msra.mxu0 0.0
    %1083 = vmatprep.subr.mxu0 0.0
    %1084 = vmatpush1.msra.mxu0 0.0
    %1085 = vmatprep.subr.mxu0 0.0
    %1086 = vmatpush1.msra.mxu0 0.0
    %1087 = vmatprep.subr.mxu0 0.0
    %1088 = vmatpush1.msra.mxu0 0.0
    %1089 = vmatprep.subr.mxu0 0.0
    %1090 = vmatpush1.msra.mxu0 0.0
    %1091 = vmatprep.subr.mxu0 0.0
    %1092 = vmatpush1.msra.mxu0 0.0
    %1093 = vmatprep.subr.mxu0 0.0
    %1094 = vmatpush1.msra.mxu0 0.0
    %1095 = vmatprep.subr.mxu0 0.0
    %1096 = vmatpush1.msra.mxu0 0.0
    %1097 = vmatprep.mubr.f32.mxu0 0.0
    %1098 = vmatmul.mubr.f32.gmra.mrb[0].mxu0 %v1028
    %v1099 = vpop.f32.mrb[0].mxu0
    %v1100 = vadd.f32 %v1025, %v1099
    %v1101 = vpop.f32.mrb[0].mxu0
    %1102 = vmatprep.mubr.f32.mxu0 0.0
    %1103 = vmatmul.mubr.f32.gmra.mrb[0].mxu0 %v1031
    %v1104 = vpop.f32.mrb[0].mxu0
    %v1105 = vadd.f32 %v1025, %v1104
    %v1106 = vpop.f32.mrb[0].mxu0
    %1107 = vdwg.mxu0
    %v1108 = vmul.f32 %v1100, %v1100
    %v1109 = vmul.f32 %v1105, %v1105
    %v1110 = vmul.f32 %v1100, %v1108
    %v1111 = vmul.f32 %v1105, %v1109
    %v1112 = vmul.f32 %v1110, 0.044715
    %v1113 = vmul.f32 %v1111, 0.044715
    %v1114 = vadd.f32 %v1100, %v1112
    %v1115 = vadd.f32 %v1105, %v1113
    %v1116 = vmul.f32 %v1114, 0.7978846
    %v1117 = vmul.f32 %v1115, 0.7978846
    %v1118 = vtanh.pop %v1116
    %v1119 = vtanh.pop %v1117
    %v1120 = vadd.f32 %v1118, 1.0
    %v1121 = vadd.f32 %v1119, 1.0
    %v1122 = vmul.f32 %v1120, 0.5
    %v1123 = vmul.f32 %v1121, 0.5
    %v1124 = vmul.f32 %v1100, %v1122
    %v1125 = vmul.f32 %v1105, %v1123
    %v1126 = vld [vmem:[%s12] sm:$0xff]
    %v1127 = vld [vmem:[%s12 + $0x8] sm:$0xff]
    %v1128 = vld [vmem:[%s12 + $0x10] sm:$0xff]
    %v1129 = vld [vmem:[%s12 + $0x18] sm:$0xff]
    %v1130 = vld [vmem:[%s12 + $0x20] sm:$0xff]
    %v1131 = vld [vmem:[%s12 + $0x28] sm:$0xff]
    %v1132 = vld [vmem:[%s12 + $0x30] sm:$0xff]
    %v1133 = vld [vmem:[%s12 + $0x38] sm:$0xff]
    %v1134 = vld [vmem:[%s12 + $0x40] sm:$0xff]
    %v1135 = vld [vmem:[%s12 + $0x48] sm:$0xff]
    %v1136 = vld [vmem:[%s12 + $0x50] sm:$0xff]
    %v1137 = vld [vmem:[%s12 + $0x58] sm:$0xff]
    %v1138 = vld [vmem:[%s12 + $0x60] sm:$0xff]
    %v1139 = vld [vmem:[%s12 + $0x68] sm:$0xff]
    %v1140 = vld [vmem:[%s12 + $0x70] sm:$0xff]
    %v1141 = vld [vmem:[%s12 + $0x78] sm:$0xff]
    %v1142 = vld [vmem:[%s13] sm:$0x1]
    %v1144 = vlaneseq
    %v1145 = vshrl.u32 %v1144, 7
    %v1146 = vsub.s32 0, %v1145
    %v1147 = vrot.slane %v1142, %v1146
    %1149 = vmatprep.subr.mxu0 0.0
    %1150 = vmatpush1.msra.mxu0 %v1126
    %1151 = vmatprep.subr.mxu0 0.0
    %1152 = vmatpush1.msra.mxu0 %v1127
    %1153 = vmatprep.subr.mxu0 0.0
    %1154 = vmatpush1.msra.mxu0 %v1128
    %1155 = vmatprep.subr.mxu0 0.0
    %1156 = vmatpush1.msra.mxu0 %v1129
    %1157 = vmatprep.subr.mxu0 0.0
    %1158 = vmatpush1.msra.mxu0 %v1130
    %1159 = vmatprep.subr.mxu0 0.0
    %1160 = vmatpush1.msra.mxu0 %v1131
    %1161 = vmatprep.subr.mxu0 0.0
    %1162 = vmatpush1.msra.mxu0 %v1132
    %1163 = vmatprep.subr.mxu0 0.0
    %1164 = vmatpush1.msra.mxu0 %v1133
    %1165 = vmatprep.subr.mxu0 0.0
    %1166 = vmatpush1.msra.mxu0 %v1134
    %1167 = vmatprep.subr.mxu0 0.0
    %1168 = vmatpush1.msra.mxu0 %v1135
    %1169 = vmatprep.subr.mxu0 0.0
    %1170 = vmatpush1.msra.mxu0 %v1136
    %1171 = vmatprep.subr.mxu0 0.0
    %1172 = vmatpush1.msra.mxu0 %v1137
    %1173 = vmatprep.subr.mxu0 0.0
    %1174 = vmatpush1.msra.mxu0 %v1138
    %1175 = vmatprep.subr.mxu0 0.0
    %1176 = vmatpush1.msra.mxu0 %v1139
    %1177 = vmatprep.subr.mxu0 0.0
    %1178 = vmatpush1.msra.mxu0 %v1140
    %1179 = vmatprep.subr.mxu0 0.0
    %1180 = vmatpush1.msra.mxu0 %v1141
    %1181 = vmatprep.subr.mxu0 0.0
    %1182 = vmatpush1.msra.mxu0 0.0
    %1183 = vmatprep.subr.mxu0 0.0
    %1184 = vmatpush1.msra.mxu0 0.0
    %1185 = vmatprep.subr.mxu0 0.0
    %1186 = vmatpush1.msra.mxu0 0.0
    %1187 = vmatprep.subr.mxu0 0.0
    %1188 = vmatpush1.msra.mxu0 0.0
    %1189 = vmatprep.subr.mxu0 0.0
    %1190 = vmatpush1.msra.mxu0 0.0
    %1191 = vmatprep.subr.mxu0 0.0
    %1192 = vmatpush1.msra.mxu0 0.0
    %1193 = vmatprep.subr.mxu0 0.0
    %1194 = vmatpush1.msra.mxu0 0.0
    %1195 = vmatprep.subr.mxu0 0.0
    %1196 = vmatpush1.msra.mxu0 0.0
    %1197 = vmatprep.subr.mxu0 0.0
    %1198 = vmatpush1.msra.mxu0 0.0
    %1199 = vmatprep.subr.mxu0 0.0
    %1200 = vmatpush1.msra.mxu0 0.0
    %1201 = vmatprep.subr.mxu0 0.0
    %1202 = vmatpush1.msra.mxu0 0.0
    %1203 = vmatprep.subr.mxu0 0.0
    %1204 = vmatpush1.msra.mxu0 0.0
    %1205 = vmatprep.subr.mxu0 0.0
    %1206 = vmatpush1.msra.mxu0 0.0
    %1207 = vmatprep.subr.mxu0 0.0
    %1208 = vmatpush1.msra.mxu0 0.0
    %1209 = vmatprep.subr.mxu0 0.0
    %1210 = vmatpush1.msra.mxu0 0.0
    %1211 = vmatprep.subr.mxu0 0.0
    %1212 = vmatpush1.msra.mxu0 0.0
    %1213 = vmatprep.mubr.f32.mxu0 0.0
    %1214 = vmatmul.mubr.f32.gmra.mrb[0].mxu0 %v1124
    %v1215 = vpop.f32.mrb[0].mxu0
    %v1216 = vadd.f32 %v1147, %v1215
    %v1217 = vpop.f32.mrb[0].mxu0
    %1218 = vmatprep.mubr.f32.mxu0 0.0
    %1219 = vmatmul.mubr.f32.gmra.mrb[0].mxu0 %v1125
    %v1220 = vpop.f32.mrb[0].mxu0
    %v1221 = vadd.f32 %v1147, %v1220
    %v1222 = vpop.f32.mrb[0].mxu0
    %1223 = vdwg.mxu0
    %v1224 = vadd.f32 %v970, %v1216
    %v1225 = vadd.f32 %v971, %v1221
    %s1226 = scalar_lea.vmem %s2, 1
    %v1227 = vld [vmem:[%s1226] sm:$0x1]
    %s1228 = scalar_lea.vmem %s3, 1
    %v1229 = vld [vmem:[%s1228] sm:$0x1]
    %v1230 = vsel %vm60, %v1224, 0.0
    %1231 = vadd.xlane.f32.xlu0 %v1230
    %v1232 = vpop.xlane.xlu0 %1231
    %v1233 = vsel %vm60, %v1225, 0.0
    %1234 = vadd.xlane.f32.xlu0 %v1233
    %v1235 = vpop.xlane.xlu0 %1234
    %v1236 = vmul.f32 %v1232, %v67
    %v1237 = vmul.f32 %v1235, %v67
    %v1238 = vsub.f32 %v1224, %v1236
    %v1239 = vsub.f32 %v1225, %v1237
    %v1240 = vmul.f32 %v1238, %v1238
    %v1241 = vmul.f32 %v1239, %v1239
    %v1242 = vsel %vm60, %v1240, 0.0
    %1243 = vadd.xlane.f32.xlu0 %v1242
    %v1244 = vpop.xlane.xlu0 %1243
    %v1245 = vsel %vm60, %v1241, 0.0
    %1246 = vadd.xlane.f32.xlu0 %v1245
    %v1247 = vpop.xlane.xlu0 %1246
    %v1248 = vmul.f32 %v1244, %v67
    %v1249 = vmul.f32 %v1247, %v67
    %v1250 = vadd.f32 %v1248, 1e-05
    %v1251 = vadd.f32 %v1249, 1e-05
    %v1252 = vrsqrt.pop %v1250
    %v1253 = vrsqrt.pop %v1251
    %v1254 = vmul.f32 %v1238, %v1252
    %v1255 = vmul.f32 %v1239, %v1253
    %v1257 = vlaneseq
    %v1258 = vshrl.u32 %v1257, 7
    %v1259 = vsub.s32 0, %v1258
    %v1260 = vrot.slane %v1227, %v1259
    %v1262 = vmul.f32 %v1254, %v1260
    %v1263 = vmul.f32 %v1255, %v1260
    %v1265 = vlaneseq
    %v1266 = vshrl.u32 %v1265, 7
    %v1267 = vsub.s32 0, %v1266
    %v1268 = vrot.slane %v1229, %v1267
    %v1270 = vadd.f32 %v1262, %v1268
    %v1271 = vadd.f32 %v1263, %v1268
    %s1272 = scalar_lea.vmem %s4, 32
    %v1273 = vld [vmem:[%s1272] sm:$0xff]
    %v1274 = vld [vmem:[%s1272 + $0x8] sm:$0xff]
    %v1275 = vld [vmem:[%s1272 + $0x10] sm:$0xff]
    %v1276 = vld [vmem:[%s1272 + $0x18] sm:$0xff]
    %s1277 = scalar_lea.vmem %s5, 1
    %v1278 = vld [vmem:[%s1277] sm:$0x1]
    %v1280 = vlaneseq
    %v1281 = vshrl.u32 %v1280, 7
    %v1282 = vsub.s32 0, %v1281
    %v1283 = vrot.slane %v1278, %v1282
    %v1286 = vsel %vm60, %v1270, 0
    %v1289 = vsel %vm60, %v1271, 0
    %1291 = vmatprep.subr.mxu0 0.0
    %1292 = vmatpush1.msra.mxu0 %v1273
    %1293 = vmatprep.subr.mxu0 0.0
    %1294 = vmatpush1.msra.mxu0 %v1274
    %1295 = vmatprep.subr.mxu0 0.0
    %1296 = vmatpush1.msra.mxu0 %v1275
    %1297 = vmatprep.subr.mxu0 0.0
    %1298 = vmatpush1.msra.mxu0 %v1276
    %1299 = vmatprep.subr.mxu0 0.0
    %1300 = vmatpush1.msra.mxu0 0.0
    %1301 = vmatprep.subr.mxu0 0.0
    %1302 = vmatpush1.msra.mxu0 0.0
    %1303 = vmatprep.subr.mxu0 0.0
    %1304 = vmatpush1.msra.mxu0 0.0
    %1305 = vmatprep.subr.mxu0 0.0
    %1306 = vmatpush1.msra.mxu0 0.0
    %1307 = vmatprep.subr.mxu0 0.0
    %1308 = vmatpush1.msra.mxu0 0.0
    %1309 = vmatprep.subr.mxu0 0.0
    %1310 = vmatpush1.msra.mxu0 0.0
    %1311 = vmatprep.subr.mxu0 0.0
    %1312 = vmatpush1.msra.mxu0 0.0
    %1313 = vmatprep.subr.mxu0 0.0
    %1314 = vmatpush1.msra.mxu0 0.0
    %1315 = vmatprep.subr.mxu0 0.0
    %1316 = vmatpush1.msra.mxu0 0.0
    %1317 = vmatprep.subr.mxu0 0.0
    %1318 = vmatpush1.msra.mxu0 0.0
    %1319 = vmatprep.subr.mxu0 0.0
    %1320 = vmatpush1.msra.mxu0 0.0
    %1321 = vmatprep.subr.mxu0 0.0
    %1322 = vmatpush1.msra.mxu0 0.0
    %1323 = vmatprep.subr.mxu0 0.0
    %1324 = vmatpush1.msra.mxu0 0.0
    %1325 = vmatprep.subr.mxu0 0.0
    %1326 = vmatpush1.msra.mxu0 0.0
    %1327 = vmatprep.subr.mxu0 0.0
    %1328 = vmatpush1.msra.mxu0 0.0
    %1329 = vmatprep.subr.mxu0 0.0
    %1330 = vmatpush1.msra.mxu0 0.0
    %1331 = vmatprep.subr.mxu0 0.0
    %1332 = vmatpush1.msra.mxu0 0.0
    %1333 = vmatprep.subr.mxu0 0.0
    %1334 = vmatpush1.msra.mxu0 0.0
    %1335 = vmatprep.subr.mxu0 0.0
    %1336 = vmatpush1.msra.mxu0 0.0
    %1337 = vmatprep.subr.mxu0 0.0
    %1338 = vmatpush1.msra.mxu0 0.0
    %1339 = vmatprep.subr.mxu0 0.0
    %1340 = vmatpush1.msra.mxu0 0.0
    %1341 = vmatprep.subr.mxu0 0.0
    %1342 = vmatpush1.msra.mxu0 0.0
    %1343 = vmatprep.subr.mxu0 0.0
    %1344 = vmatpush1.msra.mxu0 0.0
    %1345 = vmatprep.subr.mxu0 0.0
    %1346 = vmatpush1.msra.mxu0 0.0
    %1347 = vmatprep.subr.mxu0 0.0
    %1348 = vmatpush1.msra.mxu0 0.0
    %1349 = vmatprep.subr.mxu0 0.0
    %1350 = vmatpush1.msra.mxu0 0.0
    %1351 = vmatprep.subr.mxu0 0.0
    %1352 = vmatpush1.msra.mxu0 0.0
    %1353 = vmatprep.subr.mxu0 0.0
    %1354 = vmatpush1.msra.mxu0 0.0
    %1355 = vmatprep.mubr.f32.mxu0 0.0
    %1356 = vmatmul.mubr.f32.gmra.mrb[0].mxu0 %v1286
    %v1357 = vpop.f32.mrb[0].mxu0
    %v1358 = vadd.f32 %v1283, %v1357
    %v1359 = vpop.f32.mrb[0].mxu0
    %1360 = vmatprep.mubr.f32.mxu0 0.0
    %1361 = vmatmul.mubr.f32.gmra.mrb[0].mxu0 %v1289
    %v1362 = vpop.f32.mrb[0].mxu0
    %v1363 = vadd.f32 %v1283, %v1362
    %v1364 = vpop.f32.mrb[0].mxu0
    %1365 = vdwg.mxu0
    %1367 = vrot.lane.b32.xlu0 %v1358, 96
    %v1368 = vpop.permute.xlu0 %1367
    %v1369 = vsel %vm211, %v1358, 0
    %v1371 = vsel %vm211, %v1368, 0
    %1373 = vmatprep.subr.mxu0 0.0
    %1374 = vmatpush1.xpose.msra.mxu0 %v1371
    %1375 = vmatprep.subr.mxu0 0.0
    %1376 = vmatpush1.xpose.msra.mxu0 0.0
    %1377 = vmatprep.subr.mxu0 0.0
    %1378 = vmatpush1.xpose.msra.mxu0 0.0
    %1379 = vmatprep.subr.mxu0 0.0
    %1380 = vmatpush1.xpose.msra.mxu0 0.0
    %1381 = vmatprep.subr.mxu0 0.0
    %1382 = vmatpush1.xpose.msra.mxu0 0.0
    %1383 = vmatprep.subr.mxu0 0.0
    %1384 = vmatpush1.xpose.msra.mxu0 0.0
    %1385 = vmatprep.subr.mxu0 0.0
    %1386 = vmatpush1.xpose.msra.mxu0 0.0
    %1387 = vmatprep.subr.mxu0 0.0
    %1388 = vmatpush1.xpose.msra.mxu0 0.0
    %1389 = vmatprep.subr.mxu0 0.0
    %1390 = vmatpush1.xpose.msra.mxu0 0.0
    %1391 = vmatprep.subr.mxu0 0.0
    %1392 = vmatpush1.xpose.msra.mxu0 0.0
    %1393 = vmatprep.subr.mxu0 0.0
    %1394 = vmatpush1.xpose.msra.mxu0 0.0
    %1395 = vmatprep.subr.mxu0 0.0
    %1396 = vmatpush1.xpose.msra.mxu0 0.0
    %1397 = vmatprep.subr.mxu0 0.0
    %1398 = vmatpush1.xpose.msra.mxu0 0.0
    %1399 = vmatprep.subr.mxu0 0.0
    %1400 = vmatpush1.xpose.msra.mxu0 0.0
    %1401 = vmatprep.subr.mxu0 0.0
    %1402 = vmatpush1.xpose.msra.mxu0 0.0
    %1403 = vmatprep.subr.mxu0 0.0
    %1404 = vmatpush1.xpose.msra.mxu0 0.0
    %1405 = vmatprep.subr.mxu0 0.0
    %1406 = vmatpush1.xpose.msra.mxu0 0.0
    %1407 = vmatprep.subr.mxu0 0.0
    %1408 = vmatpush1.xpose.msra.mxu0 0.0
    %1409 = vmatprep.subr.mxu0 0.0
    %1410 = vmatpush1.xpose.msra.mxu0 0.0
    %1411 = vmatprep.subr.mxu0 0.0
    %1412 = vmatpush1.xpose.msra.mxu0 0.0
    %1413 = vmatprep.subr.mxu0 0.0
    %1414 = vmatpush1.xpose.msra.mxu0 0.0
    %1415 = vmatprep.subr.mxu0 0.0
    %1416 = vmatpush1.xpose.msra.mxu0 0.0
    %1417 = vmatprep.subr.mxu0 0.0
    %1418 = vmatpush1.xpose.msra.mxu0 0.0
    %1419 = vmatprep.subr.mxu0 0.0
    %1420 = vmatpush1.xpose.msra.mxu0 0.0
    %1421 = vmatprep.subr.mxu0 0.0
    %1422 = vmatpush1.xpose.msra.mxu0 0.0
    %1423 = vmatprep.subr.mxu0 0.0
    %1424 = vmatpush1.xpose.msra.mxu0 0.0
    %1425 = vmatprep.subr.mxu0 0.0
    %1426 = vmatpush1.xpose.msra.mxu0 0.0
    %1427 = vmatprep.subr.mxu0 0.0
    %1428 = vmatpush1.xpose.msra.mxu0 0.0
    %1429 = vmatprep.subr.mxu0 0.0
    %1430 = vmatpush1.xpose.msra.mxu0 0.0
    %1431 = vmatprep.subr.mxu0 0.0
    %1432 = vmatpush1.xpose.msra.mxu0 0.0
    %1433 = vmatprep.subr.mxu0 0.0
    %1434 = vmatpush1.xpose.msra.mxu0 0.0
    %1435 = vmatprep.subr.mxu0 0.0
    %1436 = vmatpush1.xpose.msra.mxu0 0.0
    %1437 = vmatprep.mubr.f32.mxu0 0.0
    %1438 = vmatmul.mubr.f32.gmra.mrb[0].mxu0 %v1369
    %v1439 = vpop.f32.mrb[0].mxu0
    %v1440 = vadd.f32 %v201, %v1439
    %v1441 = vpop.f32.mrb[0].mxu0
    %1442 = vdwg.mxu0
    %1444 = vrot.lane.b32.xlu0 %v1363, 96
    %v1445 = vpop.permute.xlu0 %1444
    %v1446 = vsel %vm211, %v1363, 0
    %v1448 = vsel %vm211, %v1445, 0
    %1450 = vmatprep.subr.mxu0 0.0
    %1451 = vmatpush1.xpose.msra.mxu0 %v1448
    %1452 = vmatprep.subr.mxu0 0.0
    %1453 = vmatpush1.xpose.msra.mxu0 0.0
    %1454 = vmatprep.subr.mxu0 0.0
    %1455 = vmatpush1.xpose.msra.mxu0 0.0
    %1456 = vmatprep.subr.mxu0 0.0
    %1457 = vmatpush1.xpose.msra.mxu0 0.0
    %1458 = vmatprep.subr.mxu0 0.0
    %1459 = vmatpush1.xpose.msra.mxu0 0.0
    %1460 = vmatprep.subr.mxu0 0.0
    %1461 = vmatpush1.xpose.msra.mxu0 0.0
    %1462 = vmatprep.subr.mxu0 0.0
    %1463 = vmatpush1.xpose.msra.mxu0 0.0
    %1464 = vmatprep.subr.mxu0 0.0
    %1465 = vmatpush1.xpose.msra.mxu0 0.0
    %1466 = vmatprep.subr.mxu0 0.0
    %1467 = vmatpush1.xpose.msra.mxu0 0.0
    %1468 = vmatprep.subr.mxu0 0.0
    %1469 = vmatpush1.xpose.msra.mxu0 0.0
    %1470 = vmatprep.subr.mxu0 0.0
    %1471 = vmatpush1.xpose.msra.mxu0 0.0
    %1472 = vmatprep.subr.mxu0 0.0
    %1473 = vmatpush1.xpose.msra.mxu0 0.0
    %1474 = vmatprep.subr.mxu0 0.0
    %1475 = vmatpush1.xpose.msra.mxu0 0.0
    %1476 = vmatprep.subr.mxu0 0.0
    %1477 = vmatpush1.xpose.msra.mxu0 0.0
    %1478 = vmatprep.subr.mxu0 0.0
    %1479 = vmatpush1.xpose.msra.mxu0 0.0
    %1480 = vmatprep.subr.mxu0 0.0
    %1481 = vmatpush1.xpose.msra.mxu0 0.0
    %1482 = vmatprep.subr.mxu0 0.0
    %1483 = vmatpush1.xpose.msra.mxu0 0.0
    %1484 = vmatprep.subr.mxu0 0.0
    %1485 = vmatpush1.xpose.msra.mxu0 0.0
    %1486 = vmatprep.subr.mxu0 0.0
    %1487 = vmatpush1.xpose.msra.mxu0 0.0
    %1488 = vmatprep.subr.mxu0 0.0
    %1489 = vmatpush1.xpose.msra.mxu0 0.0
    %1490 = vmatprep.subr.mxu0 0.0
    %1491 = vmatpush1.xpose.msra.mxu0 0.0
    %1492 = vmatprep.subr.mxu0 0.0
    %1493 = vmatpush1.xpose.msra.mxu0 0.0
    %1494 = vmatprep.subr.mxu0 0.0
    %1495 = vmatpush1.xpose.msra.mxu0 0.0
    %1496 = vmatprep.subr.mxu0 0.0
    %1497 = vmatpush1.xpose.msra.mxu0 0.0
    %1498 = vmatprep.subr.mxu0 0.0
    %1499 = vmatpush1.xpose.msra.mxu0 0.0
    %1500 = vmatprep.subr.mxu0 0.0
    %1501 = vmatpush1.xpose.msra.mxu0 0.0
    %1502 = vmatprep.subr.mxu0 0.0
    %1503 = vmatpush1.xpose.msra.mxu0 0.0
    %1504 = vmatprep.subr.mxu0 0.0
    %1505 = vmatpush1.xpose.msra.mxu0 0.0
    %1506 = vmatprep.subr.mxu0 0.0
    %1507 = vmatpush1.xpose.msra.mxu0 0.0
    %1508 = vmatprep.subr.mxu0 0.0
    %1509 = vmatpush1.xpose.msra.mxu0 0.0
    %1510 = vmatprep.subr.mxu0 0.0
    %1511 = vmatpush1.xpose.msra.mxu0 0.0
    %1512 = vmatprep.subr.mxu0 0.0
    %1513 = vmatpush1.xpose.msra.mxu0 0.0
    %1514 = vmatprep.mubr.f32.mxu0 0.0
    %1515 = vmatmul.mubr.f32.gmra.mrb[0].mxu0 %v1446
    %v1516 = vpop.f32.mrb[0].mxu0
    %v1517 = vadd.f32 %v205, %v1516
    %v1518 = vpop.f32.mrb[0].mxu0
    %1519 = vdwg.mxu0
    %v1520 = vsel %vm363, %v1440, -inf
    %1521 = vmax.xlane.f32.xlu0 %v1520
    %v1522 = vpop.xlane.xlu0 %1521
    %v1523 = vsel %vm363, %v1517, -inf
    %1524 = vmax.xlane.f32.xlu0 %v1523
    %v1525 = vpop.xlane.xlu0 %1524
    %v1526 = vsub.f32 %v1440, %v1522
    %v1527 = vsub.f32 %v1517, %v1525
    %v1528 = vmul.f32 %v1526, 1.442695
    %v1529 = vpow.pop %v1528
    %v1530 = vmul.f32 %v1527, 1.442695
    %v1531 = vpow.pop %v1530
    %v1532 = vsel %vm363, %v1529, 0.0
    %1533 = vadd.xlane.f32.xlu0 %v1532
    %v1534 = vpop.xlane.xlu0 %1533
    %v1535 = vsel %vm363, %v1531, 0.0
    %1536 = vadd.xlane.f32.xlu0 %v1535
    %v1537 = vpop.xlane.xlu0 %1536
    %v1538 = vrcp.pop %v1534
    %v1539 = vrcp.pop %v1537
    %v1540 = vmul.f32 %v1529, %v1538
    %v1541 = vmul.f32 %v1531, %v1539
    %1542 = vrot.lane.b32.xlu0 %v1358, 64
    %v1543 = vpop.permute.xlu0 %1542
    %v1546 = vsel %vm363, %v1540, 0
    %1548 = vmatprep.subr.mxu0 0.0
    %1549 = vmatpush1.msra.mxu0 %v1543
    %1550 = vmatprep.subr.mxu0 0.0
    %1551 = vmatpush1.msra.mxu0 0.0
    %1552 = vmatprep.subr.mxu0 0.0
    %1553 = vmatpush1.msra.mxu0 0.0
    %1554 = vmatprep.subr.mxu0 0.0
    %1555 = vmatpush1.msra.mxu0 0.0
    %1556 = vmatprep.subr.mxu0 0.0
    %1557 = vmatpush1.msra.mxu0 0.0
    %1558 = vmatprep.subr.mxu0 0.0
    %1559 = vmatpush1.msra.mxu0 0.0
    %1560 = vmatprep.subr.mxu0 0.0
    %1561 = vmatpush1.msra.mxu0 0.0
    %1562 = vmatprep.subr.mxu0 0.0
    %1563 = vmatpush1.msra.mxu0 0.0
    %1564 = vmatprep.subr.mxu0 0.0
    %1565 = vmatpush1.msra.mxu0 0.0
    %1566 = vmatprep.subr.mxu0 0.0
    %1567 = vmatpush1.msra.mxu0 0.0
    %1568 = vmatprep.subr.mxu0 0.0
    %1569 = vmatpush1.msra.mxu0 0.0
    %1570 = vmatprep.subr.mxu0 0.0
    %1571 = vmatpush1.msra.mxu0 0.0
    %1572 = vmatprep.subr.mxu0 0.0
    %1573 = vmatpush1.msra.mxu0 0.0
    %1574 = vmatprep.subr.mxu0 0.0
    %1575 = vmatpush1.msra.mxu0 0.0
    %1576 = vmatprep.subr.mxu0 0.0
    %1577 = vmatpush1.msra.mxu0 0.0
    %1578 = vmatprep.subr.mxu0 0.0
    %1579 = vmatpush1.msra.mxu0 0.0
    %1580 = vmatprep.subr.mxu0 0.0
    %1581 = vmatpush1.msra.mxu0 0.0
    %1582 = vmatprep.subr.mxu0 0.0
    %1583 = vmatpush1.msra.mxu0 0.0
    %1584 = vmatprep.subr.mxu0 0.0
    %1585 = vmatpush1.msra.mxu0 0.0
    %1586 = vmatprep.subr.mxu0 0.0
    %1587 = vmatpush1.msra.mxu0 0.0
    %1588 = vmatprep.subr.mxu0 0.0
    %1589 = vmatpush1.msra.mxu0 0.0
    %1590 = vmatprep.subr.mxu0 0.0
    %1591 = vmatpush1.msra.mxu0 0.0
    %1592 = vmatprep.subr.mxu0 0.0
    %1593 = vmatpush1.msra.mxu0 0.0
    %1594 = vmatprep.subr.mxu0 0.0
    %1595 = vmatpush1.msra.mxu0 0.0
    %1596 = vmatprep.subr.mxu0 0.0
    %1597 = vmatpush1.msra.mxu0 0.0
    %1598 = vmatprep.subr.mxu0 0.0
    %1599 = vmatpush1.msra.mxu0 0.0
    %1600 = vmatprep.subr.mxu0 0.0
    %1601 = vmatpush1.msra.mxu0 0.0
    %1602 = vmatprep.subr.mxu0 0.0
    %1603 = vmatpush1.msra.mxu0 0.0
    %1604 = vmatprep.subr.mxu0 0.0
    %1605 = vmatpush1.msra.mxu0 0.0
    %1606 = vmatprep.subr.mxu0 0.0
    %1607 = vmatpush1.msra.mxu0 0.0
    %1608 = vmatprep.subr.mxu0 0.0
    %1609 = vmatpush1.msra.mxu0 0.0
    %1610 = vmatprep.subr.mxu0 0.0
    %1611 = vmatpush1.msra.mxu0 0.0
    %1612 = vmatprep.mubr.f32.mxu0 0.0
    %1613 = vmatmul.mubr.f32.gmra.mrb[0].mxu0 %v1546
    %v1614 = vpop.f32.mrb[0].mxu0
    %v1615 = vadd.f32 0.0, %v1614
    %v1616 = vpop.f32.mrb[0].mxu0
    %1617 = vdwg.mxu0
    %1618 = vrot.lane.b32.xlu0 %v1363, 64
    %v1619 = vpop.permute.xlu0 %1618
    %v1622 = vsel %vm363, %v1541, 0
    %1624 = vmatprep.subr.mxu0 0.0
    %1625 = vmatpush1.msra.mxu0 %v1619
    %1626 = vmatprep.subr.mxu0 0.0
    %1627 = vmatpush1.msra.mxu0 0.0
    %1628 = vmatprep.subr.mxu0 0.0
    %1629 = vmatpush1.msra.mxu0 0.0
    %1630 = vmatprep.subr.mxu0 0.0
    %1631 = vmatpush1.msra.mxu0 0.0
    %1632 = vmatprep.subr.mxu0 0.0
    %1633 = vmatpush1.msra.mxu0 0.0
    %1634 = vmatprep.subr.mxu0 0.0
    %1635 = vmatpush1.msra.mxu0 0.0
    %1636 = vmatprep.subr.mxu0 0.0
    %1637 = vmatpush1.msra.mxu0 0.0
    %1638 = vmatprep.subr.mxu0 0.0
    %1639 = vmatpush1.msra.mxu0 0.0
    %1640 = vmatprep.subr.mxu0 0.0
    %1641 = vmatpush1.msra.mxu0 0.0
    %1642 = vmatprep.subr.mxu0 0.0
    %1643 = vmatpush1.msra.mxu0 0.0
    %1644 = vmatprep.subr.mxu0 0.0
    %1645 = vmatpush1.msra.mxu0 0.0
    %1646 = vmatprep.subr.mxu0 0.0
    %1647 = vmatpush1.msra.mxu0 0.0
    %1648 = vmatprep.subr.mxu0 0.0
    %1649 = vmatpush1.msra.mxu0 0.0
    %1650 = vmatprep.subr.mxu0 0.0
    %1651 = vmatpush1.msra.mxu0 0.0
    %1652 = vmatprep.subr.mxu0 0.0
    %1653 = vmatpush1.msra.mxu0 0.0
    %1654 = vmatprep.subr.mxu0 0.0
    %1655 = vmatpush1.msra.mxu0 0.0
    %1656 = vmatprep.subr.mxu0 0.0
    %1657 = vmatpush1.msra.mxu0 0.0
    %1658 = vmatprep.subr.mxu0 0.0
    %1659 = vmatpush1.msra.mxu0 0.0
    %1660 = vmatprep.subr.mxu0 0.0
    %1661 = vmatpush1.msra.mxu0 0.0
    %1662 = vmatprep.subr.mxu0 0.0
    %1663 = vmatpush1.msra.mxu0 0.0
    %1664 = vmatprep.subr.mxu0 0.0
    %1665 = vmatpush1.msra.mxu0 0.0
    %1666 = vmatprep.subr.mxu0 0.0
    %1667 = vmatpush1.msra.mxu0 0.0
    %1668 = vmatprep.subr.mxu0 0.0
    %1669 = vmatpush1.msra.mxu0 0.0
    %1670 = vmatprep.subr.mxu0 0.0
    %1671 = vmatpush1.msra.mxu0 0.0
    %1672 = vmatprep.subr.mxu0 0.0
    %1673 = vmatpush1.msra.mxu0 0.0
    %1674 = vmatprep.subr.mxu0 0.0
    %1675 = vmatpush1.msra.mxu0 0.0
    %1676 = vmatprep.subr.mxu0 0.0
    %1677 = vmatpush1.msra.mxu0 0.0
    %1678 = vmatprep.subr.mxu0 0.0
    %1679 = vmatpush1.msra.mxu0 0.0
    %1680 = vmatprep.subr.mxu0 0.0
    %1681 = vmatpush1.msra.mxu0 0.0
    %1682 = vmatprep.subr.mxu0 0.0
    %1683 = vmatpush1.msra.mxu0 0.0
    %1684 = vmatprep.subr.mxu0 0.0
    %1685 = vmatpush1.msra.mxu0 0.0
    %1686 = vmatprep.subr.mxu0 0.0
    %1687 = vmatpush1.msra.mxu0 0.0
    %1688 = vmatprep.mubr.f32.mxu0 0.0
    %1689 = vmatmul.mubr.f32.gmra.mrb[0].mxu0 %v1622
    %v1690 = vpop.f32.mrb[0].mxu0
    %v1691 = vadd.f32 0.0, %v1690
    %v1692 = vpop.f32.mrb[0].mxu0
    %1693 = vdwg.mxu0
    %1694 = vrot.lane.b32.xlu0 %v1358, 112
    %v1695 = vpop.permute.xlu0 %1694
    %1696 = vrot.lane.b32.xlu0 %v1358, 80
    %v1697 = vpop.permute.xlu0 %1696
    %v1698 = vsel %vm211, %v1695, 0
    %v1700 = vsel %vm211, %v1697, 0
    %1702 = vmatprep.subr.mxu0 0.0
    %1703 = vmatpush1.xpose.msra.mxu0 %v1700
    %1704 = vmatprep.subr.mxu0 0.0
    %1705 = vmatpush1.xpose.msra.mxu0 0.0
    %1706 = vmatprep.subr.mxu0 0.0
    %1707 = vmatpush1.xpose.msra.mxu0 0.0
    %1708 = vmatprep.subr.mxu0 0.0
    %1709 = vmatpush1.xpose.msra.mxu0 0.0
    %1710 = vmatprep.subr.mxu0 0.0
    %1711 = vmatpush1.xpose.msra.mxu0 0.0
    %1712 = vmatprep.subr.mxu0 0.0
    %1713 = vmatpush1.xpose.msra.mxu0 0.0
    %1714 = vmatprep.subr.mxu0 0.0
    %1715 = vmatpush1.xpose.msra.mxu0 0.0
    %1716 = vmatprep.subr.mxu0 0.0
    %1717 = vmatpush1.xpose.msra.mxu0 0.0
    %1718 = vmatprep.subr.mxu0 0.0
    %1719 = vmatpush1.xpose.msra.mxu0 0.0
    %1720 = vmatprep.subr.mxu0 0.0
    %1721 = vmatpush1.xpose.msra.mxu0 0.0
    %1722 = vmatprep.subr.mxu0 0.0
    %1723 = vmatpush1.xpose.msra.mxu0 0.0
    %1724 = vmatprep.subr.mxu0 0.0
    %1725 = vmatpush1.xpose.msra.mxu0 0.0
    %1726 = vmatprep.subr.mxu0 0.0
    %1727 = vmatpush1.xpose.msra.mxu0 0.0
    %1728 = vmatprep.subr.mxu0 0.0
    %1729 = vmatpush1.xpose.msra.mxu0 0.0
    %1730 = vmatprep.subr.mxu0 0.0
    %1731 = vmatpush1.xpose.msra.mxu0 0.0
    %1732 = vmatprep.subr.mxu0 0.0
    %1733 = vmatpush1.xpose.msra.mxu0 0.0
    %1734 = vmatprep.subr.mxu0 0.0
    %1735 = vmatpush1.xpose.msra.mxu0 0.0
    %1736 = vmatprep.subr.mxu0 0.0
    %1737 = vmatpush1.xpose.msra.mxu0 0.0
    %1738 = vmatprep.subr.mxu0 0.0
    %1739 = vmatpush1.xpose.msra.mxu0 0.0
    %1740 = vmatprep.subr.mxu0 0.0
    %1741 = vmatpush1.xpose.msra.mxu0 0.0
    %1742 = vmatprep.subr.mxu0 0.0
    %1743 = vmatpush1.xpose.msra.mxu0 0.0
    %1744 = vmatprep.subr.mxu0 0.0
    %1745 = vmatpush1.xpose.msra.mxu0 0.0
    %1746 = vmatprep.subr.mxu0 0.0
    %1747 = vmatpush1.xpose.msra.mxu0 0.0
    %1748 = vmatprep.subr.mxu0 0.0
    %1749 = vmatpush1.xpose.msra.mxu0 0.0
    %1750 = vmatprep.subr.mxu0 0.0
    %1751 = vmatpush1.xpose.msra.mxu0 0.0
    %1752 = vmatprep.subr.mxu0 0.0
    %1753 = vmatpush1.xpose.msra.mxu0 0.0
    %1754 = vmatprep.subr.mxu0 0.0
    %1755 = vmatpush1.xpose.msra.mxu0 0.0
    %1756 = vmatprep.subr.mxu0 0.0
    %1757 = vmatpush1.xpose.msra.mxu0 0.0
    %1758 = vmatprep.subr.mxu0 0.0
    %1759 = vmatpush1.xpose.msra.mxu0 0.0
    %1760 = vmatprep.subr.mxu0 0.0
    %1761 = vmatpush1.xpose.msra.mxu0 0.0
    %1762 = vmatprep.subr.mxu0 0.0
    %1763 = vmatpush1.xpose.msra.mxu0 0.0
    %1764 = vmatprep.subr.mxu0 0.0
    %1765 = vmatpush1.xpose.msra.mxu0 0.0
    %1766 = vmatprep.mubr.f32.mxu0 0.0
    %1767 = vmatmul.mubr.f32.gmra.mrb[0].mxu0 %v1698
    %v1768 = vpop.f32.mrb[0].mxu0
    %v1769 = vadd.f32 %v201, %v1768
    %v1770 = vpop.f32.mrb[0].mxu0
    %1771 = vdwg.mxu0
    %1772 = vrot.lane.b32.xlu0 %v1363, 112
    %v1773 = vpop.permute.xlu0 %1772
    %1774 = vrot.lane.b32.xlu0 %v1363, 80
    %v1775 = vpop.permute.xlu0 %1774
    %v1776 = vsel %vm211, %v1773, 0
    %v1778 = vsel %vm211, %v1775, 0
    %1780 = vmatprep.subr.mxu0 0.0
    %1781 = vmatpush1.xpose.msra.mxu0 %v1778
    %1782 = vmatprep.subr.mxu0 0.0
    %1783 = vmatpush1.xpose.msra.mxu0 0.0
    %1784 = vmatprep.subr.mxu0 0.0
    %1785 = vmatpush1.xpose.msra.mxu0 0.0
    %1786 = vmatprep.subr.mxu0 0.0
    %1787 = vmatpush1.xpose.msra.mxu0 0.0
    %1788 = vmatprep.subr.mxu0 0.0
    %1789 = vmatpush1.xpose.msra.mxu0 0.0
    %1790 = vmatprep.subr.mxu0 0.0
    %1791 = vmatpush1.xpose.msra.mxu0 0.0
    %1792 = vmatprep.subr.mxu0 0.0
    %1793 = vmatpush1.xpose.msra.mxu0 0.0
    %1794 = vmatprep.subr.mxu0 0.0
    %1795 = vmatpush1.xpose.msra.mxu0 0.0
    %1796 = vmatprep.subr.mxu0 0.0
    %1797 = vmatpush1.xpose.msra.mxu0 0.0
    %1798 = vmatprep.subr.mxu0 0.0
    %1799 = vmatpush1.xpose.msra.mxu0 0.0
    %1800 = vmatprep.subr.mxu0 0.0
    %1801 = vmatpush1.xpose.msra.mxu0 0.0
    %1802 = vmatprep.subr.mxu0 0.0
    %1803 = vmatpush1.xpose.msra.mxu0 0.0
    %1804 = vmatprep.subr.mxu0 0.0
    %1805 = vmatpush1.xpose.msra.mxu0 0.0
    %1806 = vmatprep.subr.mxu0 0.0
    %1807 = vmatpush1.xpose.msra.mxu0 0.0
    %1808 = vmatprep.subr.mxu0 0.0
    %1809 = vmatpush1.xpose.msra.mxu0 0.0
    %1810 = vmatprep.subr.mxu0 0.0
    %1811 = vmatpush1.xpose.msra.mxu0 0.0
    %1812 = vmatprep.subr.mxu0 0.0
    %1813 = vmatpush1.xpose.msra.mxu0 0.0
    %1814 = vmatprep.subr.mxu0 0.0
    %1815 = vmatpush1.xpose.msra.mxu0 0.0
    %1816 = vmatprep.subr.mxu0 0.0
    %1817 = vmatpush1.xpose.msra.mxu0 0.0
    %1818 = vmatprep.subr.mxu0 0.0
    %1819 = vmatpush1.xpose.msra.mxu0 0.0
    %1820 = vmatprep.subr.mxu0 0.0
    %1821 = vmatpush1.xpose.msra.mxu0 0.0
    %1822 = vmatprep.subr.mxu0 0.0
    %1823 = vmatpush1.xpose.msra.mxu0 0.0
    %1824 = vmatprep.subr.mxu0 0.0
    %1825 = vmatpush1.xpose.msra.mxu0 0.0
    %1826 = vmatprep.subr.mxu0 0.0
    %1827 = vmatpush1.xpose.msra.mxu0 0.0
    %1828 = vmatprep.subr.mxu0 0.0
    %1829 = vmatpush1.xpose.msra.mxu0 0.0
    %1830 = vmatprep.subr.mxu0 0.0
    %1831 = vmatpush1.xpose.msra.mxu0 0.0
    %1832 = vmatprep.subr.mxu0 0.0
    %1833 = vmatpush1.xpose.msra.mxu0 0.0
    %1834 = vmatprep.subr.mxu0 0.0
    %1835 = vmatpush1.xpose.msra.mxu0 0.0
    %1836 = vmatprep.subr.mxu0 0.0
    %1837 = vmatpush1.xpose.msra.mxu0 0.0
    %1838 = vmatprep.subr.mxu0 0.0
    %1839 = vmatpush1.xpose.msra.mxu0 0.0
    %1840 = vmatprep.subr.mxu0 0.0
    %1841 = vmatpush1.xpose.msra.mxu0 0.0
    %1842 = vmatprep.subr.mxu0 0.0
    %1843 = vmatpush1.xpose.msra.mxu0 0.0
    %1844 = vmatprep.mubr.f32.mxu0 0.0
    %1845 = vmatmul.mubr.f32.gmra.mrb[0].mxu0 %v1776
    %v1846 = vpop.f32.mrb[0].mxu0
    %v1847 = vadd.f32 %v205, %v1846
    %v1848 = vpop.f32.mrb[0].mxu0
    %1849 = vdwg.mxu0
    %v1850 = vsel %vm363, %v1769, -inf
    %1851 = vmax.xlane.f32.xlu0 %v1850
    %v1852 = vpop.xlane.xlu0 %1851
    %v1853 = vsel %vm363, %v1847, -inf
    %1854 = vmax.xlane.f32.xlu0 %v1853
    %v1855 = vpop.xlane.xlu0 %1854
    %v1856 = vsub.f32 %v1769, %v1852
    %v1857 = vsub.f32 %v1847, %v1855
    %v1858 = vmul.f32 %v1856, 1.442695
    %v1859 = vpow.pop %v1858
    %v1860 = vmul.f32 %v1857, 1.442695
    %v1861 = vpow.pop %v1860
    %v1862 = vsel %vm363, %v1859, 0.0
    %1863 = vadd.xlane.f32.xlu0 %v1862
    %v1864 = vpop.xlane.xlu0 %1863
    %v1865 = vsel %vm363, %v1861, 0.0
    %1866 = vadd.xlane.f32.xlu0 %v1865
    %v1867 = vpop.xlane.xlu0 %1866
    %v1868 = vrcp.pop %v1864
    %v1869 = vrcp.pop %v1867
    %v1870 = vmul.f32 %v1859, %v1868
    %v1871 = vmul.f32 %v1861, %v1869
    %1872 = vrot.lane.b32.xlu0 %v1358, 48
    %v1873 = vpop.permute.xlu0 %1872
    %v1876 = vsel %vm363, %v1870, 0
    %1878 = vmatprep.subr.mxu0 0.0
    %1879 = vmatpush1.msra.mxu0 %v1873
    %1880 = vmatprep.subr.mxu0 0.0
    %1881 = vmatpush1.msra.mxu0 0.0
    %1882 = vmatprep.subr.mxu0 0.0
    %1883 = vmatpush1.msra.mxu0 0.0
    %1884 = vmatprep.subr.mxu0 0.0
    %1885 = vmatpush1.msra.mxu0 0.0
    %1886 = vmatprep.subr.mxu0 0.0
    %1887 = vmatpush1.msra.mxu0 0.0
    %1888 = vmatprep.subr.mxu0 0.0
    %1889 = vmatpush1.msra.mxu0 0.0
    %1890 = vmatprep.subr.mxu0 0.0
    %1891 = vmatpush1.msra.mxu0 0.0
    %1892 = vmatprep.subr.mxu0 0.0
    %1893 = vmatpush1.msra.mxu0 0.0
    %1894 = vmatprep.subr.mxu0 0.0
    %1895 = vmatpush1.msra.mxu0 0.0
    %1896 = vmatprep.subr.mxu0 0.0
    %1897 = vmatpush1.msra.mxu0 0.0
    %1898 = vmatprep.subr.mxu0 0.0
    %1899 = vmatpush1.msra.mxu0 0.0
    %1900 = vmatprep.subr.mxu0 0.0
    %1901 = vmatpush1.msra.mxu0 0.0
    %1902 = vmatprep.subr.mxu0 0.0
    %1903 = vmatpush1.msra.mxu0 0.0
    %1904 = vmatprep.subr.mxu0 0.0
    %1905 = vmatpush1.msra.mxu0 0.0
    %1906 = vmatprep.subr.mxu0 0.0
    %1907 = vmatpush1.msra.mxu0 0.0
    %1908 = vmatprep.subr.mxu0 0.0
    %1909 = vmatpush1.msra.mxu0 0.0
    %1910 = vmatprep.subr.mxu0 0.0
    %1911 = vmatpush1.msra.mxu0 0.0
    %1912 = vmatprep.subr.mxu0 0.0
    %1913 = vmatpush1.msra.mxu0 0.0
    %1914 = vmatprep.subr.mxu0 0.0
    %1915 = vmatpush1.msra.mxu0 0.0
    %1916 = vmatprep.subr.mxu0 0.0
    %1917 = vmatpush1.msra.mxu0 0.0
    %1918 = vmatprep.subr.mxu0 0.0
    %1919 = vmatpush1.msra.mxu0 0.0
    %1920 = vmatprep.subr.mxu0 0.0
    %1921 = vmatpush1.msra.mxu0 0.0
    %1922 = vmatprep.subr.mxu0 0.0
    %1923 = vmatpush1.msra.mxu0 0.0
    %1924 = vmatprep.subr.mxu0 0.0
    %1925 = vmatpush1.msra.mxu0 0.0
    %1926 = vmatprep.subr.mxu0 0.0
    %1927 = vmatpush1.msra.mxu0 0.0
    %1928 = vmatprep.subr.mxu0 0.0
    %1929 = vmatpush1.msra.mxu0 0.0
    %1930 = vmatprep.subr.mxu0 0.0
    %1931 = vmatpush1.msra.mxu0 0.0
    %1932 = vmatprep.subr.mxu0 0.0
    %1933 = vmatpush1.msra.mxu0 0.0
    %1934 = vmatprep.subr.mxu0 0.0
    %1935 = vmatpush1.msra.mxu0 0.0
    %1936 = vmatprep.subr.mxu0 0.0
    %1937 = vmatpush1.msra.mxu0 0.0
    %1938 = vmatprep.subr.mxu0 0.0
    %1939 = vmatpush1.msra.mxu0 0.0
    %1940 = vmatprep.subr.mxu0 0.0
    %1941 = vmatpush1.msra.mxu0 0.0
    %1942 = vmatprep.mubr.f32.mxu0 0.0
    %1943 = vmatmul.mubr.f32.gmra.mrb[0].mxu0 %v1876
    %v1944 = vpop.f32.mrb[0].mxu0
    %v1945 = vadd.f32 0.0, %v1944
    %v1946 = vpop.f32.mrb[0].mxu0
    %1947 = vdwg.mxu0
    %1948 = vrot.lane.b32.xlu0 %v1363, 48
    %v1949 = vpop.permute.xlu0 %1948
    %v1952 = vsel %vm363, %v1871, 0
    %1954 = vmatprep.subr.mxu0 0.0
    %1955 = vmatpush1.msra.mxu0 %v1949
    %1956 = vmatprep.subr.mxu0 0.0
    %1957 = vmatpush1.msra.mxu0 0.0
    %1958 = vmatprep.subr.mxu0 0.0
    %1959 = vmatpush1.msra.mxu0 0.0
    %1960 = vmatprep.subr.mxu0 0.0
    %1961 = vmatpush1.msra.mxu0 0.0
    %1962 = vmatprep.subr.mxu0 0.0
    %1963 = vmatpush1.msra.mxu0 0.0
    %1964 = vmatprep.subr.mxu0 0.0
    %1965 = vmatpush1.msra.mxu0 0.0
    %1966 = vmatprep.subr.mxu0 0.0
    %1967 = vmatpush1.msra.mxu0 0.0
    %1968 = vmatprep.subr.mxu0 0.0
    %1969 = vmatpush1.msra.mxu0 0.0
    %1970 = vmatprep.subr.mxu0 0.0
    %1971 = vmatpush1.msra.mxu0 0.0
    %1972 = vmatprep.subr.mxu0 0.0
    %1973 = vmatpush1.msra.mxu0 0.0
    %1974 = vmatprep.subr.mxu0 0.0
    %1975 = vmatpush1.msra.mxu0 0.0
    %1976 = vmatprep.subr.mxu0 0.0
    %1977 = vmatpush1.msra.mxu0 0.0
    %1978 = vmatprep.subr.mxu0 0.0
    %1979 = vmatpush1.msra.mxu0 0.0
    %1980 = vmatprep.subr.mxu0 0.0
    %1981 = vmatpush1.msra.mxu0 0.0
    %1982 = vmatprep.subr.mxu0 0.0
    %1983 = vmatpush1.msra.mxu0 0.0
    %1984 = vmatprep.subr.mxu0 0.0
    %1985 = vmatpush1.msra.mxu0 0.0
    %1986 = vmatprep.subr.mxu0 0.0
    %1987 = vmatpush1.msra.mxu0 0.0
    %1988 = vmatprep.subr.mxu0 0.0
    %1989 = vmatpush1.msra.mxu0 0.0
    %1990 = vmatprep.subr.mxu0 0.0
    %1991 = vmatpush1.msra.mxu0 0.0
    %1992 = vmatprep.subr.mxu0 0.0
    %1993 = vmatpush1.msra.mxu0 0.0
    %1994 = vmatprep.subr.mxu0 0.0
    %1995 = vmatpush1.msra.mxu0 0.0
    %1996 = vmatprep.subr.mxu0 0.0
    %1997 = vmatpush1.msra.mxu0 0.0
    %1998 = vmatprep.subr.mxu0 0.0
    %1999 = vmatpush1.msra.mxu0 0.0
    %2000 = vmatprep.subr.mxu0 0.0
    %2001 = vmatpush1.msra.mxu0 0.0
    %2002 = vmatprep.subr.mxu0 0.0
    %2003 = vmatpush1.msra.mxu0 0.0
    %2004 = vmatprep.subr.mxu0 0.0
    %2005 = vmatpush1.msra.mxu0 0.0
    %2006 = vmatprep.subr.mxu0 0.0
    %2007 = vmatpush1.msra.mxu0 0.0
    %2008 = vmatprep.subr.mxu0 0.0
    %2009 = vmatpush1.msra.mxu0 0.0
    %2010 = vmatprep.subr.mxu0 0.0
    %2011 = vmatpush1.msra.mxu0 0.0
    %2012 = vmatprep.subr.mxu0 0.0
    %2013 = vmatpush1.msra.mxu0 0.0
    %2014 = vmatprep.subr.mxu0 0.0
    %2015 = vmatpush1.msra.mxu0 0.0
    %2016 = vmatprep.subr.mxu0 0.0
    %2017 = vmatpush1.msra.mxu0 0.0
    %2018 = vmatprep.mubr.f32.mxu0 0.0
    %2019 = vmatmul.mubr.f32.gmra.mrb[0].mxu0 %v1952
    %v2020 = vpop.f32.mrb[0].mxu0
    %v2021 = vadd.f32 0.0, %v2020
    %v2022 = vpop.f32.mrb[0].mxu0
    %2023 = vdwg.mxu0
    %2026 = vrot.lane.b32.xlu0 %v1945, 16
    %v2027 = vpop.permute.xlu0 %2026
    %2028 = vrot.lane.b32.xlu0 %v2021, 16
    %v2029 = vpop.permute.xlu0 %2028
    %v2032 = vsel %vm211, %v1615, %v2027
    %v2033 = vsel %vm211, %v1691, %v2029
    %s2034 = scalar_lea.vmem %s6, 32
    %v2035 = vld [vmem:[%s2034] sm:$0xff]
    %v2036 = vld [vmem:[%s2034 + $0x8] sm:$0xff]
    %v2037 = vld [vmem:[%s2034 + $0x10] sm:$0xff]
    %v2038 = vld [vmem:[%s2034 + $0x18] sm:$0xff]
    %s2039 = scalar_lea.vmem %s7, 1
    %v2040 = vld [vmem:[%s2039] sm:$0x1]
    %v2042 = vlaneseq
    %v2043 = vshrl.u32 %v2042, 7
    %v2044 = vsub.s32 0, %v2043
    %v2045 = vrot.slane %v2040, %v2044
    %v2048 = vsel %vm60, %v2032, 0
    %v2051 = vsel %vm60, %v2033, 0
    %2053 = vmatprep.subr.mxu0 0.0
    %2054 = vmatpush1.msra.mxu0 %v2035
    %2055 = vmatprep.subr.mxu0 0.0
    %2056 = vmatpush1.msra.mxu0 %v2036
    %2057 = vmatprep.subr.mxu0 0.0
    %2058 = vmatpush1.msra.mxu0 %v2037
    %2059 = vmatprep.subr.mxu0 0.0
    %2060 = vmatpush1.msra.mxu0 %v2038
    %2061 = vmatprep.subr.mxu0 0.0
    %2062 = vmatpush1.msra.mxu0 0.0
    %2063 = vmatprep.subr.mxu0 0.0
    %2064 = vmatpush1.msra.mxu0 0.0
    %2065 = vmatprep.subr.mxu0 0.0
    %2066 = vmatpush1.msra.mxu0 0.0
    %2067 = vmatprep.subr.mxu0 0.0
    %2068 = vmatpush1.msra.mxu0 0.0
    %2069 = vmatprep.subr.mxu0 0.0
    %2070 = vmatpush1.msra.mxu0 0.0
    %2071 = vmatprep.subr.mxu0 0.0
    %2072 = vmatpush1.msra.mxu0 0.0
    %2073 = vmatprep.subr.mxu0 0.0
    %2074 = vmatpush1.msra.mxu0 0.0
    %2075 = vmatprep.subr.mxu0 0.0
    %2076 = vmatpush1.msra.mxu0 0.0
    %2077 = vmatprep.subr.mxu0 0.0
    %2078 = vmatpush1.msra.mxu0 0.0
    %2079 = vmatprep.subr.mxu0 0.0
    %2080 = vmatpush1.msra.mxu0 0.0
    %2081 = vmatprep.subr.mxu0 0.0
    %2082 = vmatpush1.msra.mxu0 0.0
    %2083 = vmatprep.subr.mxu0 0.0
    %2084 = vmatpush1.msra.mxu0 0.0
    %2085 = vmatprep.subr.mxu0 0.0
    %2086 = vmatpush1.msra.mxu0 0.0
    %2087 = vmatprep.subr.mxu0 0.0
    %2088 = vmatpush1.msra.mxu0 0.0
    %2089 = vmatprep.subr.mxu0 0.0
    %2090 = vmatpush1.msra.mxu0 0.0
    %2091 = vmatprep.subr.mxu0 0.0
    %2092 = vmatpush1.msra.mxu0 0.0
    %2093 = vmatprep.subr.mxu0 0.0
    %2094 = vmatpush1.msra.mxu0 0.0
    %2095 = vmatprep.subr.mxu0 0.0
    %2096 = vmatpush1.msra.mxu0 0.0
    %2097 = vmatprep.subr.mxu0 0.0
    %2098 = vmatpush1.msra.mxu0 0.0
    %2099 = vmatprep.subr.mxu0 0.0
    %2100 = vmatpush1.msra.mxu0 0.0
    %2101 = vmatprep.subr.mxu0 0.0
    %2102 = vmatpush1.msra.mxu0 0.0
    %2103 = vmatprep.subr.mxu0 0.0
    %2104 = vmatpush1.msra.mxu0 0.0
    %2105 = vmatprep.subr.mxu0 0.0
    %2106 = vmatpush1.msra.mxu0 0.0
    %2107 = vmatprep.subr.mxu0 0.0
    %2108 = vmatpush1.msra.mxu0 0.0
    %2109 = vmatprep.subr.mxu0 0.0
    %2110 = vmatpush1.msra.mxu0 0.0
    %2111 = vmatprep.subr.mxu0 0.0
    %2112 = vmatpush1.msra.mxu0 0.0
    %2113 = vmatprep.subr.mxu0 0.0
    %2114 = vmatpush1.msra.mxu0 0.0
    %2115 = vmatprep.subr.mxu0 0.0
    %2116 = vmatpush1.msra.mxu0 0.0
    %2117 = vmatprep.mubr.f32.mxu0 0.0
    %2118 = vmatmul.mubr.f32.gmra.mrb[0].mxu0 %v2048
    %v2119 = vpop.f32.mrb[0].mxu0
    %v2120 = vadd.f32 %v2045, %v2119
    %v2121 = vpop.f32.mrb[0].mxu0
    %2122 = vmatprep.mubr.f32.mxu0 0.0
    %2123 = vmatmul.mubr.f32.gmra.mrb[0].mxu0 %v2051
    %v2124 = vpop.f32.mrb[0].mxu0
    %v2125 = vadd.f32 %v2045, %v2124
    %v2126 = vpop.f32.mrb[0].mxu0
    %2127 = vdwg.mxu0
    %v2128 = vadd.f32 %v1224, %v2120
    %v2129 = vadd.f32 %v1225, %v2125
    %s2130 = scalar_lea.vmem %s8, 1
    %v2131 = vld [vmem:[%s2130] sm:$0x1]
    %s2132 = scalar_lea.vmem %s9, 1
    %v2133 = vld [vmem:[%s2132] sm:$0x1]
    %v2134 = vsel %vm60, %v2128, 0.0
    %2135 = vadd.xlane.f32.xlu0 %v2134
    %v2136 = vpop.xlane.xlu0 %2135
    %v2137 = vsel %vm60, %v2129, 0.0
    %2138 = vadd.xlane.f32.xlu0 %v2137
    %v2139 = vpop.xlane.xlu0 %2138
    %v2140 = vmul.f32 %v2136, %v67
    %v2141 = vmul.f32 %v2139, %v67
    %v2142 = vsub.f32 %v2128, %v2140
    %v2143 = vsub.f32 %v2129, %v2141
    %v2144 = vmul.f32 %v2142, %v2142
    %v2145 = vmul.f32 %v2143, %v2143
    %v2146 = vsel %vm60, %v2144, 0.0
    %2147 = vadd.xlane.f32.xlu0 %v2146
    %v2148 = vpop.xlane.xlu0 %2147
    %v2149 = vsel %vm60, %v2145, 0.0
    %2150 = vadd.xlane.f32.xlu0 %v2149
    %v2151 = vpop.xlane.xlu0 %2150
    %v2152 = vmul.f32 %v2148, %v67
    %v2153 = vmul.f32 %v2151, %v67
    %v2154 = vadd.f32 %v2152, 1e-05
    %v2155 = vadd.f32 %v2153, 1e-05
    %v2156 = vrsqrt.pop %v2154
    %v2157 = vrsqrt.pop %v2155
    %v2158 = vmul.f32 %v2142, %v2156
    %v2159 = vmul.f32 %v2143, %v2157
    %v2161 = vlaneseq
    %v2162 = vshrl.u32 %v2161, 7
    %v2163 = vsub.s32 0, %v2162
    %v2164 = vrot.slane %v2131, %v2163
    %v2166 = vmul.f32 %v2158, %v2164
    %v2167 = vmul.f32 %v2159, %v2164
    %v2169 = vlaneseq
    %v2170 = vshrl.u32 %v2169, 7
    %v2171 = vsub.s32 0, %v2170
    %v2172 = vrot.slane %v2133, %v2171
    %v2174 = vadd.f32 %v2166, %v2172
    %v2175 = vadd.f32 %v2167, %v2172
    %s2176 = scalar_lea.vmem %s10, 32
    %v2177 = vld [vmem:[%s2176] sm:$0xff]
    %v2178 = vld [vmem:[%s2176 + $0x8] sm:$0xff]
    %v2179 = vld [vmem:[%s2176 + $0x10] sm:$0xff]
    %v2180 = vld [vmem:[%s2176 + $0x18] sm:$0xff]
    %s2181 = scalar_lea.vmem %s11, 1
    %v2182 = vld [vmem:[%s2181] sm:$0x1]
    %v2184 = vlaneseq
    %v2185 = vshrl.u32 %v2184, 7
    %v2186 = vsub.s32 0, %v2185
    %v2187 = vrot.slane %v2182, %v2186
    %v2190 = vsel %vm60, %v2174, 0
    %v2193 = vsel %vm60, %v2175, 0
    %2195 = vmatprep.subr.mxu0 0.0
    %2196 = vmatpush1.msra.mxu0 %v2177
    %2197 = vmatprep.subr.mxu0 0.0
    %2198 = vmatpush1.msra.mxu0 %v2178
    %2199 = vmatprep.subr.mxu0 0.0
    %2200 = vmatpush1.msra.mxu0 %v2179
    %2201 = vmatprep.subr.mxu0 0.0
    %2202 = vmatpush1.msra.mxu0 %v2180
    %2203 = vmatprep.subr.mxu0 0.0
    %2204 = vmatpush1.msra.mxu0 0.0
    %2205 = vmatprep.subr.mxu0 0.0
    %2206 = vmatpush1.msra.mxu0 0.0
    %2207 = vmatprep.subr.mxu0 0.0
    %2208 = vmatpush1.msra.mxu0 0.0
    %2209 = vmatprep.subr.mxu0 0.0
    %2210 = vmatpush1.msra.mxu0 0.0
    %2211 = vmatprep.subr.mxu0 0.0
    %2212 = vmatpush1.msra.mxu0 0.0
    %2213 = vmatprep.subr.mxu0 0.0
    %2214 = vmatpush1.msra.mxu0 0.0
    %2215 = vmatprep.subr.mxu0 0.0
    %2216 = vmatpush1.msra.mxu0 0.0
    %2217 = vmatprep.subr.mxu0 0.0
    %2218 = vmatpush1.msra.mxu0 0.0
    %2219 = vmatprep.subr.mxu0 0.0
    %2220 = vmatpush1.msra.mxu0 0.0
    %2221 = vmatprep.subr.mxu0 0.0
    %2222 = vmatpush1.msra.mxu0 0.0
    %2223 = vmatprep.subr.mxu0 0.0
    %2224 = vmatpush1.msra.mxu0 0.0
    %2225 = vmatprep.subr.mxu0 0.0
    %2226 = vmatpush1.msra.mxu0 0.0
    %2227 = vmatprep.subr.mxu0 0.0
    %2228 = vmatpush1.msra.mxu0 0.0
    %2229 = vmatprep.subr.mxu0 0.0
    %2230 = vmatpush1.msra.mxu0 0.0
    %2231 = vmatprep.subr.mxu0 0.0
    %2232 = vmatpush1.msra.mxu0 0.0
    %2233 = vmatprep.subr.mxu0 0.0
    %2234 = vmatpush1.msra.mxu0 0.0
    %2235 = vmatprep.subr.mxu0 0.0
    %2236 = vmatpush1.msra.mxu0 0.0
    %2237 = vmatprep.subr.mxu0 0.0
    %2238 = vmatpush1.msra.mxu0 0.0
    %2239 = vmatprep.subr.mxu0 0.0
    %2240 = vmatpush1.msra.mxu0 0.0
    %2241 = vmatprep.subr.mxu0 0.0
    %2242 = vmatpush1.msra.mxu0 0.0
    %2243 = vmatprep.subr.mxu0 0.0
    %2244 = vmatpush1.msra.mxu0 0.0
    %2245 = vmatprep.subr.mxu0 0.0
    %2246 = vmatpush1.msra.mxu0 0.0
    %2247 = vmatprep.subr.mxu0 0.0
    %2248 = vmatpush1.msra.mxu0 0.0
    %2249 = vmatprep.subr.mxu0 0.0
    %2250 = vmatpush1.msra.mxu0 0.0
    %2251 = vmatprep.subr.mxu0 0.0
    %2252 = vmatpush1.msra.mxu0 0.0
    %2253 = vmatprep.subr.mxu0 0.0
    %2254 = vmatpush1.msra.mxu0 0.0
    %2255 = vmatprep.subr.mxu0 0.0
    %2256 = vmatpush1.msra.mxu0 0.0
    %2257 = vmatprep.subr.mxu0 0.0
    %2258 = vmatpush1.msra.mxu0 0.0
    %2259 = vmatprep.mubr.f32.mxu0 0.0
    %2260 = vmatmul.mubr.f32.gmra.mrb[0].mxu0 %v2190
    %v2261 = vpop.f32.mrb[0].mxu0
    %v2262 = vadd.f32 %v2187, %v2261
    %v2263 = vpop.f32.mrb[0].mxu0
    %2264 = vmatprep.mubr.f32.mxu0 0.0
    %2265 = vmatmul.mubr.f32.gmra.mrb[0].mxu0 %v2193
    %v2266 = vpop.f32.mrb[0].mxu0
    %v2267 = vadd.f32 %v2187, %v2266
    %v2268 = vpop.f32.mrb[0].mxu0
    %2269 = vdwg.mxu0
    %v2270 = vmul.f32 %v2262, %v2262
    %v2271 = vmul.f32 %v2267, %v2267
    %v2272 = vmul.f32 %v2262, %v2270
    %v2273 = vmul.f32 %v2267, %v2271
    %v2274 = vmul.f32 %v2272, 0.044715
    %v2275 = vmul.f32 %v2273, 0.044715
    %v2276 = vadd.f32 %v2262, %v2274
    %v2277 = vadd.f32 %v2267, %v2275
    %v2278 = vmul.f32 %v2276, 0.7978846
    %v2279 = vmul.f32 %v2277, 0.7978846
    %v2280 = vtanh.pop %v2278
    %v2281 = vtanh.pop %v2279
    %v2282 = vadd.f32 %v2280, 1.0
    %v2283 = vadd.f32 %v2281, 1.0
    %v2284 = vmul.f32 %v2282, 0.5
    %v2285 = vmul.f32 %v2283, 0.5
    %v2286 = vmul.f32 %v2262, %v2284
    %v2287 = vmul.f32 %v2267, %v2285
    %s2288 = scalar_lea.vmem %s12, 128
    %v2289 = vld [vmem:[%s2288] sm:$0xff]
    %v2290 = vld [vmem:[%s2288 + $0x8] sm:$0xff]
    %v2291 = vld [vmem:[%s2288 + $0x10] sm:$0xff]
    %v2292 = vld [vmem:[%s2288 + $0x18] sm:$0xff]
    %v2293 = vld [vmem:[%s2288 + $0x20] sm:$0xff]
    %v2294 = vld [vmem:[%s2288 + $0x28] sm:$0xff]
    %v2295 = vld [vmem:[%s2288 + $0x30] sm:$0xff]
    %v2296 = vld [vmem:[%s2288 + $0x38] sm:$0xff]
    %v2297 = vld [vmem:[%s2288 + $0x40] sm:$0xff]
    %v2298 = vld [vmem:[%s2288 + $0x48] sm:$0xff]
    %v2299 = vld [vmem:[%s2288 + $0x50] sm:$0xff]
    %v2300 = vld [vmem:[%s2288 + $0x58] sm:$0xff]
    %v2301 = vld [vmem:[%s2288 + $0x60] sm:$0xff]
    %v2302 = vld [vmem:[%s2288 + $0x68] sm:$0xff]
    %v2303 = vld [vmem:[%s2288 + $0x70] sm:$0xff]
    %v2304 = vld [vmem:[%s2288 + $0x78] sm:$0xff]
    %s2305 = scalar_lea.vmem %s13, 1
    %v2306 = vld [vmem:[%s2305] sm:$0x1]
    %v2308 = vlaneseq
    %v2309 = vshrl.u32 %v2308, 7
    %v2310 = vsub.s32 0, %v2309
    %v2311 = vrot.slane %v2306, %v2310
    %2313 = vmatprep.subr.mxu0 0.0
    %2314 = vmatpush1.msra.mxu0 %v2289
    %2315 = vmatprep.subr.mxu0 0.0
    %2316 = vmatpush1.msra.mxu0 %v2290
    %2317 = vmatprep.subr.mxu0 0.0
    %2318 = vmatpush1.msra.mxu0 %v2291
    %2319 = vmatprep.subr.mxu0 0.0
    %2320 = vmatpush1.msra.mxu0 %v2292
    %2321 = vmatprep.subr.mxu0 0.0
    %2322 = vmatpush1.msra.mxu0 %v2293
    %2323 = vmatprep.subr.mxu0 0.0
    %2324 = vmatpush1.msra.mxu0 %v2294
    %2325 = vmatprep.subr.mxu0 0.0
    %2326 = vmatpush1.msra.mxu0 %v2295
    %2327 = vmatprep.subr.mxu0 0.0
    %2328 = vmatpush1.msra.mxu0 %v2296
    %2329 = vmatprep.subr.mxu0 0.0
    %2330 = vmatpush1.msra.mxu0 %v2297
    %2331 = vmatprep.subr.mxu0 0.0
    %2332 = vmatpush1.msra.mxu0 %v2298
    %2333 = vmatprep.subr.mxu0 0.0
    %2334 = vmatpush1.msra.mxu0 %v2299
    %2335 = vmatprep.subr.mxu0 0.0
    %2336 = vmatpush1.msra.mxu0 %v2300
    %2337 = vmatprep.subr.mxu0 0.0
    %2338 = vmatpush1.msra.mxu0 %v2301
    %2339 = vmatprep.subr.mxu0 0.0
    %2340 = vmatpush1.msra.mxu0 %v2302
    %2341 = vmatprep.subr.mxu0 0.0
    %2342 = vmatpush1.msra.mxu0 %v2303
    %2343 = vmatprep.subr.mxu0 0.0
    %2344 = vmatpush1.msra.mxu0 %v2304
    %2345 = vmatprep.subr.mxu0 0.0
    %2346 = vmatpush1.msra.mxu0 0.0
    %2347 = vmatprep.subr.mxu0 0.0
    %2348 = vmatpush1.msra.mxu0 0.0
    %2349 = vmatprep.subr.mxu0 0.0
    %2350 = vmatpush1.msra.mxu0 0.0
    %2351 = vmatprep.subr.mxu0 0.0
    %2352 = vmatpush1.msra.mxu0 0.0
    %2353 = vmatprep.subr.mxu0 0.0
    %2354 = vmatpush1.msra.mxu0 0.0
    %2355 = vmatprep.subr.mxu0 0.0
    %2356 = vmatpush1.msra.mxu0 0.0
    %2357 = vmatprep.subr.mxu0 0.0
    %2358 = vmatpush1.msra.mxu0 0.0
    %2359 = vmatprep.subr.mxu0 0.0
    %2360 = vmatpush1.msra.mxu0 0.0
    %2361 = vmatprep.subr.mxu0 0.0
    %2362 = vmatpush1.msra.mxu0 0.0
    %2363 = vmatprep.subr.mxu0 0.0
    %2364 = vmatpush1.msra.mxu0 0.0
    %2365 = vmatprep.subr.mxu0 0.0
    %2366 = vmatpush1.msra.mxu0 0.0
    %2367 = vmatprep.subr.mxu0 0.0
    %2368 = vmatpush1.msra.mxu0 0.0
    %2369 = vmatprep.subr.mxu0 0.0
    %2370 = vmatpush1.msra.mxu0 0.0
    %2371 = vmatprep.subr.mxu0 0.0
    %2372 = vmatpush1.msra.mxu0 0.0
    %2373 = vmatprep.subr.mxu0 0.0
    %2374 = vmatpush1.msra.mxu0 0.0
    %2375 = vmatprep.subr.mxu0 0.0
    %2376 = vmatpush1.msra.mxu0 0.0
    %2377 = vmatprep.mubr.f32.mxu0 0.0
    %2378 = vmatmul.mubr.f32.gmra.mrb[0].mxu0 %v2286
    %v2379 = vpop.f32.mrb[0].mxu0
    %v2380 = vadd.f32 %v2311, %v2379
    %v2381 = vpop.f32.mrb[0].mxu0
    %2382 = vmatprep.mubr.f32.mxu0 0.0
    %2383 = vmatmul.mubr.f32.gmra.mrb[0].mxu0 %v2287
    %v2384 = vpop.f32.mrb[0].mxu0
    %v2385 = vadd.f32 %v2311, %v2384
    %v2386 = vpop.f32.mrb[0].mxu0
    %2387 = vdwg.mxu0
    %v2388 = vadd.f32 %v2128, %v2380
    %v2389 = vadd.f32 %v2129, %v2385
    %v2390 = vld [vmem:[%s14] sm:$0x1]
    %v2391 = vld [vmem:[%s15] sm:$0x1]
    %v2392 = vsel %vm60, %v2388, 0.0
    %2393 = vadd.xlane.f32.xlu0 %v2392
    %v2394 = vpop.xlane.xlu0 %2393
    %v2395 = vsel %vm60, %v2389, 0.0
    %2396 = vadd.xlane.f32.xlu0 %v2395
    %v2397 = vpop.xlane.xlu0 %2396
    %v2398 = vmul.f32 %v2394, %v67
    %v2399 = vmul.f32 %v2397, %v67
    %v2400 = vsub.f32 %v2388, %v2398
    %v2401 = vsub.f32 %v2389, %v2399
    %v2402 = vmul.f32 %v2400, %v2400
    %v2403 = vmul.f32 %v2401, %v2401
    %v2404 = vsel %vm60, %v2402, 0.0
    %2405 = vadd.xlane.f32.xlu0 %v2404
    %v2406 = vpop.xlane.xlu0 %2405
    %v2407 = vsel %vm60, %v2403, 0.0
    %2408 = vadd.xlane.f32.xlu0 %v2407
    %v2409 = vpop.xlane.xlu0 %2408
    %v2410 = vmul.f32 %v2406, %v67
    %v2411 = vmul.f32 %v2409, %v67
    %v2412 = vadd.f32 %v2410, 1e-08
    %v2413 = vadd.f32 %v2411, 1e-08
    %v2414 = vrsqrt.pop %v2412
    %v2415 = vrsqrt.pop %v2413
    %v2416 = vmul.f32 %v2400, %v2414
    %v2417 = vmul.f32 %v2401, %v2415
    %v2419 = vlaneseq
    %v2420 = vshrl.u32 %v2419, 7
    %v2421 = vsub.s32 0, %v2420
    %v2422 = vrot.slane %v2390, %v2421
    %v2424 = vmul.f32 %v2416, %v2422
    %v2425 = vmul.f32 %v2417, %v2422
    %v2427 = vlaneseq
    %v2428 = vshrl.u32 %v2427, 7
    %v2429 = vsub.s32 0, %v2428
    %v2430 = vrot.slane %v2391, %v2429
    %v2432 = vadd.f32 %v2424, %v2430
    %v2433 = vadd.f32 %v2425, %v2430
    %2434 = vst.msk [vmem:[#allocation2] sm:$0xff] %vm60, %v2432
    %2435 = vst.msk [vmem:[#allocation2 + $0x8] sm:$0xff] %vm60, %v2433
    // Predicated region
    $region66: #{sasrec_forward.1} parent=1 // pred_check
      _
    $region67: #{sasrec_forward.1} parent=1 // pred_check_branch
      %2437 = sbr.rel (0) target = $region69
    $region68: #{sasrec_forward.1} parent=1 // pred_region
      %s2439 = ssub.s32 256, 256
      %2440 = vsyncadd [#allocation3], %s2439
      %s2441 = sshll.u32 [#allocation2], 4
      %s2442 = int_to_ptr.vmem [resolvable:$true] %s2441
      %2447 = dma.vmem_to_hbm [thread:$0]  %s2442, 256, %s16, [#allocation3], 128, 128, 8
    $region69: #{sasrec_forward.1} parent=1 // pred_fallthru
      _
    // Predicated region
    $region70: #{sasrec_forward.1} parent=1 // pred_check
      _
    $region71: #{sasrec_forward.1} parent=1 // pred_check_branch
      %2449 = sbr.rel (0) target = $region73
    $region72: #{sasrec_forward.1} parent=1 // pred_region
      %2450 = dma.done [#allocation3], 256
    $region73: #{sasrec_forward.1} parent=1 // pred_fallthru
      _
    %2451 = vsyncpa [#allocation3], 1

</llo_original>
